<compile_context>
chip_gen: v7x
topology: tpu7x:2x2x1
jax: 0.10.0
libtpu: 0.0.40
codegen_flags: <defaults>
</compile_context>

<pallas_src>
import functools

import jax
import jax.numpy as jnp
from jax.experimental import pallas as pl
from jax.experimental.pallas import tpu as pltpu


# ----------------------------- small helpers -----------------------------

def _round_up(x, m):
    return ((x + m - 1) // m) * m


def _sigmoid(z):
    # sigmoid(z) == 0.5 * tanh(0.5 * z) + 0.5 : one EUP op instead of exp + divide.
    return 0.5 * jnp.tanh(0.5 * z) + 0.5


def _pad_axis(x, axis, size):
    pad = size - x.shape[axis]
    if pad == 0:
        return x
    widths = [(0, 0)] * x.ndim
    widths[axis] = (0, pad)
    return jnp.pad(x, widths)


# ----------------------------- hardware / feature probes -----------------------------

@functools.lru_cache(maxsize=None)
def _tpu_vmem_bytes():
    """Physical VMEM of the current generation; conservative 64 MiB (v7x) fallback."""
    try:
        info = pltpu.get_tpu_info()
        v = getattr(info, "vmem_capacity_bytes", None)
        if v:
            return int(v)
    except Exception:
        pass
    return 64 << 20


@functools.lru_cache(maxsize=None)
def _tpu_num_tensorcores():
    """TensorCores per device if discoverable; default 1 (the conservative choice)."""
    try:
        info = pltpu.get_tpu_info()
        for name in ("num_cores", "core_count", "num_tensorcores",
                     "tensorcores_per_chip", "cores_per_chip"):
            v = getattr(info, name, None)
            if isinstance(v, int) and v > 0:
                return v
    except Exception:
        pass
    return 1


@functools.lru_cache(maxsize=None)
def _buffered_one_supported():
    """Probe (once, eagerly) whether BlockSpec(pipeline_mode=pl.Buffered(1)) lowers."""
    def _probe(x_ref, o_ref):
        o_ref[...] = x_ref[...] + 1.0
    try:
        spec = pl.BlockSpec((8, 128), lambda i: (0, 0), pipeline_mode=pl.Buffered(1))
        out = pl.pallas_call(
            _probe,
            out_shape=jax.ShapeDtypeStruct((8, 128), jnp.float32),
            grid=(1,),
            in_specs=[spec],
            out_specs=pl.BlockSpec((8, 128), lambda i: (0, 0)),
        )(jnp.zeros((8, 128), jnp.float32))
        jax.block_until_ready(out)
        return True
    except Exception:
        return False


def _whh_blockspec(hp):
    """Single-buffer the constant-index W_hh^T when the JAX build supports it."""
    if _buffered_one_supported():
        return pl.BlockSpec((hp, 4 * hp), lambda b, t: (0, 0),
                            pipeline_mode=pl.Buffered(1)), 1
    return pl.BlockSpec((hp, 4 * hp), lambda b, t: (0, 0)), 2


def _pipeline_vmem_bytes(tc, bb, hp, y_itemsize, whh_buffers):
    """VMEM actually used by the pipelined buffers + scratch for one grid step."""
    gx = 2 * tc * bb * 4 * hp * 2            # bf16 gates_x tile, double-buffered
    y = 2 * tc * bb * hp * y_itemsize        # y tile, double-buffered
    whh = whh_buffers * hp * 4 * hp * 2      # bf16 W_hh^T
    state_in = 2 * bb * hp * (2 + 4)         # h0 (bf16) + c0 (f32), double-buffered
    state_out = 2 * bb * hp * (4 + 4)        # hT + cT (f32), double-buffered
    scratch = bb * hp * (2 + 4)              # h (bf16) + c (f32) carries
    return gx + y + whh + state_in + state_out + scratch


def _choose_time_chunk(T, bb, hp, y_itemsize, whh_buffers, requested):
    """Largest tc <= requested whose buffers fit ~70% of this generation's VMEM."""
    budget = int(0.70 * _tpu_vmem_bytes())
    tc = max(1, min(int(requested), T))
    while tc > 1 and _pipeline_vmem_bytes(tc, bb, hp, y_itemsize, whh_buffers) > budget:
        tc -= 1
    return tc


def _choose_batch_block(bp):
    """Split batch across TensorCores only when there are >=2 cores AND each half still
    fills the MXU M dimension; single-TC chips (v5e/v6e) always keep the full batch."""
    if _tpu_num_tensorcores() >= 2 and bp >= 256 and bp % 16 == 0:
        return bp // 2
    return bp


# ----------------------------- Pallas recurrent LSTM kernel -----------------------------

def _lstm_recurrent_kernel(gx_ref, whh_t_ref, h0_ref, c0_ref,
                           y_ref, hT_ref, cT_ref,
                           h_sc, c_sc, *, hp, tc, t_real, masked, unroll):
    """Grid = (batch_blocks, time_chunks). One invocation runs `tc` LSTM steps for one
    batch block; h (bf16) / c (f32) are carried across time chunks in VMEM scratch.

    PyTorch nn.LSTM gate order (i, f, g, o):
      gates = gates_x_t + h_{t-1} @ W_hh^T     (input projection pre-computed, bf16 in HBM)
      c_t = sigmoid(f) * c_{t-1} + sigmoid(i) * tanh(g)
      h_t = sigmoid(o) * tanh(c_t)
    Padded time steps (when T was rounded up to a multiple of tc) are masked so h/c
    freeze at the last real step.
    """
    t_chunk = pl.program_id(1)

    @pl.when(t_chunk == 0)
    def _():
        h_sc[...] = h0_ref[...]
        c_sc[...] = c0_ref[...]

    whh_t = whh_t_ref[...]                       # (Hp, 4*Hp) bf16, VMEM resident
    base_t = t_chunk * tc

    def step(s, carry):
        h, c = carry                             # h: bf16 (Bb, Hp), c: f32 (Bb, Hp)
        gates = gx_ref[s].astype(jnp.float32) + jnp.dot(
            h, whh_t, preferred_element_type=jnp.float32)
        i_g = _sigmoid(gates[:, 0 * hp:1 * hp])
        f_g = _sigmoid(gates[:, 1 * hp:2 * hp])
        g_g = jnp.tanh(gates[:, 2 * hp:3 * hp])
        o_g = _sigmoid(gates[:, 3 * hp:4 * hp])
        c_new = f_g * c + i_g * g_g
        h_new = o_g * jnp.tanh(c_new)            # f32
        h_new_b = h_new.astype(jnp.bfloat16)
        y_ref[s] = h_new.astype(y_ref.dtype)     # padded-step rows are discarded upstream
        if masked:
            valid = (base_t + s) < t_real
            h_new_b = jnp.where(valid, h_new_b, h)
            c_new = jnp.where(valid, c_new, c)
        return (h_new_b, c_new)

    h, c = jax.lax.fori_loop(0, tc, step, (h_sc[...], c_sc[...]), unroll=unroll)
    h_sc[...] = h
    c_sc[...] = c

    @pl.when(t_chunk == pl.num_programs(1) - 1)
    def _():
        hT_ref[...] = h.astype(hT_ref.dtype)
        cT_ref[...] = c.astype(cT_ref.dtype)


def lstm_recurrence(gates_x, whh_t, h0, c0, *, y_dtype=jnp.float32,
                    time_chunk=32, batch_block=None):
    """Run the recurrent part of one LSTM layer with a Pallas kernel.

    gates_x: (T, Bp, 4*Hp) bf16  precomputed x @ W_ih^T + (b_ih + b_hh), padded
    whh_t:   (Hp, 4*Hp)    bf16  padded, transposed recurrent weights
    h0:      (Bp, Hp)      bf16  padded initial hidden state
    c0:      (Bp, Hp)      f32   padded initial cell state
    Returns y (T, Bp, Hp) of y_dtype, hT (Bp, Hp) f32, cT (Bp, Hp) f32.
    """
    T, Bp, G = gates_x.shape
    Hp = whh_t.shape[0]
    assert G == 4 * Hp

    if batch_block is None:
        batch_block = _choose_batch_block(Bp)
    assert Bp % batch_block == 0
    n_b = Bp // batch_block

    whh_spec, whh_buffers = _whh_blockspec(Hp)
    y_itemsize = jnp.dtype(y_dtype).itemsize

    # Generation-aware time chunk; then pad T up to a multiple of it (masked in-kernel)
    # instead of collapsing to tc=1 for awkward bptt lengths.
    tc = _choose_time_chunk(T, batch_block, Hp, y_itemsize, whh_buffers, time_chunk)
    T_pad = _round_up(T, tc)
    if T_pad != T:
        gates_x = _pad_axis(gates_x, 0, T_pad)
    n_t = T_pad // tc

    kernel = functools.partial(_lstm_recurrent_kernel, hp=Hp, tc=tc,
                               t_real=T, masked=(T_pad != T),
                               unroll=min(8, tc))

    grid_spec = pltpu.PrefetchScalarGridSpec(
        num_scalar_prefetch=0,
        grid=(n_b, n_t),                                   # time innermost (recurrence)
        in_specs=[
            pl.BlockSpec((tc, batch_block, 4 * Hp), lambda b, t: (t, b, 0)),  # gates_x
            whh_spec,                                                          # W_hh^T
            pl.BlockSpec((batch_block, Hp), lambda b, t: (b, 0)),              # h0 (bf16)
            pl.BlockSpec((batch_block, Hp), lambda b, t: (b, 0)),              # c0 (f32)
        ],
        out_specs=[
            pl.BlockSpec((tc, batch_block, Hp), lambda b, t: (t, b, 0)),       # y
            pl.BlockSpec((batch_block, Hp), lambda b, t: (b, 0)),              # h_T
            pl.BlockSpec((batch_block, Hp), lambda b, t: (b, 0)),              # c_T
        ],
        scratch_shapes=[
            pltpu.VMEM((batch_block, Hp), jnp.bfloat16),   # h carry
            pltpu.VMEM((batch_block, Hp), jnp.float32),    # c carry
        ],
    )

    # vmem_limit_bytes derived from the actual pipelined buffers (not a W_hh heuristic);
    # only override the scoped default when we actually need more than it provides.
    need = _pipeline_vmem_bytes(tc, batch_block, Hp, y_itemsize, whh_buffers)
    extra = {}
    if need > (24 << 20):
        extra["vmem_limit_bytes"] = min(need + (16 << 20), int(0.9 * _tpu_vmem_bytes()))

    y, hT, cT = pl.pallas_call(
        kernel,
        out_shape=(
            jax.ShapeDtypeStruct((T_pad, Bp, Hp), y_dtype),
            jax.ShapeDtypeStruct((Bp, Hp), jnp.float32),
            jax.ShapeDtypeStruct((Bp, Hp), jnp.float32),
        ),
        grid_spec=grid_spec,
        compiler_params=pltpu.CompilerParams(
            dimension_semantics=("parallel", "arbitrary"), **extra),
    )(gates_x, whh_t, h0, c0)
    if T_pad != T:
        y = y[:T]
    return y, hT, cT


# ----------------------------- Model (params + forward) -----------------------------

def init_rnn_model_params(key, ntoken, ninp, nhid, nlayers, tie_weights=False):
    """Deterministic parameter init mirroring the PyTorch module's __init__/init_weights."""
    params = {}
    keys = jax.random.split(key, 2 + 4 * nlayers + 1)
    initrange = 0.1
    params["encoder"] = jax.random.uniform(
        keys[0], (ntoken, ninp), jnp.float32, -initrange, initrange)
    # decoder Linear(nhid, ntoken): constructed but unused in forward() (kept for parity).
    params["decoder_w"] = jax.random.uniform(
        keys[1], (ntoken, nhid), jnp.float32, -initrange, initrange)
    params["decoder_b"] = jnp.zeros((ntoken,), jnp.float32)

    params["lstm"] = []
    for l in range(nlayers):
        in_size = ninp if l == 0 else nhid
        hid_size = nhid if l != nlayers - 1 else (ninp if tie_weights else nhid)
        stdv = 1.0 / jnp.sqrt(jnp.float32(hid_size))
        k = keys[2 + 4 * l: 2 + 4 * (l + 1)]
        params["lstm"].append({
            "w_ih": jax.random.uniform(k[0], (4 * hid_size, in_size), jnp.float32, -stdv, stdv),
            "w_hh": jax.random.uniform(k[1], (4 * hid_size, hid_size), jnp.float32, -stdv, stdv),
            "b_ih": jax.random.uniform(k[2], (4 * hid_size,), jnp.float32, -stdv, stdv),
            "b_hh": jax.random.uniform(k[3], (4 * hid_size,), jnp.float32, -stdv, stdv),
        })
    return params


def prepare_rnn_params(params):
    """One-time (outside the hot path) transpose / bias-sum / padding / bf16 cast.

    Per-gate padding of H -> Hp (multiple of 128) with zero weights/bias keeps padded
    h/c columns exactly 0 through the sigmoid/tanh recurrence.
    """
    prepared = {"encoder": params["encoder"]}
    layers = []
    for layer in params["lstm"]:
        w_ih, w_hh = layer["w_ih"], layer["w_hh"]
        bias = layer["b_ih"] + layer["b_hh"]
        H = w_hh.shape[1]
        I = w_ih.shape[1]
        Hp = _round_up(H, 128)
        Ip = _round_up(I, 128)
        wih4 = _pad_axis(_pad_axis(w_ih.reshape(4, H, I), 1, Hp), 2, Ip)     # (4,Hp,Ip)
        whh4 = _pad_axis(_pad_axis(w_hh.reshape(4, H, H), 1, Hp), 2, Hp)     # (4,Hp,Hp)
        b4 = _pad_axis(bias.reshape(4, H), 1, Hp)                            # (4,Hp)
        layers.append({
            "wih_t": wih4.reshape(4 * Hp, Ip).T.astype(jnp.bfloat16),        # (Ip, 4Hp)
            "whh_t": whh4.reshape(4 * Hp, Hp).T.astype(jnp.bfloat16),        # (Hp, 4Hp)
            "bias": b4.reshape(1, 4 * Hp).astype(jnp.float32),
        })
    prepared["lstm"] = layers
    return prepared


def init_hidden(bsz, ninp, nhid, nlayers, tie_weights=False):
    hidden = []
    for l in range(nlayers):
        hid_size = nhid if l != nlayers - 1 else (ninp if tie_weights else nhid)
        hidden.append((jnp.zeros((1, bsz, hid_size), jnp.float32),
                       jnp.zeros((1, bsz, hid_size), jnp.float32)))
    return hidden


@functools.partial(jax.jit, static_argnames=("time_chunk",))
def rnn_model_forward(prepared, tokens, hidden, *, time_chunk=32):
    """Eval forward: embedding -> stacked LSTM (Pallas recurrence) -> flatten.

    tokens: (T, B) int32
    hidden: list of (h0, c0), each (1, B, H)
    Returns (result (T*B, H_last), new_hidden), matching the PyTorch module.
    """
    emb = jnp.take(prepared["encoder"], tokens, axis=0)          # (T, B, ninp) glue gather
    T, B, ninp = emb.shape
    Bp = max(8, _round_up(B, 8))
    nlayers = len(prepared["lstm"])

    # Pad batch (sublanes) and features (lanes) once; activations flow layer->layer in bf16.
    Ip0 = prepared["lstm"][0]["wih_t"].shape[0]
    x = jnp.pad(emb, ((0, 0), (0, Bp - B), (0, Ip0 - ninp))).astype(jnp.bfloat16)

    new_hidden = []
    for l, layer in enumerate(prepared["lstm"]):
        H = hidden[l][0].shape[-1]
        Hp = layer["whh_t"].shape[0]
        h0 = jnp.pad(hidden[l][0][0], ((0, Bp - B), (0, Hp - H))).astype(jnp.bfloat16)
        c0 = jnp.pad(hidden[l][1][0], ((0, Bp - B), (0, Hp - H)))

        # Hoisted input projection: one big bf16 matmul (f32 acc), bias folded in,
        # then stored as bf16 (halves the dominant HBM stream / VMEM tile).
        gx = jnp.dot(x.reshape(T * Bp, -1), layer["wih_t"],
                     preferred_element_type=jnp.float32)
        gx = (gx + layer["bias"]).astype(jnp.bfloat16).reshape(T, Bp, 4 * Hp)

        y_dtype = jnp.bfloat16 if l < nlayers - 1 else jnp.float32
        y, hT, cT = lstm_recurrence(gx, layer["whh_t"], h0, c0,
                                    y_dtype=y_dtype, time_chunk=time_chunk)
        x = y
        new_hidden.append((hT[:B, :H][None, :, :], cT[:B, :H][None, :, :]))

    H_last = hidden[-1][0].shape[-1]
    result = x[:, :B, :H_last].reshape(T * B, H_last)
    return result, new_hidden


# --------------------------------- Reference check ---------------------------------

def _lstm_layer_ref(x, w_ih, w_hh, b_ih, b_hh, h0, c0, *, mixed, y_dtype):
    """Pure-JAX reference of PyTorch nn.LSTM (single layer).
    mixed=False: full f32 (PyTorch semantics). mixed=True: same recipe as the kernel
    (bf16 matmul operands, bf16 stored gates_x, bf16 h carry, f32 accumulation/c)."""
    H = w_hh.shape[1]
    T, B, I = x.shape
    mm = jnp.bfloat16 if mixed else jnp.float32
    wih_t = w_ih.T.astype(mm)
    whh_t = w_hh.T.astype(mm)
    bias = (b_ih + b_hh).astype(jnp.float32)
    gx = jnp.dot(x.reshape(T * B, I).astype(mm), wih_t,
                 preferred_element_type=jnp.float32) + bias
    if mixed:
        gx = gx.astype(jnp.bfloat16)
    gx = gx.reshape(T, B, 4 * H)

    def step(carry, gx_t):
        h, c = carry
        gates = gx_t.astype(jnp.float32) + jnp.dot(h, whh_t,
                                                   preferred_element_type=jnp.float32)
        i = _sigmoid(gates[:, 0 * H:1 * H])
        f = _sigmoid(gates[:, 1 * H:2 * H])
        g = jnp.tanh(gates[:, 2 * H:3 * H])
        o = _sigmoid(gates[:, 3 * H:4 * H])
        c_new = f * c + i * g
        h_new = o * jnp.tanh(c_new)
        return (h_new.astype(mm), c_new), h_new.astype(y_dtype)

    (hT, cT), ys = jax.lax.scan(step, (h0.astype(mm), c0), gx)
    return ys, hT.astype(jnp.float32), cT


def _forward_ref(params, tokens, hidden, *, mixed):
    x = jnp.take(params["encoder"], tokens, axis=0)
    n = len(params["lstm"])
    hiddens = []
    for l, layer in enumerate(params["lstm"]):
        y_dtype = jnp.bfloat16 if (mixed and l < n - 1) else jnp.float32
        x, hT, cT = _lstm_layer_ref(x, layer["w_ih"], layer["w_hh"],
                                    layer["b_ih"], layer["b_hh"],
                                    hidden[l][0][0], hidden[l][1][0],
                                    mixed=mixed, y_dtype=y_dtype)
        hiddens.append((hT, cT))
    T, B, H = x.shape
    return x.reshape(T * B, H), hiddens


# ------------------------------------- Main -----------------------------------------

if __name__ == "__main__":
    import numpy as np

    ntoken, ninp, nhid, nlayers = 50, 32, 32, 2
    seq_len, batch = 8, 2

    key = jax.random.PRNGKey(0)
    pkey, tkey = jax.random.split(key)

    params = init_rnn_model_params(pkey, ntoken, ninp, nhid, nlayers)
    prepared = prepare_rnn_params(params)
    tokens = jax.random.randint(tkey, (seq_len, batch), 0, ntoken, dtype=jnp.int32)
    hidden = init_hidden(batch, ninp, nhid, nlayers)

    # time_chunk=4 -> 2 time chunks (T divides evenly): exercises the h/c carry.
    result, new_hidden = rnn_model_forward(prepared, tokens, hidden, time_chunk=4)
    result = jax.block_until_ready(result)
    jax.block_until_ready(new_hidden)

    assert result.shape == (seq_len * batch, nhid), result.shape
    for (h, c) in new_hidden:
        assert h.shape == (1, batch, nhid) and c.shape == (1, batch, nhid)

    # time_chunk=3 -> T padded to 9 with masked tail step: exercises the padding path.
    result_m, new_hidden_m = rnn_model_forward(prepared, tokens, hidden, time_chunk=3)
    result_m = jax.block_until_ready(result_m)
    jax.block_until_ready(new_hidden_m)
    np.testing.assert_allclose(np.asarray(result), np.asarray(result_m),
                               atol=1e-3, rtol=1e-3)

    # Tight check vs a pure-JAX reference using the same mixed-precision recipe.
    ref_mixed, ref_hid = _forward_ref(params, tokens, hidden, mixed=True)
    np.testing.assert_allclose(np.asarray(result), np.asarray(ref_mixed),
                               atol=2e-2, rtol=2e-2)
    for (h_k, c_k), (h_r, c_r) in zip(new_hidden_m, ref_hid):
        np.testing.assert_allclose(np.asarray(h_k[0]), np.asarray(h_r),
                                   atol=2e-2, rtol=2e-2)
        np.testing.assert_allclose(np.asarray(c_k[0]), np.asarray(c_r),
                                   atol=2e-2, rtol=2e-2)

    # Loose check vs the full-f32 PyTorch-semantics reference (bounds bf16 drift).
    ref_f32, _ = _forward_ref(params, tokens, hidden, mixed=False)
    np.testing.assert_allclose(np.asarray(result), np.asarray(ref_f32),
                               atol=5e-2, rtol=5e-2)

    print("KERNEL_OK")
</pallas_src>

<mosaic_0001>
module attributes {stable_mosaic.version = 11 : i64} {
  func.func @_lstm_recurrent_kernel(%arg0: i32, %arg1: i32, %arg2: memref<4x8x512xbf16, #tpu.memory_space<vmem>>, %arg3: memref<128x512xbf16, #tpu.memory_space<vmem>>, %arg4: memref<8x128xbf16, #tpu.memory_space<vmem>>, %arg5: memref<8x128xf32, #tpu.memory_space<vmem>>, %arg6: memref<4x8x128xbf16, #tpu.memory_space<vmem>>, %arg7: memref<8x128xf32, #tpu.memory_space<vmem>>, %arg8: memref<8x128xf32, #tpu.memory_space<vmem>>, %arg9: memref<8x128xbf16, #tpu.memory_space<vmem>>, %arg10: memref<8x128xf32, #tpu.memory_space<vmem>>) attributes {dimension_semantics = [#tpu.dimension_semantics<parallel>, #tpu.dimension_semantics<arbitrary>], iteration_bounds = array<i64: 1, 2>, scalar_prefetch = 0 : i64, scratch_operands = 2 : i64, tpu.core_type = #tpu.core_type<tc>, window_params = [{transform_indices = @transform_0, window_bounds = array<i64: 4, 8, 512>}, {pipeline_mode = #tpu.pipeline_mode<synchronous>, transform_indices = @transform_1, window_bounds = array<i64: 128, 512>}, {transform_indices = @transform_2, window_bounds = array<i64: 8, 128>}, {transform_indices = @transform_3, window_bounds = array<i64: 8, 128>}, {transform_indices = @transform_4, window_bounds = array<i64: 4, 8, 128>}, {transform_indices = @transform_5, window_bounds = array<i64: 8, 128>}, {transform_indices = @transform_6, window_bounds = array<i64: 8, 128>}]} {
    %c0_i32 = arith.constant 0 : i32
    %0 = arith.cmpi eq, %arg1, %c0_i32 : i32
    %1 = arith.extui %0 : i1 to i32
    %c0_i32_0 = arith.constant 0 : i32
    %2 = arith.cmpi ne, %1, %c0_i32_0 : i32
    scf.if %2 {
      %c0_68 = arith.constant 0 : index
      %c0_69 = arith.constant 0 : index
      %183 = vector.load %arg4[%c0_68, %c0_69] : memref<8x128xbf16, #tpu.memory_space<vmem>>, vector<8x128xbf16>
      %c0_70 = arith.constant 0 : index
      %c0_71 = arith.constant 0 : index
      %184 = vector.load %arg9[%c0_70, %c0_71] : memref<8x128xbf16, #tpu.memory_space<vmem>>, vector<8x128xbf16>
      tpu.vector_store %arg9[%c0_70, %c0_71], %183 {strides = array<i32>} : memref<8x128xbf16, #tpu.memory_space<vmem>>, vector<8x128xbf16>,
      %c0_72 = arith.constant 0 : index
      %c0_73 = arith.constant 0 : index
      %185 = vector.load %arg5[%c0_72, %c0_73] : memref<8x128xf32, #tpu.memory_space<vmem>>, vector<8x128xf32>
      %c0_74 = arith.constant 0 : index
      %c0_75 = arith.constant 0 : index
      %186 = vector.load %arg10[%c0_74, %c0_75] : memref<8x128xf32, #tpu.memory_space<vmem>>, vector<8x128xf32>
      tpu.vector_store %arg10[%c0_74, %c0_75], %185 {strides = array<i32>} : memref<8x128xf32, #tpu.memory_space<vmem>>, vector<8x128xf32>,
    } else {
    }
    %c0 = arith.constant 0 : index
    %c0_1 = arith.constant 0 : index
    %3 = vector.load %arg3[%c0, %c0_1] : memref<128x512xbf16, #tpu.memory_space<vmem>>, vector<128x512xbf16>
    %c0_2 = arith.constant 0 : index
    %c0_3 = arith.constant 0 : index
    %4 = vector.load %arg9[%c0_2, %c0_3] : memref<8x128xbf16, #tpu.memory_space<vmem>>, vector<8x128xbf16>
    %c0_4 = arith.constant 0 : index
    %c0_5 = arith.constant 0 : index
    %5 = vector.load %arg10[%c0_4, %c0_5] : memref<8x128xf32, #tpu.memory_space<vmem>>, vector<8x128xf32>
    %c0_i32_6 = arith.constant 0 : i32
    %6 = arith.index_cast %c0_i32_6 : i32 to index
    %c0_7 = arith.constant 0 : index
    %c0_8 = arith.constant 0 : index
    %7 = vector.load %arg2[%6, %c0_7, %c0_8] : memref<4x8x512xbf16, #tpu.memory_space<vmem>>, vector<1x8x512xbf16>
    %8 = vector.shape_cast %7 : vector<1x8x512xbf16> to vector<8x512xbf16>
    %9 = arith.extf %8 : vector<8x512xbf16> to vector<8x512xf32>
    %cst = arith.constant dense<0.000000e+00> : vector<8x512xf32>
    %10 = tpu.matmul %4, %3, %cst {dimension_numbers = #tpu.dot_dimension_numbers<[1], [0], [0], [1], [0, 0, 1, 1], [], []>} : vector<8x128xbf16>, vector<128x512xbf16>, vector<8x512xf32> -> vector<8x512xf32>
    %11 = arith.addf %9, %10 : vector<8x512xf32>
    %12 = vector.extract_strided_slice %11 {offsets = [0, 0], sizes = [8, 128], strides = [1, 1]} : vector<8x512xf32> to vector<8x128xf32>
    %cst_9 = arith.constant 5.000000e-01 : f32
    %13 = vector.broadcast %cst_9 : f32 to vector<8x128xf32>
    %14 = arith.mulf %13, %12 : vector<8x128xf32>
    %15 = math.tanh %14 : vector<8x128xf32>
    %cst_10 = arith.constant 5.000000e-01 : f32
    %16 = vector.broadcast %cst_10 : f32 to vector<8x128xf32>
    %17 = arith.mulf %16, %15 : vector<8x128xf32>
    %cst_11 = arith.constant 5.000000e-01 : f32
    %18 = vector.broadcast %cst_11 : f32 to vector<8x128xf32>
    %19 = arith.addf %17, %18 : vector<8x128xf32>
    %20 = vector.extract_strided_slice %11 {offsets = [0, 128], sizes = [8, 128], strides = [1, 1]} : vector<8x512xf32> to vector<8x128xf32>
    %cst_12 = arith.constant 5.000000e-01 : f32
    %21 = vector.broadcast %cst_12 : f32 to vector<8x128xf32>
    %22 = arith.mulf %21, %20 : vector<8x128xf32>
    %23 = math.tanh %22 : vector<8x128xf32>
    %cst_13 = arith.constant 5.000000e-01 : f32
    %24 = vector.broadcast %cst_13 : f32 to vector<8x128xf32>
    %25 = arith.mulf %24, %23 : vector<8x128xf32>
    %cst_14 = arith.constant 5.000000e-01 : f32
    %26 = vector.broadcast %cst_14 : f32 to vector<8x128xf32>
    %27 = arith.addf %25, %26 : vector<8x128xf32>
    %28 = vector.extract_strided_slice %11 {offsets = [0, 256], sizes = [8, 128], strides = [1, 1]} : vector<8x512xf32> to vector<8x128xf32>
    %29 = math.tanh %28 : vector<8x128xf32>
    %30 = vector.extract_strided_slice %11 {offsets = [0, 384], sizes = [8, 128], strides = [1, 1]} : vector<8x512xf32> to vector<8x128xf32>
    %cst_15 = arith.constant 5.000000e-01 : f32
    %31 = vector.broadcast %cst_15 : f32 to vector<8x128xf32>
    %32 = arith.mulf %31, %30 : vector<8x128xf32>
    %33 = math.tanh %32 : vector<8x128xf32>
    %cst_16 = arith.constant 5.000000e-01 : f32
    %34 = vector.broadcast %cst_16 : f32 to vector<8x128xf32>
    %35 = arith.mulf %34, %33 : vector<8x128xf32>
    %cst_17 = arith.constant 5.000000e-01 : f32
    %36 = vector.broadcast %cst_17 : f32 to vector<8x128xf32>
    %37 = arith.addf %35, %36 : vector<8x128xf32>
    %38 = arith.mulf %27, %5 : vector<8x128xf32>
    %39 = arith.mulf %19, %29 : vector<8x128xf32>
    %40 = arith.addf %38, %39 : vector<8x128xf32>
    %41 = math.tanh %40 : vector<8x128xf32>
    %42 = arith.mulf %37, %41 : vector<8x128xf32>
    %43 = arith.truncf %42 : vector<8x128xf32> to vector<8x128xbf16>
    %44 = arith.truncf %42 : vector<8x128xf32> to vector<8x128xbf16>
    %45 = arith.index_cast %c0_i32_6 : i32 to index
    %c0_18 = arith.constant 0 : index
    %c0_19 = arith.constant 0 : index
    %46 = vector.load %arg6[%45, %c0_18, %c0_19] : memref<4x8x128xbf16, #tpu.memory_space<vmem>>, vector<1x8x128xbf16>
    %47 = vector.shape_cast %46 : vector<1x8x128xbf16> to vector<8x128xbf16>
    %48 = vector.shape_cast %44 : vector<8x128xbf16> to vector<1x8x128xbf16>
    tpu.vector_store %arg6[%45, %c0_18, %c0_19], %48 {strides = array<i32>} : memref<4x8x128xbf16, #tpu.memory_space<vmem>>, vector<1x8x128xbf16>,
    %c1_i32 = arith.constant 1 : i32
    %49 = arith.index_cast %c1_i32 : i32 to index
    %c0_20 = arith.constant 0 : index
    %c0_21 = arith.constant 0 : index
    %50 = vector.load %arg2[%49, %c0_20, %c0_21] : memref<4x8x512xbf16, #tpu.memory_space<vmem>>, vector<1x8x512xbf16>
    %51 = vector.shape_cast %50 : vector<1x8x512xbf16> to vector<8x512xbf16>
    %52 = arith.extf %51 : vector<8x512xbf16> to vector<8x512xf32>
    %cst_22 = arith.constant dense<0.000000e+00> : vector<8x512xf32>
    %53 = tpu.matmul %43, %3, %cst_22 {dimension_numbers = #tpu.dot_dimension_numbers<[1], [0], [0], [1], [0, 0, 1, 1], [], []>} : vector<8x128xbf16>, vector<128x512xbf16>, vector<8x512xf32> -> vector<8x512xf32>
    %54 = arith.addf %52, %53 : vector<8x512xf32>
    %55 = vector.extract_strided_slice %54 {offsets = [0, 0], sizes = [8, 128], strides = [1, 1]} : vector<8x512xf32> to vector<8x128xf32>
    %cst_23 = arith.constant 5.000000e-01 : f32
    %56 = vector.broadcast %cst_23 : f32 to vector<8x128xf32>
    %57 = arith.mulf %56, %55 : vector<8x128xf32>
    %58 = math.tanh %57 : vector<8x128xf32>
    %cst_24 = arith.constant 5.000000e-01 : f32
    %59 = vector.broadcast %cst_24 : f32 to vector<8x128xf32>
    %60 = arith.mulf %59, %58 : vector<8x128xf32>
    %cst_25 = arith.constant 5.000000e-01 : f32
    %61 = vector.broadcast %cst_25 : f32 to vector<8x128xf32>
    %62 = arith.addf %60, %61 : vector<8x128xf32>
    %63 = vector.extract_strided_slice %54 {offsets = [0, 128], sizes = [8, 128], strides = [1, 1]} : vector<8x512xf32> to vector<8x128xf32>
    %cst_26 = arith.constant 5.000000e-01 : f32
    %64 = vector.broadcast %cst_26 : f32 to vector<8x128xf32>
    %65 = arith.mulf %64, %63 : vector<8x128xf32>
    %66 = math.tanh %65 : vector<8x128xf32>
    %cst_27 = arith.constant 5.000000e-01 : f32
    %67 = vector.broadcast %cst_27 : f32 to vector<8x128xf32>
    %68 = arith.mulf %67, %66 : vector<8x128xf32>
    %cst_28 = arith.constant 5.000000e-01 : f32
    %69 = vector.broadcast %cst_28 : f32 to vector<8x128xf32>
    %70 = arith.addf %68, %69 : vector<8x128xf32>
    %71 = vector.extract_strided_slice %54 {offsets = [0, 256], sizes = [8, 128], strides = [1, 1]} : vector<8x512xf32> to vector<8x128xf32>
    %72 = math.tanh %71 : vector<8x128xf32>
    %73 = vector.extract_strided_slice %54 {offsets = [0, 384], sizes = [8, 128], strides = [1, 1]} : vector<8x512xf32> to vector<8x128xf32>
    %cst_29 = arith.constant 5.000000e-01 : f32
    %74 = vector.broadcast %cst_29 : f32 to vector<8x128xf32>
    %75 = arith.mulf %74, %73 : vector<8x128xf32>
    %76 = math.tanh %75 : vector<8x128xf32>
    %cst_30 = arith.constant 5.000000e-01 : f32
    %77 = vector.broadcast %cst_30 : f32 to vector<8x128xf32>
    %78 = arith.mulf %77, %76 : vector<8x128xf32>
    %cst_31 = arith.constant 5.000000e-01 : f32
    %79 = vector.broadcast %cst_31 : f32 to vector<8x128xf32>
    %80 = arith.addf %78, %79 : vector<8x128xf32>
    %81 = arith.mulf %70, %40 : vector<8x128xf32>
    %82 = arith.mulf %62, %72 : vector<8x128xf32>
    %83 = arith.addf %81, %82 : vector<8x128xf32>
    %84 = math.tanh %83 : vector<8x128xf32>
    %85 = arith.mulf %80, %84 : vector<8x128xf32>
    %86 = arith.truncf %85 : vector<8x128xf32> to vector<8x128xbf16>
    %87 = arith.truncf %85 : vector<8x128xf32> to vector<8x128xbf16>
    %88 = arith.index_cast %c1_i32 : i32 to index
    %c0_32 = arith.constant 0 : index
    %c0_33 = arith.constant 0 : index
    %89 = vector.load %arg6[%88, %c0_32, %c0_33] : memref<4x8x128xbf16, #tpu.memory_space<vmem>>, vector<1x8x128xbf16>
    %90 = vector.shape_cast %89 : vector<1x8x128xbf16> to vector<8x128xbf16>
    %91 = vector.shape_cast %87 : vector<8x128xbf16> to vector<1x8x128xbf16>
    tpu.vector_store %arg6[%88, %c0_32, %c0_33], %91 {strides = array<i32>} : memref<4x8x128xbf16, #tpu.memory_space<vmem>>, vector<1x8x128xbf16>,
    %c2_i32 = arith.constant 2 : i32
    %92 = arith.index_cast %c2_i32 : i32 to index
    %c0_34 = arith.constant 0 : index
    %c0_35 = arith.constant 0 : index
    %93 = vector.load %arg2[%92, %c0_34, %c0_35] : memref<4x8x512xbf16, #tpu.memory_space<vmem>>, vector<1x8x512xbf16>
    %94 = vector.shape_cast %93 : vector<1x8x512xbf16> to vector<8x512xbf16>
    %95 = arith.extf %94 : vector<8x512xbf16> to vector<8x512xf32>
    %cst_36 = arith.constant dense<0.000000e+00> : vector<8x512xf32>
    %96 = tpu.matmul %86, %3, %cst_36 {dimension_numbers = #tpu.dot_dimension_numbers<[1], [0], [0], [1], [0, 0, 1, 1], [], []>} : vector<8x128xbf16>, vector<128x512xbf16>, vector<8x512xf32> -> vector<8x512xf32>
    %97 = arith.addf %95, %96 : vector<8x512xf32>
    %98 = vector.extract_strided_slice %97 {offsets = [0, 0], sizes = [8, 128], strides = [1, 1]} : vector<8x512xf32> to vector<8x128xf32>
    %cst_37 = arith.constant 5.000000e-01 : f32
    %99 = vector.broadcast %cst_37 : f32 to vector<8x128xf32>
    %100 = arith.mulf %99, %98 : vector<8x128xf32>
    %101 = math.tanh %100 : vector<8x128xf32>
    %cst_38 = arith.constant 5.000000e-01 : f32
    %102 = vector.broadcast %cst_38 : f32 to vector<8x128xf32>
    %103 = arith.mulf %102, %101 : vector<8x128xf32>
    %cst_39 = arith.constant 5.000000e-01 : f32
    %104 = vector.broadcast %cst_39 : f32 to vector<8x128xf32>
    %105 = arith.addf %103, %104 : vector<8x128xf32>
    %106 = vector.extract_strided_slice %97 {offsets = [0, 128], sizes = [8, 128], strides = [1, 1]} : vector<8x512xf32> to vector<8x128xf32>
    %cst_40 = arith.constant 5.000000e-01 : f32
    %107 = vector.broadcast %cst_40 : f32 to vector<8x128xf32>
    %108 = arith.mulf %107, %106 : vector<8x128xf32>
    %109 = math.tanh %108 : vector<8x128xf32>
    %cst_41 = arith.constant 5.000000e-01 : f32
    %110 = vector.broadcast %cst_41 : f32 to vector<8x128xf32>
    %111 = arith.mulf %110, %109 : vector<8x128xf32>
    %cst_42 = arith.constant 5.000000e-01 : f32
    %112 = vector.broadcast %cst_42 : f32 to vector<8x128xf32>
    %113 = arith.addf %111, %112 : vector<8x128xf32>
    %114 = vector.extract_strided_slice %97 {offsets = [0, 256], sizes = [8, 128], strides = [1, 1]} : vector<8x512xf32> to vector<8x128xf32>
    %115 = math.tanh %114 : vector<8x128xf32>
    %116 = vector.extract_strided_slice %97 {offsets = [0, 384], sizes = [8, 128], strides = [1, 1]} : vector<8x512xf32> to vector<8x128xf32>
    %cst_43 = arith.constant 5.000000e-01 : f32
    %117 = vector.broadcast %cst_43 : f32 to vector<8x128xf32>
    %118 = arith.mulf %117, %116 : vector<8x128xf32>
    %119 = math.tanh %118 : vector<8x128xf32>
    %cst_44 = arith.constant 5.000000e-01 : f32
    %120 = vector.broadcast %cst_44 : f32 to vector<8x128xf32>
    %121 = arith.mulf %120, %119 : vector<8x128xf32>
    %cst_45 = arith.constant 5.000000e-01 : f32
    %122 = vector.broadcast %cst_45 : f32 to vector<8x128xf32>
    %123 = arith.addf %121, %122 : vector<8x128xf32>
    %124 = arith.mulf %113, %83 : vector<8x128xf32>
    %125 = arith.mulf %105, %115 : vector<8x128xf32>
    %126 = arith.addf %124, %125 : vector<8x128xf32>
    %127 = math.tanh %126 : vector<8x128xf32>
    %128 = arith.mulf %123, %127 : vector<8x128xf32>
    %129 = arith.truncf %128 : vector<8x128xf32> to vector<8x128xbf16>
    %130 = arith.truncf %128 : vector<8x128xf32> to vector<8x128xbf16>
    %131 = arith.index_cast %c2_i32 : i32 to index
    %c0_46 = arith.constant 0 : index
    %c0_47 = arith.constant 0 : index
    %132 = vector.load %arg6[%131, %c0_46, %c0_47] : memref<4x8x128xbf16, #tpu.memory_space<vmem>>, vector<1x8x128xbf16>
    %133 = vector.shape_cast %132 : vector<1x8x128xbf16> to vector<8x128xbf16>
    %134 = vector.shape_cast %130 : vector<8x128xbf16> to vector<1x8x128xbf16>
    tpu.vector_store %arg6[%131, %c0_46, %c0_47], %134 {strides = array<i32>} : memref<4x8x128xbf16, #tpu.memory_space<vmem>>, vector<1x8x128xbf16>,
    %c3_i32 = arith.constant 3 : i32
    %135 = arith.index_cast %c3_i32 : i32 to index
    %c0_48 = arith.constant 0 : index
    %c0_49 = arith.constant 0 : index
    %136 = vector.load %arg2[%135, %c0_48, %c0_49] : memref<4x8x512xbf16, #tpu.memory_space<vmem>>, vector<1x8x512xbf16>
    %137 = vector.shape_cast %136 : vector<1x8x512xbf16> to vector<8x512xbf16>
    %138 = arith.extf %137 : vector<8x512xbf16> to vector<8x512xf32>
    %cst_50 = arith.constant dense<0.000000e+00> : vector<8x512xf32>
    %139 = tpu.matmul %129, %3, %cst_50 {dimension_numbers = #tpu.dot_dimension_numbers<[1], [0], [0], [1], [0, 0, 1, 1], [], []>} : vector<8x128xbf16>, vector<128x512xbf16>, vector<8x512xf32> -> vector<8x512xf32>
    %140 = arith.addf %138, %139 : vector<8x512xf32>
    %141 = vector.extract_strided_slice %140 {offsets = [0, 0], sizes = [8, 128], strides = [1, 1]} : vector<8x512xf32> to vector<8x128xf32>
    %cst_51 = arith.constant 5.000000e-01 : f32
    %142 = vector.broadcast %cst_51 : f32 to vector<8x128xf32>
    %143 = arith.mulf %142, %141 : vector<8x128xf32>
    %144 = math.tanh %143 : vector<8x128xf32>
    %cst_52 = arith.constant 5.000000e-01 : f32
    %145 = vector.broadcast %cst_52 : f32 to vector<8x128xf32>
    %146 = arith.mulf %145, %144 : vector<8x128xf32>
    %cst_53 = arith.constant 5.000000e-01 : f32
    %147 = vector.broadcast %cst_53 : f32 to vector<8x128xf32>
    %148 = arith.addf %146, %147 : vector<8x128xf32>
    %149 = vector.extract_strided_slice %140 {offsets = [0, 128], sizes = [8, 128], strides = [1, 1]} : vector<8x512xf32> to vector<8x128xf32>
    %cst_54 = arith.constant 5.000000e-01 : f32
    %150 = vector.broadcast %cst_54 : f32 to vector<8x128xf32>
    %151 = arith.mulf %150, %149 : vector<8x128xf32>
    %152 = math.tanh %151 : vector<8x128xf32>
    %cst_55 = arith.constant 5.000000e-01 : f32
    %153 = vector.broadcast %cst_55 : f32 to vector<8x128xf32>
    %154 = arith.mulf %153, %152 : vector<8x128xf32>
    %cst_56 = arith.constant 5.000000e-01 : f32
    %155 = vector.broadcast %cst_56 : f32 to vector<8x128xf32>
    %156 = arith.addf %154, %155 : vector<8x128xf32>
    %157 = vector.extract_strided_slice %140 {offsets = [0, 256], sizes = [8, 128], strides = [1, 1]} : vector<8x512xf32> to vector<8x128xf32>
    %158 = math.tanh %157 : vector<8x128xf32>
    %159 = vector.extract_strided_slice %140 {offsets = [0, 384], sizes = [8, 128], strides = [1, 1]} : vector<8x512xf32> to vector<8x128xf32>
    %cst_57 = arith.constant 5.000000e-01 : f32
    %160 = vector.broadcast %cst_57 : f32 to vector<8x128xf32>
    %161 = arith.mulf %160, %159 : vector<8x128xf32>
    %162 = math.tanh %161 : vector<8x128xf32>
    %cst_58 = arith.constant 5.000000e-01 : f32
    %163 = vector.broadcast %cst_58 : f32 to vector<8x128xf32>
    %164 = arith.mulf %163, %162 : vector<8x128xf32>
    %cst_59 = arith.constant 5.000000e-01 : f32
    %165 = vector.broadcast %cst_59 : f32 to vector<8x128xf32>
    %166 = arith.addf %164, %165 : vector<8x128xf32>
    %167 = arith.mulf %156, %126 : vector<8x128xf32>
    %168 = arith.mulf %148, %158 : vector<8x128xf32>
    %169 = arith.addf %167, %168 : vector<8x128xf32>
    %170 = math.tanh %169 : vector<8x128xf32>
    %171 = arith.mulf %166, %170 : vector<8x128xf32>
    %172 = arith.truncf %171 : vector<8x128xf32> to vector<8x128xbf16>
    %173 = arith.truncf %171 : vector<8x128xf32> to vector<8x128xbf16>
    %174 = arith.index_cast %c3_i32 : i32 to index
    %c0_60 = arith.constant 0 : index
    %c0_61 = arith.constant 0 : index
    %175 = vector.load %arg6[%174, %c0_60, %c0_61] : memref<4x8x128xbf16, #tpu.memory_space<vmem>>, vector<1x8x128xbf16>
    %176 = vector.shape_cast %175 : vector<1x8x128xbf16> to vector<8x128xbf16>
    %177 = vector.shape_cast %173 : vector<8x128xbf16> to vector<1x8x128xbf16>
    tpu.vector_store %arg6[%174, %c0_60, %c0_61], %177 {strides = array<i32>} : memref<4x8x128xbf16, #tpu.memory_space<vmem>>, vector<1x8x128xbf16>,
    %c4_i32 = arith.constant 4 : i32
    %c0_62 = arith.constant 0 : index
    %c0_63 = arith.constant 0 : index
    %178 = vector.load %arg9[%c0_62, %c0_63] : memref<8x128xbf16, #tpu.memory_space<vmem>>, vector<8x128xbf16>
    tpu.vector_store %arg9[%c0_62, %c0_63], %172 {strides = array<i32>} : memref<8x128xbf16, #tpu.memory_space<vmem>>, vector<8x128xbf16>,
    %c0_64 = arith.constant 0 : index
    %c0_65 = arith.constant 0 : index
    %179 = vector.load %arg10[%c0_64, %c0_65] : memref<8x128xf32, #tpu.memory_space<vmem>>, vector<8x128xf32>
    tpu.vector_store %arg10[%c0_64, %c0_65], %169 {strides = array<i32>} : memref<8x128xf32, #tpu.memory_space<vmem>>, vector<8x128xf32>,
    %c1_i32_66 = arith.constant 1 : i32
    %180 = arith.cmpi eq, %arg1, %c1_i32_66 : i32
    %181 = arith.extui %180 : i1 to i32
    %c0_i32_67 = arith.constant 0 : i32
    %182 = arith.cmpi ne, %181, %c0_i32_67 : i32
    scf.if %182 {
      %183 = arith.extf %172 : vector<8x128xbf16> to vector<8x128xf32>
      %c0_68 = arith.constant 0 : index
      %c0_69 = arith.constant 0 : index
      %184 = vector.load %arg7[%c0_68, %c0_69] : memref<8x128xf32, #tpu.memory_space<vmem>>, vector<8x128xf32>
      tpu.vector_store %arg7[%c0_68, %c0_69], %183 {strides = array<i32>} : memref<8x128xf32, #tpu.memory_space<vmem>>, vector<8x128xf32>,
      %c0_70 = arith.constant 0 : index
      %c0_71 = arith.constant 0 : index
      %185 = vector.load %arg8[%c0_70, %c0_71] : memref<8x128xf32, #tpu.memory_space<vmem>>, vector<8x128xf32>
      tpu.vector_store %arg8[%c0_70, %c0_71], %169 {strides = array<i32>} : memref<8x128xf32, #tpu.memory_space<vmem>>, vector<8x128xf32>,
    } else {
    }
    return
  }
  func.func @transform_0(%arg0: i32, %arg1: i32) -> (i32, i32, i32) {
    %c0_i32 = arith.constant 0 : i32
    %c0_i32_0 = arith.constant 0 : i32
    return %arg1, %arg0, %c0_i32 : i32, i32, i32
  }
  func.func @transform_1(%arg0: i32, %arg1: i32) -> (i32, i32) {
    %c0_i32 = arith.constant 0 : i32
    %c0_i32_0 = arith.constant 0 : i32
    %c0_i32_1 = arith.constant 0 : i32
    return %c0_i32, %c0_i32_0 : i32, i32
  }
  func.func @transform_2(%arg0: i32, %arg1: i32) -> (i32, i32) {
    %c0_i32 = arith.constant 0 : i32
    %c0_i32_0 = arith.constant 0 : i32
    return %arg0, %c0_i32 : i32, i32
  }
  func.func @transform_3(%arg0: i32, %arg1: i32) -> (i32, i32) {
    %c0_i32 = arith.constant 0 : i32
    %c0_i32_0 = arith.constant 0 : i32
    return %arg0, %c0_i32 : i32, i32
  }
  func.func @transform_4(%arg0: i32, %arg1: i32) -> (i32, i32, i32) {
    %c0_i32 = arith.constant 0 : i32
    %c0_i32_0 = arith.constant 0 : i32
    return %arg1, %arg0, %c0_i32 : i32, i32, i32
  }
  func.func @transform_5(%arg0: i32, %arg1: i32) -> (i32, i32) {
    %c0_i32 = arith.constant 0 : i32
    %c0_i32_0 = arith.constant 0 : i32
    return %arg0, %c0_i32 : i32, i32
  }
  func.func @transform_6(%arg0: i32, %arg1: i32) -> (i32, i32) {
    %c0_i32 = arith.constant 0 : i32
    %c0_i32_0 = arith.constant 0 : i32
    return %arg0, %c0_i32 : i32, i32
  }
}

module attributes {stable_mosaic.version = 11 : i64} {
  func.func @_lstm_recurrent_kernel(%arg0: i32, %arg1: i32, %arg2: memref<4x8x512xbf16, #tpu.memory_space<vmem>>, %arg3: memref<128x512xbf16, #tpu.memory_space<vmem>>, %arg4: memref<8x128xbf16, #tpu.memory_space<vmem>>, %arg5: memref<8x128xf32, #tpu.memory_space<vmem>>, %arg6: memref<4x8x128xf32, #tpu.memory_space<vmem>>, %arg7: memref<8x128xf32, #tpu.memory_space<vmem>>, %arg8: memref<8x128xf32, #tpu.memory_space<vmem>>, %arg9: memref<8x128xbf16, #tpu.memory_space<vmem>>, %arg10: memref<8x128xf32, #tpu.memory_space<vmem>>) attributes {dimension_semantics = [#tpu.dimension_semantics<parallel>, #tpu.dimension_semantics<arbitrary>], iteration_bounds = array<i64: 1, 2>, scalar_prefetch = 0 : i64, scratch_operands = 2 : i64, tpu.core_type = #tpu.core_type<tc>, window_params = [{transform_indices = @transform_0, window_bounds = array<i64: 4, 8, 512>}, {pipeline_mode = #tpu.pipeline_mode<synchronous>, transform_indices = @transform_1, window_bounds = array<i64: 128, 512>}, {transform_indices = @transform_2, window_bounds = array<i64: 8, 128>}, {transform_indices = @transform_3, window_bounds = array<i64: 8, 128>}, {transform_indices = @transform_4, window_bounds = array<i64: 4, 8, 128>}, {transform_indices = @transform_5, window_bounds = array<i64: 8, 128>}, {transform_indices = @transform_6, window_bounds = array<i64: 8, 128>}]} {
    %c0_i32 = arith.constant 0 : i32
    %0 = arith.cmpi eq, %arg1, %c0_i32 : i32
    %1 = arith.extui %0 : i1 to i32
    %c0_i32_0 = arith.constant 0 : i32
    %2 = arith.cmpi ne, %1, %c0_i32_0 : i32
    scf.if %2 {
      %c0_68 = arith.constant 0 : index
      %c0_69 = arith.constant 0 : index
      %179 = vector.load %arg4[%c0_68, %c0_69] : memref<8x128xbf16, #tpu.memory_space<vmem>>, vector<8x128xbf16>
      %c0_70 = arith.constant 0 : index
      %c0_71 = arith.constant 0 : index
      %180 = vector.load %arg9[%c0_70, %c0_71] : memref<8x128xbf16, #tpu.memory_space<vmem>>, vector<8x128xbf16>
      tpu.vector_store %arg9[%c0_70, %c0_71], %179 {strides = array<i32>} : memref<8x128xbf16, #tpu.memory_space<vmem>>, vector<8x128xbf16>,
      %c0_72 = arith.constant 0 : index
      %c0_73 = arith.constant 0 : index
      %181 = vector.load %arg5[%c0_72, %c0_73] : memref<8x128xf32, #tpu.memory_space<vmem>>, vector<8x128xf32>
      %c0_74 = arith.constant 0 : index
      %c0_75 = arith.constant 0 : index
      %182 = vector.load %arg10[%c0_74, %c0_75] : memref<8x128xf32, #tpu.memory_space<vmem>>, vector<8x128xf32>
      tpu.vector_store %arg10[%c0_74, %c0_75], %181 {strides = array<i32>} : memref<8x128xf32, #tpu.memory_space<vmem>>, vector<8x128xf32>,
    } else {
    }
    %c0 = arith.constant 0 : index
    %c0_1 = arith.constant 0 : index
    %3 = vector.load %arg3[%c0, %c0_1] : memref<128x512xbf16, #tpu.memory_space<vmem>>, vector<128x512xbf16>
    %c0_2 = arith.constant 0 : index
    %c0_3 = arith.constant 0 : index
    %4 = vector.load %arg9[%c0_2, %c0_3] : memref<8x128xbf16, #tpu.memory_space<vmem>>, vector<8x128xbf16>
    %c0_4 = arith.constant 0 : index
    %c0_5 = arith.constant 0 : index
    %5 = vector.load %arg10[%c0_4, %c0_5] : memref<8x128xf32, #tpu.memory_space<vmem>>, vector<8x128xf32>
    %c0_i32_6 = arith.constant 0 : i32
    %6 = arith.index_cast %c0_i32_6 : i32 to index
    %c0_7 = arith.constant 0 : index
    %c0_8 = arith.constant 0 : index
    %7 = vector.load %arg2[%6, %c0_7, %c0_8] : memref<4x8x512xbf16, #tpu.memory_space<vmem>>, vector<1x8x512xbf16>
    %8 = vector.shape_cast %7 : vector<1x8x512xbf16> to vector<8x512xbf16>
    %9 = arith.extf %8 : vector<8x512xbf16> to vector<8x512xf32>
    %cst = arith.constant dense<0.000000e+00> : vector<8x512xf32>
    %10 = tpu.matmul %4, %3, %cst {dimension_numbers = #tpu.dot_dimension_numbers<[1], [0], [0], [1], [0, 0, 1, 1], [], []>} : vector<8x128xbf16>, vector<128x512xbf16>, vector<8x512xf32> -> vector<8x512xf32>
    %11 = arith.addf %9, %10 : vector<8x512xf32>
    %12 = vector.extract_strided_slice %11 {offsets = [0, 0], sizes = [8, 128], strides = [1, 1]} : vector<8x512xf32> to vector<8x128xf32>
    %cst_9 = arith.constant 5.000000e-01 : f32
    %13 = vector.broadcast %cst_9 : f32 to vector<8x128xf32>
    %14 = arith.mulf %13, %12 : vector<8x128xf32>
    %15 = math.tanh %14 : vector<8x128xf32>
    %cst_10 = arith.constant 5.000000e-01 : f32
    %16 = vector.broadcast %cst_10 : f32 to vector<8x128xf32>
    %17 = arith.mulf %16, %15 : vector<8x128xf32>
    %cst_11 = arith.constant 5.000000e-01 : f32
    %18 = vector.broadcast %cst_11 : f32 to vector<8x128xf32>
    %19 = arith.addf %17, %18 : vector<8x128xf32>
    %20 = vector.extract_strided_slice %11 {offsets = [0, 128], sizes = [8, 128], strides = [1, 1]} : vector<8x512xf32> to vector<8x128xf32>
    %cst_12 = arith.constant 5.000000e-01 : f32
    %21 = vector.broadcast %cst_12 : f32 to vector<8x128xf32>
    %22 = arith.mulf %21, %20 : vector<8x128xf32>
    %23 = math.tanh %22 : vector<8x128xf32>
    %cst_13 = arith.constant 5.000000e-01 : f32
    %24 = vector.broadcast %cst_13 : f32 to vector<8x128xf32>
    %25 = arith.mulf %24, %23 : vector<8x128xf32>
    %cst_14 = arith.constant 5.000000e-01 : f32
    %26 = vector.broadcast %cst_14 : f32 to vector<8x128xf32>
    %27 = arith.addf %25, %26 : vector<8x128xf32>
    %28 = vector.extract_strided_slice %11 {offsets = [0, 256], sizes = [8, 128], strides = [1, 1]} : vector<8x512xf32> to vector<8x128xf32>
    %29 = math.tanh %28 : vector<8x128xf32>
    %30 = vector.extract_strided_slice %11 {offsets = [0, 384], sizes = [8, 128], strides = [1, 1]} : vector<8x512xf32> to vector<8x128xf32>
    %cst_15 = arith.constant 5.000000e-01 : f32
    %31 = vector.broadcast %cst_15 : f32 to vector<8x128xf32>
    %32 = arith.mulf %31, %30 : vector<8x128xf32>
    %33 = math.tanh %32 : vector<8x128xf32>
    %cst_16 = arith.constant 5.000000e-01 : f32
    %34 = vector.broadcast %cst_16 : f32 to vector<8x128xf32>
    %35 = arith.mulf %34, %33 : vector<8x128xf32>
    %cst_17 = arith.constant 5.000000e-01 : f32
    %36 = vector.broadcast %cst_17 : f32 to vector<8x128xf32>
    %37 = arith.addf %35, %36 : vector<8x128xf32>
    %38 = arith.mulf %27, %5 : vector<8x128xf32>
    %39 = arith.mulf %19, %29 : vector<8x128xf32>
    %40 = arith.addf %38, %39 : vector<8x128xf32>
    %41 = math.tanh %40 : vector<8x128xf32>
    %42 = arith.mulf %37, %41 : vector<8x128xf32>
    %43 = arith.truncf %42 : vector<8x128xf32> to vector<8x128xbf16>
    %44 = arith.index_cast %c0_i32_6 : i32 to index
    %c0_18 = arith.constant 0 : index
    %c0_19 = arith.constant 0 : index
    %45 = vector.load %arg6[%44, %c0_18, %c0_19] : memref<4x8x128xf32, #tpu.memory_space<vmem>>, vector<1x8x128xf32>
    %46 = vector.shape_cast %45 : vector<1x8x128xf32> to vector<8x128xf32>
    %47 = vector.shape_cast %42 : vector<8x128xf32> to vector<1x8x128xf32>
    tpu.vector_store %arg6[%44, %c0_18, %c0_19], %47 {strides = array<i32>} : memref<4x8x128xf32, #tpu.memory_space<vmem>>, vector<1x8x128xf32>,
    %c1_i32 = arith.constant 1 : i32
    %48 = arith.index_cast %c1_i32 : i32 to index
    %c0_20 = arith.constant 0 : index
    %c0_21 = arith.constant 0 : index
    %49 = vector.load %arg2[%48, %c0_20, %c0_21] : memref<4x8x512xbf16, #tpu.memory_space<vmem>>, vector<1x8x512xbf16>
    %50 = vector.shape_cast %49 : vector<1x8x512xbf16> to vector<8x512xbf16>
    %51 = arith.extf %50 : vector<8x512xbf16> to vector<8x512xf32>
    %cst_22 = arith.constant dense<0.000000e+00> : vector<8x512xf32>
    %52 = tpu.matmul %43, %3, %cst_22 {dimension_numbers = #tpu.dot_dimension_numbers<[1], [0], [0], [1], [0, 0, 1, 1], [], []>} : vector<8x128xbf16>, vector<128x512xbf16>, vector<8x512xf32> -> vector<8x512xf32>
    %53 = arith.addf %51, %52 : vector<8x512xf32>
    %54 = vector.extract_strided_slice %53 {offsets = [0, 0], sizes = [8, 128], strides = [1, 1]} : vector<8x512xf32> to vector<8x128xf32>
    %cst_23 = arith.constant 5.000000e-01 : f32
    %55 = vector.broadcast %cst_23 : f32 to vector<8x128xf32>
    %56 = arith.mulf %55, %54 : vector<8x128xf32>
    %57 = math.tanh %56 : vector<8x128xf32>
    %cst_24 = arith.constant 5.000000e-01 : f32
    %58 = vector.broadcast %cst_24 : f32 to vector<8x128xf32>
    %59 = arith.mulf %58, %57 : vector<8x128xf32>
    %cst_25 = arith.constant 5.000000e-01 : f32
    %60 = vector.broadcast %cst_25 : f32 to vector<8x128xf32>
    %61 = arith.addf %59, %60 : vector<8x128xf32>
    %62 = vector.extract_strided_slice %53 {offsets = [0, 128], sizes = [8, 128], strides = [1, 1]} : vector<8x512xf32> to vector<8x128xf32>
    %cst_26 = arith.constant 5.000000e-01 : f32
    %63 = vector.broadcast %cst_26 : f32 to vector<8x128xf32>
    %64 = arith.mulf %63, %62 : vector<8x128xf32>
    %65 = math.tanh %64 : vector<8x128xf32>
    %cst_27 = arith.constant 5.000000e-01 : f32
    %66 = vector.broadcast %cst_27 : f32 to vector<8x128xf32>
    %67 = arith.mulf %66, %65 : vector<8x128xf32>
    %cst_28 = arith.constant 5.000000e-01 : f32
    %68 = vector.broadcast %cst_28 : f32 to vector<8x128xf32>
    %69 = arith.addf %67, %68 : vector<8x128xf32>
    %70 = vector.extract_strided_slice %53 {offsets = [0, 256], sizes = [8, 128], strides = [1, 1]} : vector<8x512xf32> to vector<8x128xf32>
    %71 = math.tanh %70 : vector<8x128xf32>
    %72 = vector.extract_strided_slice %53 {offsets = [0, 384], sizes = [8, 128], strides = [1, 1]} : vector<8x512xf32> to vector<8x128xf32>
    %cst_29 = arith.constant 5.000000e-01 : f32
    %73 = vector.broadcast %cst_29 : f32 to vector<8x128xf32>
    %74 = arith.mulf %73, %72 : vector<8x128xf32>
    %75 = math.tanh %74 : vector<8x128xf32>
    %cst_30 = arith.constant 5.000000e-01 : f32
    %76 = vector.broadcast %cst_30 : f32 to vector<8x128xf32>
    %77 = arith.mulf %76, %75 : vector<8x128xf32>
    %cst_31 = arith.constant 5.000000e-01 : f32
    %78 = vector.broadcast %cst_31 : f32 to vector<8x128xf32>
    %79 = arith.addf %77, %78 : vector<8x128xf32>
    %80 = arith.mulf %69, %40 : vector<8x128xf32>
    %81 = arith.mulf %61, %71 : vector<8x128xf32>
    %82 = arith.addf %80, %81 : vector<8x128xf32>
    %83 = math.tanh %82 : vector<8x128xf32>
    %84 = arith.mulf %79, %83 : vector<8x128xf32>
    %85 = arith.truncf %84 : vector<8x128xf32> to vector<8x128xbf16>
    %86 = arith.index_cast %c1_i32 : i32 to index
    %c0_32 = arith.constant 0 : index
    %c0_33 = arith.constant 0 : index
    %87 = vector.load %arg6[%86, %c0_32, %c0_33] : memref<4x8x128xf32, #tpu.memory_space<vmem>>, vector<1x8x128xf32>
    %88 = vector.shape_cast %87 : vector<1x8x128xf32> to vector<8x128xf32>
    %89 = vector.shape_cast %84 : vector<8x128xf32> to vector<1x8x128xf32>
    tpu.vector_store %arg6[%86, %c0_32, %c0_33], %89 {strides = array<i32>} : memref<4x8x128xf32, #tpu.memory_space<vmem>>, vector<1x8x128xf32>,
    %c2_i32 = arith.constant 2 : i32
    %90 = arith.index_cast %c2_i32 : i32 to index
    %c0_34 = arith.constant 0 : index
    %c0_35 = arith.constant 0 : index
    %91 = vector.load %arg2[%90, %c0_34, %c0_35] : memref<4x8x512xbf16, #tpu.memory_space<vmem>>, vector<1x8x512xbf16>
    %92 = vector.shape_cast %91 : vector<1x8x512xbf16> to vector<8x512xbf16>
    %93 = arith.extf %92 : vector<8x512xbf16> to vector<8x512xf32>
    %cst_36 = arith.constant dense<0.000000e+00> : vector<8x512xf32>
    %94 = tpu.matmul %85, %3, %cst_36 {dimension_numbers = #tpu.dot_dimension_numbers<[1], [0], [0], [1], [0, 0, 1, 1], [], []>} : vector<8x128xbf16>, vector<128x512xbf16>, vector<8x512xf32> -> vector<8x512xf32>
    %95 = arith.addf %93, %94 : vector<8x512xf32>
    %96 = vector.extract_strided_slice %95 {offsets = [0, 0], sizes = [8, 128], strides = [1, 1]} : vector<8x512xf32> to vector<8x128xf32>
    %cst_37 = arith.constant 5.000000e-01 : f32
    %97 = vector.broadcast %cst_37 : f32 to vector<8x128xf32>
    %98 = arith.mulf %97, %96 : vector<8x128xf32>
    %99 = math.tanh %98 : vector<8x128xf32>
    %cst_38 = arith.constant 5.000000e-01 : f32
    %100 = vector.broadcast %cst_38 : f32 to vector<8x128xf32>
    %101 = arith.mulf %100, %99 : vector<8x128xf32>
    %cst_39 = arith.constant 5.000000e-01 : f32
    %102 = vector.broadcast %cst_39 : f32 to vector<8x128xf32>
    %103 = arith.addf %101, %102 : vector<8x128xf32>
    %104 = vector.extract_strided_slice %95 {offsets = [0, 128], sizes = [8, 128], strides = [1, 1]} : vector<8x512xf32> to vector<8x128xf32>
    %cst_40 = arith.constant 5.000000e-01 : f32
    %105 = vector.broadcast %cst_40 : f32 to vector<8x128xf32>
    %106 = arith.mulf %105, %104 : vector<8x128xf32>
    %107 = math.tanh %106 : vector<8x128xf32>
    %cst_41 = arith.constant 5.000000e-01 : f32
    %108 = vector.broadcast %cst_41 : f32 to vector<8x128xf32>
    %109 = arith.mulf %108, %107 : vector<8x128xf32>
    %cst_42 = arith.constant 5.000000e-01 : f32
    %110 = vector.broadcast %cst_42 : f32 to vector<8x128xf32>
    %111 = arith.addf %109, %110 : vector<8x128xf32>
    %112 = vector.extract_strided_slice %95 {offsets = [0, 256], sizes = [8, 128], strides = [1, 1]} : vector<8x512xf32> to vector<8x128xf32>
    %113 = math.tanh %112 : vector<8x128xf32>
    %114 = vector.extract_strided_slice %95 {offsets = [0, 384], sizes = [8, 128], strides = [1, 1]} : vector<8x512xf32> to vector<8x128xf32>
    %cst_43 = arith.constant 5.000000e-01 : f32
    %115 = vector.broadcast %cst_43 : f32 to vector<8x128xf32>
    %116 = arith.mulf %115, %114 : vector<8x128xf32>
    %117 = math.tanh %116 : vector<8x128xf32>
    %cst_44 = arith.constant 5.000000e-01 : f32
    %118 = vector.broadcast %cst_44 : f32 to vector<8x128xf32>
    %119 = arith.mulf %118, %117 : vector<8x128xf32>
    %cst_45 = arith.constant 5.000000e-01 : f32
    %120 = vector.broadcast %cst_45 : f32 to vector<8x128xf32>
    %121 = arith.addf %119, %120 : vector<8x128xf32>
    %122 = arith.mulf %111, %82 : vector<8x128xf32>
    %123 = arith.mulf %103, %113 : vector<8x128xf32>
    %124 = arith.addf %122, %123 : vector<8x128xf32>
    %125 = math.tanh %124 : vector<8x128xf32>
    %126 = arith.mulf %121, %125 : vector<8x128xf32>
    %127 = arith.truncf %126 : vector<8x128xf32> to vector<8x128xbf16>
    %128 = arith.index_cast %c2_i32 : i32 to index
    %c0_46 = arith.constant 0 : index
    %c0_47 = arith.constant 0 : index
    %129 = vector.load %arg6[%128, %c0_46, %c0_47] : memref<4x8x128xf32, #tpu.memory_space<vmem>>, vector<1x8x128xf32>
    %130 = vector.shape_cast %129 : vector<1x8x128xf32> to vector<8x128xf32>
    %131 = vector.shape_cast %126 : vector<8x128xf32> to vector<1x8x128xf32>
    tpu.vector_store %arg6[%128, %c0_46, %c0_47], %131 {strides = array<i32>} : memref<4x8x128xf32, #tpu.memory_space<vmem>>, vector<1x8x128xf32>,
    %c3_i32 = arith.constant 3 : i32
    %132 = arith.index_cast %c3_i32 : i32 to index
    %c0_48 = arith.constant 0 : index
    %c0_49 = arith.constant 0 : index
    %133 = vector.load %arg2[%132, %c0_48, %c0_49] : memref<4x8x512xbf16, #tpu.memory_space<vmem>>, vector<1x8x512xbf16>
    %134 = vector.shape_cast %133 : vector<1x8x512xbf16> to vector<8x512xbf16>
    %135 = arith.extf %134 : vector<8x512xbf16> to vector<8x512xf32>
    %cst_50 = arith.constant dense<0.000000e+00> : vector<8x512xf32>
    %136 = tpu.matmul %127, %3, %cst_50 {dimension_numbers = #tpu.dot_dimension_numbers<[1], [0], [0], [1], [0, 0, 1, 1], [], []>} : vector<8x128xbf16>, vector<128x512xbf16>, vector<8x512xf32> -> vector<8x512xf32>
    %137 = arith.addf %135, %136 : vector<8x512xf32>
    %138 = vector.extract_strided_slice %137 {offsets = [0, 0], sizes = [8, 128], strides = [1, 1]} : vector<8x512xf32> to vector<8x128xf32>
    %cst_51 = arith.constant 5.000000e-01 : f32
    %139 = vector.broadcast %cst_51 : f32 to vector<8x128xf32>
    %140 = arith.mulf %139, %138 : vector<8x128xf32>
    %141 = math.tanh %140 : vector<8x128xf32>
    %cst_52 = arith.constant 5.000000e-01 : f32
    %142 = vector.broadcast %cst_52 : f32 to vector<8x128xf32>
    %143 = arith.mulf %142, %141 : vector<8x128xf32>
    %cst_53 = arith.constant 5.000000e-01 : f32
    %144 = vector.broadcast %cst_53 : f32 to vector<8x128xf32>
    %145 = arith.addf %143, %144 : vector<8x128xf32>
    %146 = vector.extract_strided_slice %137 {offsets = [0, 128], sizes = [8, 128], strides = [1, 1]} : vector<8x512xf32> to vector<8x128xf32>
    %cst_54 = arith.constant 5.000000e-01 : f32
    %147 = vector.broadcast %cst_54 : f32 to vector<8x128xf32>
    %148 = arith.mulf %147, %146 : vector<8x128xf32>
    %149 = math.tanh %148 : vector<8x128xf32>
    %cst_55 = arith.constant 5.000000e-01 : f32
    %150 = vector.broadcast %cst_55 : f32 to vector<8x128xf32>
    %151 = arith.mulf %150, %149 : vector<8x128xf32>
    %cst_56 = arith.constant 5.000000e-01 : f32
    %152 = vector.broadcast %cst_56 : f32 to vector<8x128xf32>
    %153 = arith.addf %151, %152 : vector<8x128xf32>
    %154 = vector.extract_strided_slice %137 {offsets = [0, 256], sizes = [8, 128], strides = [1, 1]} : vector<8x512xf32> to vector<8x128xf32>
    %155 = math.tanh %154 : vector<8x128xf32>
    %156 = vector.extract_strided_slice %137 {offsets = [0, 384], sizes = [8, 128], strides = [1, 1]} : vector<8x512xf32> to vector<8x128xf32>
    %cst_57 = arith.constant 5.000000e-01 : f32
    %157 = vector.broadcast %cst_57 : f32 to vector<8x128xf32>
    %158 = arith.mulf %157, %156 : vector<8x128xf32>
    %159 = math.tanh %158 : vector<8x128xf32>
    %cst_58 = arith.constant 5.000000e-01 : f32
    %160 = vector.broadcast %cst_58 : f32 to vector<8x128xf32>
    %161 = arith.mulf %160, %159 : vector<8x128xf32>
    %cst_59 = arith.constant 5.000000e-01 : f32
    %162 = vector.broadcast %cst_59 : f32 to vector<8x128xf32>
    %163 = arith.addf %161, %162 : vector<8x128xf32>
    %164 = arith.mulf %153, %124 : vector<8x128xf32>
    %165 = arith.mulf %145, %155 : vector<8x128xf32>
    %166 = arith.addf %164, %165 : vector<8x128xf32>
    %167 = math.tanh %166 : vector<8x128xf32>
    %168 = arith.mulf %163, %167 : vector<8x128xf32>
    %169 = arith.truncf %168 : vector<8x128xf32> to vector<8x128xbf16>
    %170 = arith.index_cast %c3_i32 : i32 to index
    %c0_60 = arith.constant 0 : index
    %c0_61 = arith.constant 0 : index
    %171 = vector.load %arg6[%170, %c0_60, %c0_61] : memref<4x8x128xf32, #tpu.memory_space<vmem>>, vector<1x8x128xf32>
    %172 = vector.shape_cast %171 : vector<1x8x128xf32> to vector<8x128xf32>
    %173 = vector.shape_cast %168 : vector<8x128xf32> to vector<1x8x128xf32>
    tpu.vector_store %arg6[%170, %c0_60, %c0_61], %173 {strides = array<i32>} : memref<4x8x128xf32, #tpu.memory_space<vmem>>, vector<1x8x128xf32>,
    %c4_i32 = arith.constant 4 : i32
    %c0_62 = arith.constant 0 : index
    %c0_63 = arith.constant 0 : index
    %174 = vector.load %arg9[%c0_62, %c0_63] : memref<8x128xbf16, #tpu.memory_space<vmem>>, vector<8x128xbf16>
    tpu.vector_store %arg9[%c0_62, %c0_63], %169 {strides = array<i32>} : memref<8x128xbf16, #tpu.memory_space<vmem>>, vector<8x128xbf16>,
    %c0_64 = arith.constant 0 : index
    %c0_65 = arith.constant 0 : index
    %175 = vector.load %arg10[%c0_64, %c0_65] : memref<8x128xf32, #tpu.memory_space<vmem>>, vector<8x128xf32>
    tpu.vector_store %arg10[%c0_64, %c0_65], %166 {strides = array<i32>} : memref<8x128xf32, #tpu.memory_space<vmem>>, vector<8x128xf32>,
    %c1_i32_66 = arith.constant 1 : i32
    %176 = arith.cmpi eq, %arg1, %c1_i32_66 : i32
    %177 = arith.extui %176 : i1 to i32
    %c0_i32_67 = arith.constant 0 : i32
    %178 = arith.cmpi ne, %177, %c0_i32_67 : i32
    scf.if %178 {
      %179 = arith.extf %169 : vector<8x128xbf16> to vector<8x128xf32>
      %c0_68 = arith.constant 0 : index
      %c0_69 = arith.constant 0 : index
      %180 = vector.load %arg7[%c0_68, %c0_69] : memref<8x128xf32, #tpu.memory_space<vmem>>, vector<8x128xf32>
      tpu.vector_store %arg7[%c0_68, %c0_69], %179 {strides = array<i32>} : memref<8x128xf32, #tpu.memory_space<vmem>>, vector<8x128xf32>,
      %c0_70 = arith.constant 0 : index
      %c0_71 = arith.constant 0 : index
      %181 = vector.load %arg8[%c0_70, %c0_71] : memref<8x128xf32, #tpu.memory_space<vmem>>, vector<8x128xf32>
      tpu.vector_store %arg8[%c0_70, %c0_71], %166 {strides = array<i32>} : memref<8x128xf32, #tpu.memory_space<vmem>>, vector<8x128xf32>,
    } else {
    }
    return
  }
  func.func @transform_0(%arg0: i32, %arg1: i32) -> (i32, i32, i32) {
    %c0_i32 = arith.constant 0 : i32
    %c0_i32_0 = arith.constant 0 : i32
    return %arg1, %arg0, %c0_i32 : i32, i32, i32
  }
  func.func @transform_1(%arg0: i32, %arg1: i32) -> (i32, i32) {
    %c0_i32 = arith.constant 0 : i32
    %c0_i32_0 = arith.constant 0 : i32
    %c0_i32_1 = arith.constant 0 : i32
    return %c0_i32, %c0_i32_0 : i32, i32
  }
  func.func @transform_2(%arg0: i32, %arg1: i32) -> (i32, i32) {
    %c0_i32 = arith.constant 0 : i32
    %c0_i32_0 = arith.constant 0 : i32
    return %arg0, %c0_i32 : i32, i32
  }
  func.func @transform_3(%arg0: i32, %arg1: i32) -> (i32, i32) {
    %c0_i32 = arith.constant 0 : i32
    %c0_i32_0 = arith.constant 0 : i32
    return %arg0, %c0_i32 : i32, i32
  }
  func.func @transform_4(%arg0: i32, %arg1: i32) -> (i32, i32, i32) {
    %c0_i32 = arith.constant 0 : i32
    %c0_i32_0 = arith.constant 0 : i32
    return %arg1, %arg0, %c0_i32 : i32, i32, i32
  }
  func.func @transform_5(%arg0: i32, %arg1: i32) -> (i32, i32) {
    %c0_i32 = arith.constant 0 : i32
    %c0_i32_0 = arith.constant 0 : i32
    return %arg0, %c0_i32 : i32, i32
  }
  func.func @transform_6(%arg0: i32, %arg1: i32) -> (i32, i32) {
    %c0_i32 = arith.constant 0 : i32
    %c0_i32_0 = arith.constant 0 : i32
    return %arg0, %c0_i32 : i32, i32
  }
}

</mosaic_0001>

<llo_original>
// kernel: rnn_model_forward.2
$region0: #{rnn_model_forward.2}
  #allocation0 [shape = 'u32[]', space=smem, size = 0x4, offset = 0x4, fixed_abs, tag = 'smem constant byte address 0x4 - core index']
  #allocation1 [shape = 'u32[144,128]{1,0:T(1,128)}', space=vmem, size = 0x12000, scoped, tag = 'internal scratch']
  #allocation2 [shape = 'bf16[8,128]{1,0:T(8,128)(2,1)}', space=vmem, size = 0x800, scoped, tag = 'scratch operand']
  #allocation3 [shape = 'f32[8,128]{1,0:T(8,128)}', space=vmem, size = 0x1000, scoped, tag = 'scratch operand']
  %s0 = inlined_call_operand.vmem [shape: bf16[8,8,512], index: 0, kind: input, shape index: {}]
  %s1 = inlined_call_operand.vmem [shape: bf16[128,512], index: 1, kind: input, shape index: {}]
  %s2 = inlined_call_operand.vmem [shape: bf16[8,128], index: 2, kind: input, shape index: {}]
  %s3 = inlined_call_operand.vmem [shape: f32[8,128], index: 3, kind: input, shape index: {}]
  %s4 = inlined_call_operand.vmem [shape: bf16[8,8,128], index: 4, kind: output, shape index: {0}]
  %s5 = inlined_call_operand.vmem [shape: f32[8,128], index: 5, kind: output, shape index: {1}]
  %s6 = inlined_call_operand.vmem [shape: f32[8,128], index: 6, kind: output, shape index: {2}]
  %7 = xla_tuple %s4, %s5, %s6
  %s8 = sld [smem:[#allocation0]]
  $region73: #{rnn_model_forward.2} parent=0
    _
  %s10 = ssub.s32 1, %s8
  %s11 = scalar_select 0, %s10, %s8
  loop: start=0, step=1, limit=4
  $region2: #{rnn_model_forward.2} parent=0 // loop_pre_header
    _
  $region3: #{rnn_model_forward.2} parent=0 // loop_header
    %s13 = sphi 0, %s17
    %p14 = scmp.ge.s32.totalorder %s13, 4
    %s20 = sphi 0, %s32
    %s21 = sphi 0, %s28
    %s22 = sphi 0, %s20
    %s23 = sphi 0, %s21
    %s24 = sphi 0, %s22
    %s25 = sphi 0, %s23
    %s37 = sphi 0, %s39
    %s40 = sphi 0, %s37
    %s41 = sphi 0, %s40
    %s57 = sphi 0, %s41
    %s61 = sphi 0, %s61
    %s63 = sphi 0, %s61
    %s64 = sphi 0, %s63
    %s78 = sphi 0, %s64
    %s84 = sphi 0, %s86
    %s87 = sphi 0, %s84
    %s88 = sphi 0, %s87
    %s104 = sphi 0, %s88
    %s110 = sphi 0, %s112
    %s113 = sphi 0, %s110
    %s114 = sphi 0, %s113
    %s130 = sphi 0, %s114
    %s138 = sphi 0, %s140
    %s141 = sphi 0, %s138
    %s142 = sphi 0, %s141
    %s158 = sphi 0, %s142
    %s164 = sphi 0, %s166
    %s167 = sphi 0, %s164
    %s168 = sphi 0, %s167
    %s184 = sphi 0, %s168
    %s190 = sphi 0, %s192
    %s193 = sphi 0, %s190
    %s194 = sphi 0, %s193
    %s210 = sphi 0, %s194
  $region4: #{rnn_model_forward.2} parent=0 // loop_header_branch
    %16 = sbr.rel (%p14) target = $region8
  $region5: #{rnn_model_forward.2} parent=0 // loop_body
    %s18 = ssub.s32 %s13, 1
    %s19 = ssub.s32 %s13, 2
    %s26 = sadd.s32 1, %s21
    %p27 = scmp.ge.s32.totalorder %s26, 2
    %s28 = scalar_select %p27, 0, %s26
    %s29 = sadd.s32 1, %s20
    %s30 = scalar_select %p27, %s29, %s20
    %p31 = scmp.ge.s32.totalorder %s30, 1
    %s32 = scalar_select %p31, 0, %s30
    %s33 = ssub.s32 %s21, %s28
    %s34 = ssub.s32 %s20, %s32
    %s35 = sor.u32 %s33, %s34
    %p36 = scmp.eq.s32.totalorder %s35, 0
    %s38 = sadd.s32 %s37, 1
    %s39 = scalar_select %p36, %s37, %s38
    %p42 = pneg %p36
    %p43 = scmp.eq.s32.totalorder %s13, 1
    %p44 = por %p42, %p43
    %p45 = scmp.ne.s32.totalorder %s37, %s40
    %p46 = scmp.eq.s32.totalorder %s13, 0
    %p47 = por %p45, %p46
    %p48 = scmp.ne.s32.totalorder %s37, %s40
    %p49 = scmp.eq.s32.totalorder %s18, 1
    %p50 = por %p48, %p49
    %p51 = scmp.ne.s32.totalorder %s40, %s41
    %p52 = scmp.eq.s32.totalorder %s18, 0
    %p53 = por %p51, %p52
    %p54 = scmp.ne.s32.totalorder %s40, %s41
    %p55 = scmp.eq.s32.totalorder %s19, 1
    %p56 = por %p54, %p55
    %p58 = scmp.ne.s32.totalorder %s41, %s57
    %p59 = scmp.eq.s32.totalorder %s19, 0
    %p60 = por %p58, %p59
    %s62 = sadd.s32 %s61, 1
    %p65 = scmp.eq.s32.totalorder %s13, 1
    %p66 = scmp.ne.s32.totalorder %s61, %s63
    %p67 = scmp.eq.s32.totalorder %s13, 0
    %p68 = por %p66, %p67
    %p69 = scmp.ne.s32.totalorder %s61, %s63
    %p70 = scmp.eq.s32.totalorder %s18, 1
    %p71 = por %p69, %p70
    %p72 = scmp.ne.s32.totalorder %s63, %s64
    %p73 = scmp.eq.s32.totalorder %s18, 0
    %p74 = por %p72, %p73
    %p75 = scmp.ne.s32.totalorder %s63, %s64
    %p76 = scmp.eq.s32.totalorder %s19, 1
    %p77 = por %p75, %p76
    %p79 = scmp.ne.s32.totalorder %s64, %s78
    %p80 = scmp.eq.s32.totalorder %s19, 0
    %p81 = por %p79, %p80
    %s82 = ssub.s32 %s20, %s32
    %p83 = scmp.eq.s32.totalorder %s82, 0
    %s85 = sadd.s32 %s84, 1
    %s86 = scalar_select %p83, %s84, %s85
    %p89 = pneg %p83
    %p90 = scmp.eq.s32.totalorder %s13, 1
    %p91 = por %p89, %p90
    %p92 = scmp.ne.s32.totalorder %s84, %s87
    %p93 = scmp.eq.s32.totalorder %s13, 0
    %p94 = por %p92, %p93
    %p95 = scmp.ne.s32.totalorder %s84, %s87
    %p96 = scmp.eq.s32.totalorder %s18, 1
    %p97 = por %p95, %p96
    %p98 = scmp.ne.s32.totalorder %s87, %s88
    %p99 = scmp.eq.s32.totalorder %s18, 0
    %p100 = por %p98, %p99
    %p101 = scmp.ne.s32.totalorder %s87, %s88
    %p102 = scmp.eq.s32.totalorder %s19, 1
    %p103 = por %p101, %p102
    %p105 = scmp.ne.s32.totalorder %s88, %s104
    %p106 = scmp.eq.s32.totalorder %s19, 0
    %p107 = por %p105, %p106
    %s108 = ssub.s32 %s20, %s32
    %p109 = scmp.eq.s32.totalorder %s108, 0
    %s111 = sadd.s32 %s110, 1
    %s112 = scalar_select %p109, %s110, %s111
    %p115 = pneg %p109
    %p116 = scmp.eq.s32.totalorder %s13, 1
    %p117 = por %p115, %p116
    %p118 = scmp.ne.s32.totalorder %s110, %s113
    %p119 = scmp.eq.s32.totalorder %s13, 0
    %p120 = por %p118, %p119
    %p121 = scmp.ne.s32.totalorder %s110, %s113
    %p122 = scmp.eq.s32.totalorder %s18, 1
    %p123 = por %p121, %p122
    %p124 = scmp.ne.s32.totalorder %s113, %s114
    %p125 = scmp.eq.s32.totalorder %s18, 0
    %p126 = por %p124, %p125
    %p127 = scmp.ne.s32.totalorder %s113, %s114
    %p128 = scmp.eq.s32.totalorder %s19, 1
    %p129 = por %p127, %p128
    %p131 = scmp.ne.s32.totalorder %s114, %s130
    %p132 = scmp.eq.s32.totalorder %s19, 0
    %p133 = por %p131, %p132
    %s134 = ssub.s32 %s21, %s28
    %s135 = ssub.s32 %s20, %s32
    %s136 = sor.u32 %s134, %s135
    %p137 = scmp.eq.s32.totalorder %s136, 0
    %s139 = sadd.s32 %s138, 1
    %s140 = scalar_select %p137, %s138, %s139
    %p143 = pneg %p137
    %p144 = scmp.eq.s32.totalorder %s13, 1
    %p145 = por %p143, %p144
    %p146 = scmp.ne.s32.totalorder %s138, %s141
    %p147 = scmp.eq.s32.totalorder %s13, 0
    %p148 = por %p146, %p147
    %p149 = scmp.ne.s32.totalorder %s138, %s141
    %p150 = scmp.eq.s32.totalorder %s18, 1
    %p151 = por %p149, %p150
    %p152 = scmp.ne.s32.totalorder %s141, %s142
    %p153 = scmp.eq.s32.totalorder %s18, 0
    %p154 = por %p152, %p153
    %p155 = scmp.ne.s32.totalorder %s141, %s142
    %p156 = scmp.eq.s32.totalorder %s19, 1
    %p157 = por %p155, %p156
    %p159 = scmp.ne.s32.totalorder %s142, %s158
    %p160 = scmp.eq.s32.totalorder %s19, 0
    %p161 = por %p159, %p160
    %s162 = ssub.s32 %s20, %s32
    %p163 = scmp.eq.s32.totalorder %s162, 0
    %s165 = sadd.s32 %s164, 1
    %s166 = scalar_select %p163, %s164, %s165
    %p169 = pneg %p163
    %p170 = scmp.eq.s32.totalorder %s13, 1
    %p171 = por %p169, %p170
    %p172 = scmp.ne.s32.totalorder %s164, %s167
    %p173 = scmp.eq.s32.totalorder %s13, 0
    %p174 = por %p172, %p173
    %p175 = scmp.ne.s32.totalorder %s164, %s167
    %p176 = scmp.eq.s32.totalorder %s18, 1
    %p177 = por %p175, %p176
    %p178 = scmp.ne.s32.totalorder %s167, %s168
    %p179 = scmp.eq.s32.totalorder %s18, 0
    %p180 = por %p178, %p179
    %p181 = scmp.ne.s32.totalorder %s167, %s168
    %p182 = scmp.eq.s32.totalorder %s19, 1
    %p183 = por %p181, %p182
    %p185 = scmp.ne.s32.totalorder %s168, %s184
    %p186 = scmp.eq.s32.totalorder %s19, 0
    %p187 = por %p185, %p186
    %s188 = ssub.s32 %s20, %s32
    %p189 = scmp.eq.s32.totalorder %s188, 0
    %s191 = sadd.s32 %s190, 1
    %s192 = scalar_select %p189, %s190, %s191
    %p195 = pneg %p189
    %p196 = scmp.eq.s32.totalorder %s13, 1
    %p197 = por %p195, %p196
    %p198 = scmp.ne.s32.totalorder %s190, %s193
    %p199 = scmp.eq.s32.totalorder %s13, 0
    %p200 = por %p198, %p199
    %p201 = scmp.ne.s32.totalorder %s190, %s193
    %p202 = scmp.eq.s32.totalorder %s18, 1
    %p203 = por %p201, %p202
    %p204 = scmp.ne.s32.totalorder %s193, %s194
    %p205 = scmp.eq.s32.totalorder %s18, 0
    %p206 = por %p204, %p205
    %p207 = scmp.ne.s32.totalorder %s193, %s194
    %p208 = scmp.eq.s32.totalorder %s19, 1
    %p209 = por %p207, %p208
    %p211 = scmp.ne.s32.totalorder %s194, %s210
    %p212 = scmp.eq.s32.totalorder %s19, 0
    %p213 = por %p211, %p212
    %p214 = scmp.le.s32.totalorder 1, %s13
    %p215 = scmp.lt.s32.totalorder %s13, 3
    %p216 = pnand %p214, %p215
    %p217 = pneg %p216
    // Predicated region
    $region9: #{rnn_model_forward.2} parent=5 // pred_check
      _
    $region10: #{rnn_model_forward.2} parent=5 // pred_check_branch
      %219 = sbr.rel (%p216) target = $region12
    $region11: #{rnn_model_forward.2} parent=5 // pred_region
      %s220 = ssub.s32 %s13, 1
      // Predicated region
      $region13: #{rnn_model_forward.2} parent=11 // pred_check
        %p221 = pneg %p74
      $region14: #{rnn_model_forward.2} parent=11 // pred_check_branch
        %223 = sbr.rel (%p221) target = $region16
      $region15: #{rnn_model_forward.2} parent=11 // pred_region
        _
      $region16: #{rnn_model_forward.2} parent=11 // pred_fallthru
        _
      // Predicated region
      $region17: #{rnn_model_forward.2} parent=11 // pred_check
        %p224 = pneg %p100
      $region18: #{rnn_model_forward.2} parent=11 // pred_check_branch
        %226 = sbr.rel (%p224) target = $region20
      $region19: #{rnn_model_forward.2} parent=11 // pred_region
        %p227 = scmp.lt.s32.totalorder %s22, 0
        %s228 = scalar_select %p227, %s22, 0
        %s229 = smul.addr %s228, 4
        %s230 = scalar_lea.vmem %s2, %s229
      $region20: #{rnn_model_forward.2} parent=11 // pred_fallthru
        _
      // Predicated region
      $region21: #{rnn_model_forward.2} parent=11 // pred_check
        %p231 = pneg %p126
      $region22: #{rnn_model_forward.2} parent=11 // pred_check_branch
        %233 = sbr.rel (%p231) target = $region24
      $region23: #{rnn_model_forward.2} parent=11 // pred_region
        %p234 = scmp.lt.s32.totalorder %s22, 0
        %s235 = scalar_select %p234, %s22, 0
        %s236 = smul.addr %s235, 8
        %s237 = scalar_lea.vmem %s3, %s236
      $region24: #{rnn_model_forward.2} parent=11 // pred_fallthru
        _
    $region12: #{rnn_model_forward.2} parent=5 // pred_fallthru
      _
    %p238 = scmp.lt.s32.totalorder %s13, 2
    // Predicated region
    $region25: #{rnn_model_forward.2} parent=5 // pred_check
      %p239 = pneg %p238
    $region26: #{rnn_model_forward.2} parent=5 // pred_check_branch
      %241 = sbr.rel (%p239) target = $region28
    $region27: #{rnn_model_forward.2} parent=5 // pred_region
      // Predicated region
      $region29: #{rnn_model_forward.2} parent=27 // pred_check
        %p242 = pneg %p47
      $region30: #{rnn_model_forward.2} parent=27 // pred_check_branch
        %244 = sbr.rel (%p242) target = $region32
      $region31: #{rnn_model_forward.2} parent=27 // pred_region
        %s245 = smul.u32 4, %s21
        %p246 = scmp.lt.s32.totalorder %s245, 7
        %s247 = scalar_select %p246, %s245, 7
        %p248 = scmp.lt.s32.totalorder %s20, 0
        %s249 = scalar_select %p248, %s20, 0
        %s250 = smul.addr %s249, 4
        %s251 = smul.addr %s247, 4
        %s252 = sadd.s32 %s250, %s251
        %s253 = smul.addr %s252, 4
        %s254 = scalar_lea.vmem %s0, %s253
        %s255 = smul.u32 4, %s21
      $region32: #{rnn_model_forward.2} parent=27 // pred_fallthru
        _
    $region28: #{rnn_model_forward.2} parent=5 // pred_fallthru
      _
    %p256 = scmp.le.s32.totalorder 1, %s13
    %p257 = scmp.lt.s32.totalorder %s13, 3
    %p258 = pnand %p256, %p257
    %p259 = pneg %p258
    // Predicated region
    $region33: #{rnn_model_forward.2} parent=5 // pred_check
      _
    $region34: #{rnn_model_forward.2} parent=5 // pred_check_branch
      %261 = sbr.rel (%p258) target = $region36
    $region35: #{rnn_model_forward.2} parent=5 // pred_region
      %s262 = ssub.s32 %s13, 1
      %s263 = smul.u32 4, %s23
      %p264 = scmp.lt.s32.totalorder %s263, 7
      %s265 = scalar_select %p264, %s263, 7
      %p266 = scmp.lt.s32.totalorder %s22, 0
      %s267 = scalar_select %p266, %s22, 0
      %s268 = smul.addr %s267, 4
      %s269 = smul.addr %s265, 4
      %s270 = sadd.s32 %s268, %s269
      %s271 = smul.addr %s270, 4
      %s272 = scalar_lea.vmem %s0, %s271
      %p273 = pneg %p53
      %p274 = pneg %p50
      %p275 = pneg %p74
      %p276 = pneg %p71
      %p277 = scmp.lt.s32.totalorder %s22, 0
      %s278 = scalar_select %p277, %s22, 0
      %s279 = smul.addr %s278, 4
      %s280 = scalar_lea.vmem %s2, %s279
      %p281 = pneg %p100
      %p282 = pneg %p97
      %p283 = scmp.lt.s32.totalorder %s22, 0
      %s284 = scalar_select %p283, %s22, 0
      %s285 = smul.addr %s284, 8
      %s286 = scalar_lea.vmem %s3, %s285
      %p287 = pneg %p126
      %p288 = pneg %p123
      %p289 = pneg %p154
      %p290 = pneg %p151
      %s291 = smul.u32 4, %s23
      %p292 = scmp.lt.s32.totalorder %s291, 7
      %s293 = scalar_select %p292, %s291, 7
      %p294 = scmp.lt.s32.totalorder %s22, 0
      %s295 = scalar_select %p294, %s22, 0
      %s296 = sadd.s32 %s295, %s293
      %s297 = smul.addr %s296, 4
      %s298 = scalar_lea.vmem %s4, %s297
      %p299 = pneg %p180
      %p300 = pneg %p177
      %p301 = scmp.lt.s32.totalorder %s22, 0
      %s302 = scalar_select %p301, %s22, 0
      %s303 = smul.addr %s302, 8
      %s304 = scalar_lea.vmem %s5, %s303
      %p305 = pneg %p206
      %p306 = pneg %p203
      %p307 = scmp.lt.s32.totalorder %s22, 0
      %s308 = scalar_select %p307, %s22, 0
      %s309 = smul.addr %s308, 8
      %s310 = scalar_lea.vmem %s6, %s309
      %s311 = smul.u32 4, %s23
      %p312 = scmp.lt.s32.totalorder %s311, 7
      %s313 = scalar_select %p312, %s311, 7
      %p314 = scmp.lt.s32.totalorder %s22, 0
      %s315 = scalar_select %p314, %s22, 0
      %s316 = smul.addr %s315, 4
      %s317 = smul.addr %s313, 4
      %s318 = sadd.s32 %s316, %s317
      %s319 = smul.addr %s318, 4
      %s320 = scalar_lea.vmem %s0, %s319
      %s321 = smul.u32 4, %s23
      %p322 = scmp.lt.s32.totalorder %s22, 0
      %s323 = scalar_select %p322, %s22, 0
      %s324 = smul.addr %s323, 4
      %s325 = scalar_lea.vmem %s2, %s324
      %p326 = scmp.lt.s32.totalorder %s22, 0
      %s327 = scalar_select %p326, %s22, 0
      %s328 = smul.addr %s327, 8
      %s329 = scalar_lea.vmem %s3, %s328
      %s330 = smul.u32 4, %s23
      %p331 = scmp.lt.s32.totalorder %s330, 7
      %s332 = scalar_select %p331, %s330, 7
      %p333 = scmp.lt.s32.totalorder %s22, 0
      %s334 = scalar_select %p333, %s22, 0
      %s335 = sadd.s32 %s334, %s332
      %s336 = smul.addr %s335, 4
      %s337 = scalar_lea.vmem %s4, %s336
      %s338 = smul.u32 4, %s23
      %p339 = scmp.lt.s32.totalorder %s22, 0
      %s340 = scalar_select %p339, %s22, 0
      %s341 = smul.addr %s340, 8
      %s342 = scalar_lea.vmem %s5, %s341
      %p343 = scmp.lt.s32.totalorder %s22, 0
      %s344 = scalar_select %p343, %s22, 0
      %s345 = smul.addr %s344, 8
      %s346 = scalar_lea.vmem %s6, %s345
      %p348 = scmp.eq.s32.totalorder %s23, 0
      // Predicated region
      $region37: #{rnn_model_forward.2} parent=35 // pred_check
        %p349 = pneg %p348
      $region38: #{rnn_model_forward.2} parent=35 // pred_check_branch
        %351 = sbr.rel (%p349) target = $region40
      $region39: #{rnn_model_forward.2} parent=35 // pred_region
        %v352 = vld [vmem:[%s325] sm:$0xf]
        %353 = vst [vmem:[#allocation2] sm:$0xf] %v352
        %v354 = vld [vmem:[%s329] sm:$0xff]
        %355 = vst [vmem:[#allocation3] sm:$0xff] %v354
      $region40: #{rnn_model_forward.2} parent=35 // pred_fallthru
        _
      %v356 = vld [vmem:[%s1] sm:$0xff]
      %v357 = vld [vmem:[%s1 + $0x8] sm:$0xff]
      %v358 = vld [vmem:[%s1 + $0x10] sm:$0xff]
      %v359 = vld [vmem:[%s1 + $0x18] sm:$0xff]
      %v360 = vld [vmem:[%s1 + $0x20] sm:$0xff]
      %v361 = vld [vmem:[%s1 + $0x28] sm:$0xff]
      %v362 = vld [vmem:[%s1 + $0x30] sm:$0xff]
      %v363 = vld [vmem:[%s1 + $0x38] sm:$0xff]
      %v364 = vld [vmem:[%s1 + $0x40] sm:$0xff]
      %v365 = vld [vmem:[%s1 + $0x48] sm:$0xff]
      %v366 = vld [vmem:[%s1 + $0x50] sm:$0xff]
      %v367 = vld [vmem:[%s1 + $0x58] sm:$0xff]
      %v368 = vld [vmem:[%s1 + $0x60] sm:$0xff]
      %v369 = vld [vmem:[%s1 + $0x68] sm:$0xff]
      %v370 = vld [vmem:[%s1 + $0x70] sm:$0xff]
      %v371 = vld [vmem:[%s1 + $0x78] sm:$0xff]
      %v372 = vld [vmem:[%s1 + $0x80] sm:$0xff]
      %v373 = vld [vmem:[%s1 + $0x88] sm:$0xff]
      %v374 = vld [vmem:[%s1 + $0x90] sm:$0xff]
      %v375 = vld [vmem:[%s1 + $0x98] sm:$0xff]
      %v376 = vld [vmem:[%s1 + $0xa0] sm:$0xff]
      %v377 = vld [vmem:[%s1 + $0xa8] sm:$0xff]
      %v378 = vld [vmem:[%s1 + $0xb0] sm:$0xff]
      %v379 = vld [vmem:[%s1 + $0xb8] sm:$0xff]
      %v380 = vld [vmem:[%s1 + $0xc0] sm:$0xff]
      %v381 = vld [vmem:[%s1 + $0xc8] sm:$0xff]
      %v382 = vld [vmem:[%s1 + $0xd0] sm:$0xff]
      %v383 = vld [vmem:[%s1 + $0xd8] sm:$0xff]
      %v384 = vld [vmem:[%s1 + $0xe0] sm:$0xff]
      %v385 = vld [vmem:[%s1 + $0xe8] sm:$0xff]
      %v386 = vld [vmem:[%s1 + $0xf0] sm:$0xff]
      %v387 = vld [vmem:[%s1 + $0xf8] sm:$0xff]
      %v388 = vld [vmem:[#allocation2] sm:$0xf]
      %v389 = vld [vmem:[#allocation3] sm:$0xff]
      %v390 = vld [vmem:[%s320] sm:$0xff]
      %v391 = vld [vmem:[%s320 + $0x8] sm:$0xff]
      %v392 = vunpack.c.l.bf16 %v390
      %v393 = vunpack.c.h.bf16 %v390
      %v394 = vunpack.c.l.bf16 %v391
      %v395 = vunpack.c.h.bf16 %v391
      %v428 = vunpack.c.l.b16 %v356
      %v429 = vunpack.c.h.b16 %v356
      %v430 = vunpack.c.l.b16 %v357
      %v431 = vunpack.c.h.b16 %v357
      %v432 = vunpack.c.l.b16 %v358
      %v433 = vunpack.c.h.b16 %v358
      %v434 = vunpack.c.l.b16 %v359
      %v435 = vunpack.c.h.b16 %v359
      %v436 = vunpack.c.l.b16 %v360
      %v437 = vunpack.c.h.b16 %v360
      %v438 = vunpack.c.l.b16 %v361
      %v439 = vunpack.c.h.b16 %v361
      %v440 = vunpack.c.l.b16 %v362
      %v441 = vunpack.c.h.b16 %v362
      %v442 = vunpack.c.l.b16 %v363
      %v443 = vunpack.c.h.b16 %v363
      %v444 = vunpack.c.l.b16 %v364
      %v445 = vunpack.c.h.b16 %v364
      %v446 = vunpack.c.l.b16 %v365
      %v447 = vunpack.c.h.b16 %v365
      %v448 = vunpack.c.l.b16 %v366
      %v449 = vunpack.c.h.b16 %v366
      %v450 = vunpack.c.l.b16 %v367
      %v451 = vunpack.c.h.b16 %v367
      %v452 = vunpack.c.l.b16 %v368
      %v453 = vunpack.c.h.b16 %v368
      %v454 = vunpack.c.l.b16 %v369
      %v455 = vunpack.c.h.b16 %v369
      %v456 = vunpack.c.l.b16 %v370
      %v457 = vunpack.c.h.b16 %v370
      %v458 = vunpack.c.l.b16 %v371
      %v459 = vunpack.c.h.b16 %v371
      %v460 = vunpack.c.l.b16 %v372
      %v461 = vunpack.c.h.b16 %v372
      %v462 = vunpack.c.l.b16 %v373
      %v463 = vunpack.c.h.b16 %v373
      %v464 = vunpack.c.l.b16 %v374
      %v465 = vunpack.c.h.b16 %v374
      %v466 = vunpack.c.l.b16 %v375
      %v467 = vunpack.c.h.b16 %v375
      %v468 = vunpack.c.l.b16 %v376
      %v469 = vunpack.c.h.b16 %v376
      %v470 = vunpack.c.l.b16 %v377
      %v471 = vunpack.c.h.b16 %v377
      %v472 = vunpack.c.l.b16 %v378
      %v473 = vunpack.c.h.b16 %v378
      %v474 = vunpack.c.l.b16 %v379
      %v475 = vunpack.c.h.b16 %v379
      %v476 = vunpack.c.l.b16 %v380
      %v477 = vunpack.c.h.b16 %v380
      %v478 = vunpack.c.l.b16 %v381
      %v479 = vunpack.c.h.b16 %v381
      %v480 = vunpack.c.l.b16 %v382
      %v481 = vunpack.c.h.b16 %v382
      %v482 = vunpack.c.l.b16 %v383
      %v483 = vunpack.c.h.b16 %v383
      %v484 = vunpack.c.l.b16 %v384
      %v485 = vunpack.c.h.b16 %v384
      %v486 = vunpack.c.l.b16 %v385
      %v487 = vunpack.c.h.b16 %v385
      %v488 = vunpack.c.l.b16 %v386
      %v489 = vunpack.c.h.b16 %v386
      %v490 = vunpack.c.l.b16 %v387
      %v491 = vunpack.c.h.b16 %v387
      %v492 = vpack.c.b16 %v432, %v428
      %v493 = vpack.c.b16 %v433, %v429
      %v494 = vpack.c.b16 %v434, %v430
      %v495 = vpack.c.b16 %v435, %v431
      %v496 = vpack.c.b16 %v440, %v436
      %v497 = vpack.c.b16 %v441, %v437
      %v498 = vpack.c.b16 %v442, %v438
      %v499 = vpack.c.b16 %v443, %v439
      %v500 = vpack.c.b16 %v448, %v444
      %v501 = vpack.c.b16 %v449, %v445
      %v502 = vpack.c.b16 %v450, %v446
      %v503 = vpack.c.b16 %v451, %v447
      %v504 = vpack.c.b16 %v456, %v452
      %v505 = vpack.c.b16 %v457, %v453
      %v506 = vpack.c.b16 %v458, %v454
      %v507 = vpack.c.b16 %v459, %v455
      %v508 = vpack.c.b16 %v464, %v460
      %v509 = vpack.c.b16 %v465, %v461
      %v510 = vpack.c.b16 %v466, %v462
      %v511 = vpack.c.b16 %v467, %v463
      %v512 = vpack.c.b16 %v472, %v468
      %v513 = vpack.c.b16 %v473, %v469
      %v514 = vpack.c.b16 %v474, %v470
      %v515 = vpack.c.b16 %v475, %v471
      %v516 = vpack.c.b16 %v480, %v476
      %v517 = vpack.c.b16 %v481, %v477
      %v518 = vpack.c.b16 %v482, %v478
      %v519 = vpack.c.b16 %v483, %v479
      %v520 = vpack.c.b16 %v488, %v484
      %v521 = vpack.c.b16 %v489, %v485
      %v522 = vpack.c.b16 %v490, %v486
      %v523 = vpack.c.b16 %v491, %v487
      %556 = vmatprep.subr.bf16.mxu0 %v493
      %557 = vmatpush1.bf16.msra.mxu0 %v492
      %558 = vmatprep.subr.bf16.mxu0 %v497
      %559 = vmatpush1.bf16.msra.mxu0 %v496
      %560 = vmatprep.subr.bf16.mxu0 %v501
      %561 = vmatpush1.bf16.msra.mxu0 %v500
      %562 = vmatprep.subr.bf16.mxu0 %v505
      %563 = vmatpush1.bf16.msra.mxu0 %v504
      %564 = vmatprep.subr.bf16.mxu0 %v509
      %565 = vmatpush1.bf16.msra.mxu0 %v508
      %566 = vmatprep.subr.bf16.mxu0 %v513
      %567 = vmatpush1.bf16.msra.mxu0 %v512
      %568 = vmatprep.subr.bf16.mxu0 %v517
      %569 = vmatpush1.bf16.msra.mxu0 %v516
      %570 = vmatprep.subr.bf16.mxu0 %v521
      %571 = vmatpush1.bf16.msra.mxu0 %v520
      %572 = vmatprep.subr.bf16.mxu0 0
      %573 = vmatpush1.bf16.msra.mxu0 0
      %574 = vmatprep.subr.bf16.mxu0 0
      %575 = vmatpush1.bf16.msra.mxu0 0
      %576 = vmatprep.subr.bf16.mxu0 0
      %577 = vmatpush1.bf16.msra.mxu0 0
      %578 = vmatprep.subr.bf16.mxu0 0
      %579 = vmatpush1.bf16.msra.mxu0 0
      %580 = vmatprep.subr.bf16.mxu0 0
      %581 = vmatpush1.bf16.msra.mxu0 0
      %582 = vmatprep.subr.bf16.mxu0 0
      %583 = vmatpush1.bf16.msra.mxu0 0
      %584 = vmatprep.subr.bf16.mxu0 0
      %585 = vmatpush1.bf16.msra.mxu0 0
      %586 = vmatprep.subr.bf16.mxu0 0
      %587 = vmatpush1.bf16.msra.mxu0 0
      %588 = vmatprep.mubr.bf16.mxu0 0
      %589 = vmatmul.mubr.bf16.gmra.mrb[0].mxu0 %v388
      %v590 = vpop.f32.mrb[0].mxu0
      %v591 = vadd.f32 0.0, %v590
      %v592 = vpop.f32.mrb[0].mxu0
      %v593 = vadd.f32 0.0, %v592
      %v594 = vpop.f32.mrb[0].mxu0
      %v595 = vpop.f32.mrb[0].mxu0
      %596 = vdwg.mxu0
      %597 = vmatprep.subr.bf16.mxu0 %v495
      %598 = vmatpush1.bf16.msra.mxu0 %v494
      %599 = vmatprep.subr.bf16.mxu0 %v499
      %600 = vmatpush1.bf16.msra.mxu0 %v498
      %601 = vmatprep.subr.bf16.mxu0 %v503
      %602 = vmatpush1.bf16.msra.mxu0 %v502
      %603 = vmatprep.subr.bf16.mxu0 %v507
      %604 = vmatpush1.bf16.msra.mxu0 %v506
      %605 = vmatprep.subr.bf16.mxu0 %v511
      %606 = vmatpush1.bf16.msra.mxu0 %v510
      %607 = vmatprep.subr.bf16.mxu0 %v515
      %608 = vmatpush1.bf16.msra.mxu0 %v514
      %609 = vmatprep.subr.bf16.mxu0 %v519
      %610 = vmatpush1.bf16.msra.mxu0 %v518
      %611 = vmatprep.subr.bf16.mxu0 %v523
      %612 = vmatpush1.bf16.msra.mxu0 %v522
      %613 = vmatprep.subr.bf16.mxu0 0
      %614 = vmatpush1.bf16.msra.mxu0 0
      %615 = vmatprep.subr.bf16.mxu0 0
      %616 = vmatpush1.bf16.msra.mxu0 0
      %617 = vmatprep.subr.bf16.mxu0 0
      %618 = vmatpush1.bf16.msra.mxu0 0
      %619 = vmatprep.subr.bf16.mxu0 0
      %620 = vmatpush1.bf16.msra.mxu0 0
      %621 = vmatprep.subr.bf16.mxu0 0
      %622 = vmatpush1.bf16.msra.mxu0 0
      %623 = vmatprep.subr.bf16.mxu0 0
      %624 = vmatpush1.bf16.msra.mxu0 0
      %625 = vmatprep.subr.bf16.mxu0 0
      %626 = vmatpush1.bf16.msra.mxu0 0
      %627 = vmatprep.subr.bf16.mxu0 0
      %628 = vmatpush1.bf16.msra.mxu0 0
      %629 = vmatprep.mubr.bf16.mxu0 0
      %630 = vmatmul.mubr.bf16.gmra.mrb[0].mxu0 %v388
      %v631 = vpop.f32.mrb[0].mxu0
      %v632 = vadd.f32 0.0, %v631
      %v633 = vpop.f32.mrb[0].mxu0
      %v634 = vadd.f32 0.0, %v633
      %v635 = vpop.f32.mrb[0].mxu0
      %v636 = vpop.f32.mrb[0].mxu0
      %637 = vdwg.mxu0
      %v638 = vadd.f32 %v392, %v591
      %v639 = vadd.f32 %v393, %v593
      %v640 = vadd.f32 %v394, %v632
      %v641 = vadd.f32 %v395, %v634
      %v642 = vmul.f32 %v638, 0.5
      %v643 = vtanh.pop %v642
      %v644 = vmul.f32 %v643, 0.5
      %v645 = vadd.f32 %v644, 0.5
      %v646 = vmul.f32 %v639, 0.5
      %v647 = vtanh.pop %v646
      %v648 = vmul.f32 %v647, 0.5
      %v649 = vadd.f32 %v648, 0.5
      %v650 = vtanh.pop %v640
      %v651 = vmul.f32 %v641, 0.5
      %v652 = vtanh.pop %v651
      %v653 = vmul.f32 %v652, 0.5
      %v654 = vadd.f32 %v653, 0.5
      %v655 = vmul.f32 %v649, %v389
      %v656 = vmul.f32 %v645, %v650
      %v657 = vadd.f32 %v655, %v656
      %v658 = vtanh.pop %v657
      %v659 = vmul.f32 %v654, %v658
      %v660 = vpack.c.bf16 %v659, %v659
      %661 = vst [vmem:[%s337] sm:$0xf] %v660
      %s662 = scalar_lea.vmem %s320, 16
      %v663 = vld [vmem:[%s662] sm:$0xff]
      %v664 = vld [vmem:[%s662 + $0x8] sm:$0xff]
      %v665 = vunpack.c.l.bf16 %v663
      %v666 = vunpack.c.h.bf16 %v663
      %v667 = vunpack.c.l.bf16 %v664
      %v668 = vunpack.c.h.bf16 %v664
      %669 = vmatprep.subr.bf16.mxu0 %v493
      %670 = vmatpush1.bf16.msra.mxu0 %v492
      %671 = vmatprep.subr.bf16.mxu0 %v497
      %672 = vmatpush1.bf16.msra.mxu0 %v496
      %673 = vmatprep.subr.bf16.mxu0 %v501
      %674 = vmatpush1.bf16.msra.mxu0 %v500
      %675 = vmatprep.subr.bf16.mxu0 %v505
      %676 = vmatpush1.bf16.msra.mxu0 %v504
      %677 = vmatprep.subr.bf16.mxu0 %v509
      %678 = vmatpush1.bf16.msra.mxu0 %v508
      %679 = vmatprep.subr.bf16.mxu0 %v513
      %680 = vmatpush1.bf16.msra.mxu0 %v512
      %681 = vmatprep.subr.bf16.mxu0 %v517
      %682 = vmatpush1.bf16.msra.mxu0 %v516
      %683 = vmatprep.subr.bf16.mxu0 %v521
      %684 = vmatpush1.bf16.msra.mxu0 %v520
      %685 = vmatprep.subr.bf16.mxu0 0
      %686 = vmatpush1.bf16.msra.mxu0 0
      %687 = vmatprep.subr.bf16.mxu0 0
      %688 = vmatpush1.bf16.msra.mxu0 0
      %689 = vmatprep.subr.bf16.mxu0 0
      %690 = vmatpush1.bf16.msra.mxu0 0
      %691 = vmatprep.subr.bf16.mxu0 0
      %692 = vmatpush1.bf16.msra.mxu0 0
      %693 = vmatprep.subr.bf16.mxu0 0
      %694 = vmatpush1.bf16.msra.mxu0 0
      %695 = vmatprep.subr.bf16.mxu0 0
      %696 = vmatpush1.bf16.msra.mxu0 0
      %697 = vmatprep.subr.bf16.mxu0 0
      %698 = vmatpush1.bf16.msra.mxu0 0
      %699 = vmatprep.subr.bf16.mxu0 0
      %700 = vmatpush1.bf16.msra.mxu0 0
      %701 = vmatprep.mubr.bf16.mxu0 0
      %702 = vmatmul.mubr.bf16.gmra.mrb[0].mxu0 %v660
      %v703 = vpop.f32.mrb[0].mxu0
      %v704 = vadd.f32 0.0, %v703
      %v705 = vpop.f32.mrb[0].mxu0
      %v706 = vadd.f32 0.0, %v705
      %v707 = vpop.f32.mrb[0].mxu0
      %v708 = vpop.f32.mrb[0].mxu0
      %709 = vdwg.mxu0
      %710 = vmatprep.subr.bf16.mxu0 %v495
      %711 = vmatpush1.bf16.msra.mxu0 %v494
      %712 = vmatprep.subr.bf16.mxu0 %v499
      %713 = vmatpush1.bf16.msra.mxu0 %v498
      %714 = vmatprep.subr.bf16.mxu0 %v503
      %715 = vmatpush1.bf16.msra.mxu0 %v502
      %716 = vmatprep.subr.bf16.mxu0 %v507
      %717 = vmatpush1.bf16.msra.mxu0 %v506
      %718 = vmatprep.subr.bf16.mxu0 %v511
      %719 = vmatpush1.bf16.msra.mxu0 %v510
      %720 = vmatprep.subr.bf16.mxu0 %v515
      %721 = vmatpush1.bf16.msra.mxu0 %v514
      %722 = vmatprep.subr.bf16.mxu0 %v519
      %723 = vmatpush1.bf16.msra.mxu0 %v518
      %724 = vmatprep.subr.bf16.mxu0 %v523
      %725 = vmatpush1.bf16.msra.mxu0 %v522
      %726 = vmatprep.subr.bf16.mxu0 0
      %727 = vmatpush1.bf16.msra.mxu0 0
      %728 = vmatprep.subr.bf16.mxu0 0
      %729 = vmatpush1.bf16.msra.mxu0 0
      %730 = vmatprep.subr.bf16.mxu0 0
      %731 = vmatpush1.bf16.msra.mxu0 0
      %732 = vmatprep.subr.bf16.mxu0 0
      %733 = vmatpush1.bf16.msra.mxu0 0
      %734 = vmatprep.subr.bf16.mxu0 0
      %735 = vmatpush1.bf16.msra.mxu0 0
      %736 = vmatprep.subr.bf16.mxu0 0
      %737 = vmatpush1.bf16.msra.mxu0 0
      %738 = vmatprep.subr.bf16.mxu0 0
      %739 = vmatpush1.bf16.msra.mxu0 0
      %740 = vmatprep.subr.bf16.mxu0 0
      %741 = vmatpush1.bf16.msra.mxu0 0
      %742 = vmatprep.mubr.bf16.mxu0 0
      %743 = vmatmul.mubr.bf16.gmra.mrb[0].mxu0 %v660
      %v744 = vpop.f32.mrb[0].mxu0
      %v745 = vadd.f32 0.0, %v744
      %v746 = vpop.f32.mrb[0].mxu0
      %v747 = vadd.f32 0.0, %v746
      %v748 = vpop.f32.mrb[0].mxu0
      %v749 = vpop.f32.mrb[0].mxu0
      %750 = vdwg.mxu0
      %v751 = vadd.f32 %v665, %v704
      %v752 = vadd.f32 %v666, %v706
      %v753 = vadd.f32 %v667, %v745
      %v754 = vadd.f32 %v668, %v747
      %v755 = vmul.f32 %v751, 0.5
      %v756 = vtanh.pop %v755
      %v757 = vmul.f32 %v756, 0.5
      %v758 = vadd.f32 %v757, 0.5
      %v759 = vmul.f32 %v752, 0.5
      %v760 = vtanh.pop %v759
      %v761 = vmul.f32 %v760, 0.5
      %v762 = vadd.f32 %v761, 0.5
      %v763 = vtanh.pop %v753
      %v764 = vmul.f32 %v754, 0.5
      %v765 = vtanh.pop %v764
      %v766 = vmul.f32 %v765, 0.5
      %v767 = vadd.f32 %v766, 0.5
      %v768 = vmul.f32 %v762, %v657
      %v769 = vmul.f32 %v758, %v763
      %v770 = vadd.f32 %v768, %v769
      %v771 = vtanh.pop %v770
      %v772 = vmul.f32 %v767, %v771
      %v773 = vpack.c.bf16 %v772, %v772
      %s774 = scalar_lea.vmem %s337, 4
      %775 = vst [vmem:[%s774] sm:$0xf] %v773
      %s776 = scalar_lea.vmem %s320, 32
      %v777 = vld [vmem:[%s776] sm:$0xff]
      %v778 = vld [vmem:[%s776 + $0x8] sm:$0xff]
      %v779 = vunpack.c.l.bf16 %v777
      %v780 = vunpack.c.h.bf16 %v777
      %v781 = vunpack.c.l.bf16 %v778
      %v782 = vunpack.c.h.bf16 %v778
      %783 = vmatprep.subr.bf16.mxu0 %v493
      %784 = vmatpush1.bf16.msra.mxu0 %v492
      %785 = vmatprep.subr.bf16.mxu0 %v497
      %786 = vmatpush1.bf16.msra.mxu0 %v496
      %787 = vmatprep.subr.bf16.mxu0 %v501
      %788 = vmatpush1.bf16.msra.mxu0 %v500
      %789 = vmatprep.subr.bf16.mxu0 %v505
      %790 = vmatpush1.bf16.msra.mxu0 %v504
      %791 = vmatprep.subr.bf16.mxu0 %v509
      %792 = vmatpush1.bf16.msra.mxu0 %v508
      %793 = vmatprep.subr.bf16.mxu0 %v513
      %794 = vmatpush1.bf16.msra.mxu0 %v512
      %795 = vmatprep.subr.bf16.mxu0 %v517
      %796 = vmatpush1.bf16.msra.mxu0 %v516
      %797 = vmatprep.subr.bf16.mxu0 %v521
      %798 = vmatpush1.bf16.msra.mxu0 %v520
      %799 = vmatprep.subr.bf16.mxu0 0
      %800 = vmatpush1.bf16.msra.mxu0 0
      %801 = vmatprep.subr.bf16.mxu0 0
      %802 = vmatpush1.bf16.msra.mxu0 0
      %803 = vmatprep.subr.bf16.mxu0 0
      %804 = vmatpush1.bf16.msra.mxu0 0
      %805 = vmatprep.subr.bf16.mxu0 0
      %806 = vmatpush1.bf16.msra.mxu0 0
      %807 = vmatprep.subr.bf16.mxu0 0
      %808 = vmatpush1.bf16.msra.mxu0 0
      %809 = vmatprep.subr.bf16.mxu0 0
      %810 = vmatpush1.bf16.msra.mxu0 0
      %811 = vmatprep.subr.bf16.mxu0 0
      %812 = vmatpush1.bf16.msra.mxu0 0
      %813 = vmatprep.subr.bf16.mxu0 0
      %814 = vmatpush1.bf16.msra.mxu0 0
      %815 = vmatprep.mubr.bf16.mxu0 0
      %816 = vmatmul.mubr.bf16.gmra.mrb[0].mxu0 %v773
      %v817 = vpop.f32.mrb[0].mxu0
      %v818 = vadd.f32 0.0, %v817
      %v819 = vpop.f32.mrb[0].mxu0
      %v820 = vadd.f32 0.0, %v819
      %v821 = vpop.f32.mrb[0].mxu0
      %v822 = vpop.f32.mrb[0].mxu0
      %823 = vdwg.mxu0
      %824 = vmatprep.subr.bf16.mxu0 %v495
      %825 = vmatpush1.bf16.msra.mxu0 %v494
      %826 = vmatprep.subr.bf16.mxu0 %v499
      %827 = vmatpush1.bf16.msra.mxu0 %v498
      %828 = vmatprep.subr.bf16.mxu0 %v503
      %829 = vmatpush1.bf16.msra.mxu0 %v502
      %830 = vmatprep.subr.bf16.mxu0 %v507
      %831 = vmatpush1.bf16.msra.mxu0 %v506
      %832 = vmatprep.subr.bf16.mxu0 %v511
      %833 = vmatpush1.bf16.msra.mxu0 %v510
      %834 = vmatprep.subr.bf16.mxu0 %v515
      %835 = vmatpush1.bf16.msra.mxu0 %v514
      %836 = vmatprep.subr.bf16.mxu0 %v519
      %837 = vmatpush1.bf16.msra.mxu0 %v518
      %838 = vmatprep.subr.bf16.mxu0 %v523
      %839 = vmatpush1.bf16.msra.mxu0 %v522
      %840 = vmatprep.subr.bf16.mxu0 0
      %841 = vmatpush1.bf16.msra.mxu0 0
      %842 = vmatprep.subr.bf16.mxu0 0
      %843 = vmatpush1.bf16.msra.mxu0 0
      %844 = vmatprep.subr.bf16.mxu0 0
      %845 = vmatpush1.bf16.msra.mxu0 0
      %846 = vmatprep.subr.bf16.mxu0 0
      %847 = vmatpush1.bf16.msra.mxu0 0
      %848 = vmatprep.subr.bf16.mxu0 0
      %849 = vmatpush1.bf16.msra.mxu0 0
      %850 = vmatprep.subr.bf16.mxu0 0
      %851 = vmatpush1.bf16.msra.mxu0 0
      %852 = vmatprep.subr.bf16.mxu0 0
      %853 = vmatpush1.bf16.msra.mxu0 0
      %854 = vmatprep.subr.bf16.mxu0 0
      %855 = vmatpush1.bf16.msra.mxu0 0
      %856 = vmatprep.mubr.bf16.mxu0 0
      %857 = vmatmul.mubr.bf16.gmra.mrb[0].mxu0 %v773
      %v858 = vpop.f32.mrb[0].mxu0
      %v859 = vadd.f32 0.0, %v858
      %v860 = vpop.f32.mrb[0].mxu0
      %v861 = vadd.f32 0.0, %v860
      %v862 = vpop.f32.mrb[0].mxu0
      %v863 = vpop.f32.mrb[0].mxu0
      %864 = vdwg.mxu0
      %v865 = vadd.f32 %v779, %v818
      %v866 = vadd.f32 %v780, %v820
      %v867 = vadd.f32 %v781, %v859
      %v868 = vadd.f32 %v782, %v861
      %v869 = vmul.f32 %v865, 0.5
      %v870 = vtanh.pop %v869
      %v871 = vmul.f32 %v870, 0.5
      %v872 = vadd.f32 %v871, 0.5
      %v873 = vmul.f32 %v866, 0.5
      %v874 = vtanh.pop %v873
      %v875 = vmul.f32 %v874, 0.5
      %v876 = vadd.f32 %v875, 0.5
      %v877 = vtanh.pop %v867
      %v878 = vmul.f32 %v868, 0.5
      %v879 = vtanh.pop %v878
      %v880 = vmul.f32 %v879, 0.5
      %v881 = vadd.f32 %v880, 0.5
      %v882 = vmul.f32 %v876, %v770
      %v883 = vmul.f32 %v872, %v877
      %v884 = vadd.f32 %v882, %v883
      %v885 = vtanh.pop %v884
      %v886 = vmul.f32 %v881, %v885
      %v887 = vpack.c.bf16 %v886, %v886
      %s888 = scalar_lea.vmem %s337, 8
      %889 = vst [vmem:[%s888] sm:$0xf] %v887
      %s890 = scalar_lea.vmem %s320, 48
      %v891 = vld [vmem:[%s890] sm:$0xff]
      %v892 = vld [vmem:[%s890 + $0x8] sm:$0xff]
      %v893 = vunpack.c.l.bf16 %v891
      %v894 = vunpack.c.h.bf16 %v891
      %v895 = vunpack.c.l.bf16 %v892
      %v896 = vunpack.c.h.bf16 %v892
      %897 = vmatprep.subr.bf16.mxu0 %v493
      %898 = vmatpush1.bf16.msra.mxu0 %v492
      %899 = vmatprep.subr.bf16.mxu0 %v497
      %900 = vmatpush1.bf16.msra.mxu0 %v496
      %901 = vmatprep.subr.bf16.mxu0 %v501
      %902 = vmatpush1.bf16.msra.mxu0 %v500
      %903 = vmatprep.subr.bf16.mxu0 %v505
      %904 = vmatpush1.bf16.msra.mxu0 %v504
      %905 = vmatprep.subr.bf16.mxu0 %v509
      %906 = vmatpush1.bf16.msra.mxu0 %v508
      %907 = vmatprep.subr.bf16.mxu0 %v513
      %908 = vmatpush1.bf16.msra.mxu0 %v512
      %909 = vmatprep.subr.bf16.mxu0 %v517
      %910 = vmatpush1.bf16.msra.mxu0 %v516
      %911 = vmatprep.subr.bf16.mxu0 %v521
      %912 = vmatpush1.bf16.msra.mxu0 %v520
      %913 = vmatprep.subr.bf16.mxu0 0
      %914 = vmatpush1.bf16.msra.mxu0 0
      %915 = vmatprep.subr.bf16.mxu0 0
      %916 = vmatpush1.bf16.msra.mxu0 0
      %917 = vmatprep.subr.bf16.mxu0 0
      %918 = vmatpush1.bf16.msra.mxu0 0
      %919 = vmatprep.subr.bf16.mxu0 0
      %920 = vmatpush1.bf16.msra.mxu0 0
      %921 = vmatprep.subr.bf16.mxu0 0
      %922 = vmatpush1.bf16.msra.mxu0 0
      %923 = vmatprep.subr.bf16.mxu0 0
      %924 = vmatpush1.bf16.msra.mxu0 0
      %925 = vmatprep.subr.bf16.mxu0 0
      %926 = vmatpush1.bf16.msra.mxu0 0
      %927 = vmatprep.subr.bf16.mxu0 0
      %928 = vmatpush1.bf16.msra.mxu0 0
      %929 = vmatprep.mubr.bf16.mxu0 0
      %930 = vmatmul.mubr.bf16.gmra.mrb[0].mxu0 %v887
      %v931 = vpop.f32.mrb[0].mxu0
      %v932 = vadd.f32 0.0, %v931
      %v933 = vpop.f32.mrb[0].mxu0
      %v934 = vadd.f32 0.0, %v933
      %v935 = vpop.f32.mrb[0].mxu0
      %v936 = vpop.f32.mrb[0].mxu0
      %937 = vdwg.mxu0
      %938 = vmatprep.subr.bf16.mxu0 %v495
      %939 = vmatpush1.bf16.msra.mxu0 %v494
      %940 = vmatprep.subr.bf16.mxu0 %v499
      %941 = vmatpush1.bf16.msra.mxu0 %v498
      %942 = vmatprep.subr.bf16.mxu0 %v503
      %943 = vmatpush1.bf16.msra.mxu0 %v502
      %944 = vmatprep.subr.bf16.mxu0 %v507
      %945 = vmatpush1.bf16.msra.mxu0 %v506
      %946 = vmatprep.subr.bf16.mxu0 %v511
      %947 = vmatpush1.bf16.msra.mxu0 %v510
      %948 = vmatprep.subr.bf16.mxu0 %v515
      %949 = vmatpush1.bf16.msra.mxu0 %v514
      %950 = vmatprep.subr.bf16.mxu0 %v519
      %951 = vmatpush1.bf16.msra.mxu0 %v518
      %952 = vmatprep.subr.bf16.mxu0 %v523
      %953 = vmatpush1.bf16.msra.mxu0 %v522
      %954 = vmatprep.subr.bf16.mxu0 0
      %955 = vmatpush1.bf16.msra.mxu0 0
      %956 = vmatprep.subr.bf16.mxu0 0
      %957 = vmatpush1.bf16.msra.mxu0 0
      %958 = vmatprep.subr.bf16.mxu0 0
      %959 = vmatpush1.bf16.msra.mxu0 0
      %960 = vmatprep.subr.bf16.mxu0 0
      %961 = vmatpush1.bf16.msra.mxu0 0
      %962 = vmatprep.subr.bf16.mxu0 0
      %963 = vmatpush1.bf16.msra.mxu0 0
      %964 = vmatprep.subr.bf16.mxu0 0
      %965 = vmatpush1.bf16.msra.mxu0 0
      %966 = vmatprep.subr.bf16.mxu0 0
      %967 = vmatpush1.bf16.msra.mxu0 0
      %968 = vmatprep.subr.bf16.mxu0 0
      %969 = vmatpush1.bf16.msra.mxu0 0
      %970 = vmatprep.mubr.bf16.mxu0 0
      %971 = vmatmul.mubr.bf16.gmra.mrb[0].mxu0 %v887
      %v972 = vpop.f32.mrb[0].mxu0
      %v973 = vadd.f32 0.0, %v972
      %v974 = vpop.f32.mrb[0].mxu0
      %v975 = vadd.f32 0.0, %v974
      %v976 = vpop.f32.mrb[0].mxu0
      %v977 = vpop.f32.mrb[0].mxu0
      %978 = vdwg.mxu0
      %v979 = vadd.f32 %v893, %v932
      %v980 = vadd.f32 %v894, %v934
      %v981 = vadd.f32 %v895, %v973
      %v982 = vadd.f32 %v896, %v975
      %v983 = vmul.f32 %v979, 0.5
      %v984 = vtanh.pop %v983
      %v985 = vmul.f32 %v984, 0.5
      %v986 = vadd.f32 %v985, 0.5
      %v987 = vmul.f32 %v980, 0.5
      %v988 = vtanh.pop %v987
      %v989 = vmul.f32 %v988, 0.5
      %v990 = vadd.f32 %v989, 0.5
      %v991 = vtanh.pop %v981
      %v992 = vmul.f32 %v982, 0.5
      %v993 = vtanh.pop %v992
      %v994 = vmul.f32 %v993, 0.5
      %v995 = vadd.f32 %v994, 0.5
      %v996 = vmul.f32 %v990, %v884
      %v997 = vmul.f32 %v986, %v991
      %v998 = vadd.f32 %v996, %v997
      %v999 = vtanh.pop %v998
      %v1000 = vmul.f32 %v995, %v999
      %v1001 = vpack.c.bf16 %v1000, %v1000
      %s1002 = scalar_lea.vmem %s337, 12
      %1003 = vst [vmem:[%s1002] sm:$0xf] %v1001
      %1004 = vst [vmem:[#allocation2] sm:$0xf] %v1001
      %1005 = vst [vmem:[#allocation3] sm:$0xff] %v998
      %p1006 = scmp.eq.s32.totalorder %s23, 1
      // Predicated region
      $region41: #{rnn_model_forward.2} parent=35 // pred_check
        %p1007 = pneg %p1006
      $region42: #{rnn_model_forward.2} parent=35 // pred_check_branch
        %1009 = sbr.rel (%p1007) target = $region44
      $region43: #{rnn_model_forward.2} parent=35 // pred_region
        %v1010 = vunpack.c.l.bf16 %v1001
        %1011 = vst [vmem:[%s342] sm:$0xff] %v1010
        %1012 = vst [vmem:[%s346] sm:$0xff] %v998
      $region44: #{rnn_model_forward.2} parent=35 // pred_fallthru
        _
      %s1013 = smul.u32 4, %s23
      %p1014 = scmp.lt.s32.totalorder %s1013, 7
      %s1015 = scalar_select %p1014, %s1013, 7
      %p1016 = scmp.lt.s32.totalorder %s22, 0
      %s1017 = scalar_select %p1016, %s22, 0
      %s1018 = sadd.s32 %s1017, %s1015
      %s1019 = smul.addr %s1018, 4
      %s1020 = scalar_lea.vmem %s4, %s1019
      %p1021 = scmp.lt.s32.totalorder %s22, 0
      %s1022 = scalar_select %p1021, %s22, 0
      %s1023 = smul.addr %s1022, 8
      %s1024 = scalar_lea.vmem %s5, %s1023
      %p1025 = scmp.lt.s32.totalorder %s22, 0
      %s1026 = scalar_select %p1025, %s22, 0
      %s1027 = smul.addr %s1026, 8
      %s1028 = scalar_lea.vmem %s6, %s1027
      // Predicated region
      $region45: #{rnn_model_forward.2} parent=35 // pred_check
        %p1029 = pneg %p151
      $region46: #{rnn_model_forward.2} parent=35 // pred_check_branch
        %1031 = sbr.rel (%p1029) target = $region48
      $region47: #{rnn_model_forward.2} parent=35 // pred_region
        %s1032 = smul.u32 4, %s23
      $region48: #{rnn_model_forward.2} parent=35 // pred_fallthru
        _
      // Predicated region
      $region49: #{rnn_model_forward.2} parent=35 // pred_check
        %p1033 = pneg %p177
      $region50: #{rnn_model_forward.2} parent=35 // pred_check_branch
        %1035 = sbr.rel (%p1033) target = $region52
      $region51: #{rnn_model_forward.2} parent=35 // pred_region
        _
      $region52: #{rnn_model_forward.2} parent=35 // pred_fallthru
        _
      // Predicated region
      $region53: #{rnn_model_forward.2} parent=35 // pred_check
        %p1036 = pneg %p203
      $region54: #{rnn_model_forward.2} parent=35 // pred_check_branch
        %1038 = sbr.rel (%p1036) target = $region56
      $region55: #{rnn_model_forward.2} parent=35 // pred_region
        _
      $region56: #{rnn_model_forward.2} parent=35 // pred_fallthru
        _
      // Predicated region
      $region57: #{rnn_model_forward.2} parent=35 // pred_check
        %p1039 = pneg %p177
      $region58: #{rnn_model_forward.2} parent=35 // pred_check_branch
        %1041 = sbr.rel (%p1039) target = $region60
      $region59: #{rnn_model_forward.2} parent=35 // pred_region
        %p1042 = scmp.lt.s32.totalorder %s22, 0
        %s1043 = scalar_select %p1042, %s22, 0
        %s1044 = smul.addr %s1043, 8
        %s1045 = scalar_lea.vmem %s5, %s1044
      $region60: #{rnn_model_forward.2} parent=35 // pred_fallthru
        _
      // Predicated region
      $region61: #{rnn_model_forward.2} parent=35 // pred_check
        %p1046 = pneg %p203
      $region62: #{rnn_model_forward.2} parent=35 // pred_check_branch
        %1048 = sbr.rel (%p1046) target = $region64
      $region63: #{rnn_model_forward.2} parent=35 // pred_region
        %p1049 = scmp.lt.s32.totalorder %s22, 0
        %s1050 = scalar_select %p1049, %s22, 0
        %s1051 = smul.addr %s1050, 8
        %s1052 = scalar_lea.vmem %s6, %s1051
      $region64: #{rnn_model_forward.2} parent=35 // pred_fallthru
        _
    $region36: #{rnn_model_forward.2} parent=5 // pred_fallthru
      _
    %p1053 = scmp.le.s32.totalorder 2, %s13
    // Predicated region
    $region65: #{rnn_model_forward.2} parent=5 // pred_check
      %p1054 = pneg %p1053
    $region66: #{rnn_model_forward.2} parent=5 // pred_check_branch
      %1056 = sbr.rel (%p1054) target = $region68
    $region67: #{rnn_model_forward.2} parent=5 // pred_region
      %s1057 = ssub.s32 %s13, 2
      // Predicated region
      $region69: #{rnn_model_forward.2} parent=67 // pred_check
        %p1058 = pneg %p157
      $region70: #{rnn_model_forward.2} parent=67 // pred_check_branch
        %1060 = sbr.rel (%p1058) target = $region72
      $region71: #{rnn_model_forward.2} parent=67 // pred_region
        %s1061 = smul.u32 4, %s25
        %p1062 = scmp.lt.s32.totalorder %s1061, 7
        %s1063 = scalar_select %p1062, %s1061, 7
        %p1064 = scmp.lt.s32.totalorder %s24, 0
        %s1065 = scalar_select %p1064, %s24, 0
        %s1066 = sadd.s32 %s1065, %s1063
        %s1067 = smul.addr %s1066, 4
        %s1068 = scalar_lea.vmem %s4, %s1067
      $region72: #{rnn_model_forward.2} parent=67 // pred_fallthru
        _
    $region68: #{rnn_model_forward.2} parent=5 // pred_fallthru
      _
  $region6: #{rnn_model_forward.2} parent=0 // loop_footer
    %s17 = sadd.s32 1, %s13
  $region7: #{rnn_model_forward.2} parent=0 // loop_footer_branch
    %12 = sbr.rel target = $region3
  $region8: #{rnn_model_forward.2} parent=0 // loop_exit
    _

// kernel: rnn_model_forward.3
$region0: #{rnn_model_forward.3}
  #allocation0 [shape = 'u32[]', space=smem, size = 0x4, offset = 0x4, fixed_abs, tag = 'smem constant byte address 0x4 - core index']
  #allocation1 [shape = 'u32[144,128]{1,0:T(1,128)}', space=vmem, size = 0x12000, scoped, tag = 'internal scratch']
  #allocation2 [shape = 'bf16[8,128]{1,0:T(8,128)(2,1)}', space=vmem, size = 0x800, scoped, tag = 'scratch operand']
  #allocation3 [shape = 'f32[8,128]{1,0:T(8,128)}', space=vmem, size = 0x1000, scoped, tag = 'scratch operand']
  %s0 = inlined_call_operand.vmem [shape: bf16[8,8,512], index: 0, kind: input, shape index: {}]
  %s1 = inlined_call_operand.vmem [shape: bf16[128,512], index: 1, kind: input, shape index: {}]
  %s2 = inlined_call_operand.vmem [shape: bf16[8,128], index: 2, kind: input, shape index: {}]
  %s3 = inlined_call_operand.vmem [shape: f32[8,128], index: 3, kind: input, shape index: {}]
  %s4 = inlined_call_operand.vmem [shape: f32[8,8,128], index: 4, kind: output, shape index: {0}]
  %s5 = inlined_call_operand.vmem [shape: f32[8,128], index: 5, kind: output, shape index: {1}]
  %s6 = inlined_call_operand.vmem [shape: f32[8,128], index: 6, kind: output, shape index: {2}]
  %7 = xla_tuple %s4, %s5, %s6
  %s8 = sld [smem:[#allocation0]]
  $region73: #{rnn_model_forward.3} parent=0
    _
  %s10 = ssub.s32 1, %s8
  %s11 = scalar_select 0, %s10, %s8
  loop: start=0, step=1, limit=4
  $region2: #{rnn_model_forward.3} parent=0 // loop_pre_header
    _
  $region3: #{rnn_model_forward.3} parent=0 // loop_header
    %s13 = sphi 0, %s17
    %p14 = scmp.ge.s32.totalorder %s13, 4
    %s20 = sphi 0, %s32
    %s21 = sphi 0, %s28
    %s22 = sphi 0, %s20
    %s23 = sphi 0, %s21
    %s24 = sphi 0, %s22
    %s25 = sphi 0, %s23
    %s37 = sphi 0, %s39
    %s40 = sphi 0, %s37
    %s41 = sphi 0, %s40
    %s57 = sphi 0, %s41
    %s61 = sphi 0, %s61
    %s63 = sphi 0, %s61
    %s64 = sphi 0, %s63
    %s78 = sphi 0, %s64
    %s84 = sphi 0, %s86
    %s87 = sphi 0, %s84
    %s88 = sphi 0, %s87
    %s104 = sphi 0, %s88
    %s110 = sphi 0, %s112
    %s113 = sphi 0, %s110
    %s114 = sphi 0, %s113
    %s130 = sphi 0, %s114
    %s138 = sphi 0, %s140
    %s141 = sphi 0, %s138
    %s142 = sphi 0, %s141
    %s158 = sphi 0, %s142
    %s164 = sphi 0, %s166
    %s167 = sphi 0, %s164
    %s168 = sphi 0, %s167
    %s184 = sphi 0, %s168
    %s190 = sphi 0, %s192
    %s193 = sphi 0, %s190
    %s194 = sphi 0, %s193
    %s210 = sphi 0, %s194
  $region4: #{rnn_model_forward.3} parent=0 // loop_header_branch
    %16 = sbr.rel (%p14) target = $region8
  $region5: #{rnn_model_forward.3} parent=0 // loop_body
    %s18 = ssub.s32 %s13, 1
    %s19 = ssub.s32 %s13, 2
    %s26 = sadd.s32 1, %s21
    %p27 = scmp.ge.s32.totalorder %s26, 2
    %s28 = scalar_select %p27, 0, %s26
    %s29 = sadd.s32 1, %s20
    %s30 = scalar_select %p27, %s29, %s20
    %p31 = scmp.ge.s32.totalorder %s30, 1
    %s32 = scalar_select %p31, 0, %s30
    %s33 = ssub.s32 %s21, %s28
    %s34 = ssub.s32 %s20, %s32
    %s35 = sor.u32 %s33, %s34
    %p36 = scmp.eq.s32.totalorder %s35, 0
    %s38 = sadd.s32 %s37, 1
    %s39 = scalar_select %p36, %s37, %s38
    %p42 = pneg %p36
    %p43 = scmp.eq.s32.totalorder %s13, 1
    %p44 = por %p42, %p43
    %p45 = scmp.ne.s32.totalorder %s37, %s40
    %p46 = scmp.eq.s32.totalorder %s13, 0
    %p47 = por %p45, %p46
    %p48 = scmp.ne.s32.totalorder %s37, %s40
    %p49 = scmp.eq.s32.totalorder %s18, 1
    %p50 = por %p48, %p49
    %p51 = scmp.ne.s32.totalorder %s40, %s41
    %p52 = scmp.eq.s32.totalorder %s18, 0
    %p53 = por %p51, %p52
    %p54 = scmp.ne.s32.totalorder %s40, %s41
    %p55 = scmp.eq.s32.totalorder %s19, 1
    %p56 = por %p54, %p55
    %p58 = scmp.ne.s32.totalorder %s41, %s57
    %p59 = scmp.eq.s32.totalorder %s19, 0
    %p60 = por %p58, %p59
    %s62 = sadd.s32 %s61, 1
    %p65 = scmp.eq.s32.totalorder %s13, 1
    %p66 = scmp.ne.s32.totalorder %s61, %s63
    %p67 = scmp.eq.s32.totalorder %s13, 0
    %p68 = por %p66, %p67
    %p69 = scmp.ne.s32.totalorder %s61, %s63
    %p70 = scmp.eq.s32.totalorder %s18, 1
    %p71 = por %p69, %p70
    %p72 = scmp.ne.s32.totalorder %s63, %s64
    %p73 = scmp.eq.s32.totalorder %s18, 0
    %p74 = por %p72, %p73
    %p75 = scmp.ne.s32.totalorder %s63, %s64
    %p76 = scmp.eq.s32.totalorder %s19, 1
    %p77 = por %p75, %p76
    %p79 = scmp.ne.s32.totalorder %s64, %s78
    %p80 = scmp.eq.s32.totalorder %s19, 0
    %p81 = por %p79, %p80
    %s82 = ssub.s32 %s20, %s32
    %p83 = scmp.eq.s32.totalorder %s82, 0
    %s85 = sadd.s32 %s84, 1
    %s86 = scalar_select %p83, %s84, %s85
    %p89 = pneg %p83
    %p90 = scmp.eq.s32.totalorder %s13, 1
    %p91 = por %p89, %p90
    %p92 = scmp.ne.s32.totalorder %s84, %s87
    %p93 = scmp.eq.s32.totalorder %s13, 0
    %p94 = por %p92, %p93
    %p95 = scmp.ne.s32.totalorder %s84, %s87
    %p96 = scmp.eq.s32.totalorder %s18, 1
    %p97 = por %p95, %p96
    %p98 = scmp.ne.s32.totalorder %s87, %s88
    %p99 = scmp.eq.s32.totalorder %s18, 0
    %p100 = por %p98, %p99
    %p101 = scmp.ne.s32.totalorder %s87, %s88
    %p102 = scmp.eq.s32.totalorder %s19, 1
    %p103 = por %p101, %p102
    %p105 = scmp.ne.s32.totalorder %s88, %s104
    %p106 = scmp.eq.s32.totalorder %s19, 0
    %p107 = por %p105, %p106
    %s108 = ssub.s32 %s20, %s32
    %p109 = scmp.eq.s32.totalorder %s108, 0
    %s111 = sadd.s32 %s110, 1
    %s112 = scalar_select %p109, %s110, %s111
    %p115 = pneg %p109
    %p116 = scmp.eq.s32.totalorder %s13, 1
    %p117 = por %p115, %p116
    %p118 = scmp.ne.s32.totalorder %s110, %s113
    %p119 = scmp.eq.s32.totalorder %s13, 0
    %p120 = por %p118, %p119
    %p121 = scmp.ne.s32.totalorder %s110, %s113
    %p122 = scmp.eq.s32.totalorder %s18, 1
    %p123 = por %p121, %p122
    %p124 = scmp.ne.s32.totalorder %s113, %s114
    %p125 = scmp.eq.s32.totalorder %s18, 0
    %p126 = por %p124, %p125
    %p127 = scmp.ne.s32.totalorder %s113, %s114
    %p128 = scmp.eq.s32.totalorder %s19, 1
    %p129 = por %p127, %p128
    %p131 = scmp.ne.s32.totalorder %s114, %s130
    %p132 = scmp.eq.s32.totalorder %s19, 0
    %p133 = por %p131, %p132
    %s134 = ssub.s32 %s21, %s28
    %s135 = ssub.s32 %s20, %s32
    %s136 = sor.u32 %s134, %s135
    %p137 = scmp.eq.s32.totalorder %s136, 0
    %s139 = sadd.s32 %s138, 1
    %s140 = scalar_select %p137, %s138, %s139
    %p143 = pneg %p137
    %p144 = scmp.eq.s32.totalorder %s13, 1
    %p145 = por %p143, %p144
    %p146 = scmp.ne.s32.totalorder %s138, %s141
    %p147 = scmp.eq.s32.totalorder %s13, 0
    %p148 = por %p146, %p147
    %p149 = scmp.ne.s32.totalorder %s138, %s141
    %p150 = scmp.eq.s32.totalorder %s18, 1
    %p151 = por %p149, %p150
    %p152 = scmp.ne.s32.totalorder %s141, %s142
    %p153 = scmp.eq.s32.totalorder %s18, 0
    %p154 = por %p152, %p153
    %p155 = scmp.ne.s32.totalorder %s141, %s142
    %p156 = scmp.eq.s32.totalorder %s19, 1
    %p157 = por %p155, %p156
    %p159 = scmp.ne.s32.totalorder %s142, %s158
    %p160 = scmp.eq.s32.totalorder %s19, 0
    %p161 = por %p159, %p160
    %s162 = ssub.s32 %s20, %s32
    %p163 = scmp.eq.s32.totalorder %s162, 0
    %s165 = sadd.s32 %s164, 1
    %s166 = scalar_select %p163, %s164, %s165
    %p169 = pneg %p163
    %p170 = scmp.eq.s32.totalorder %s13, 1
    %p171 = por %p169, %p170
    %p172 = scmp.ne.s32.totalorder %s164, %s167
    %p173 = scmp.eq.s32.totalorder %s13, 0
    %p174 = por %p172, %p173
    %p175 = scmp.ne.s32.totalorder %s164, %s167
    %p176 = scmp.eq.s32.totalorder %s18, 1
    %p177 = por %p175, %p176
    %p178 = scmp.ne.s32.totalorder %s167, %s168
    %p179 = scmp.eq.s32.totalorder %s18, 0
    %p180 = por %p178, %p179
    %p181 = scmp.ne.s32.totalorder %s167, %s168
    %p182 = scmp.eq.s32.totalorder %s19, 1
    %p183 = por %p181, %p182
    %p185 = scmp.ne.s32.totalorder %s168, %s184
    %p186 = scmp.eq.s32.totalorder %s19, 0
    %p187 = por %p185, %p186
    %s188 = ssub.s32 %s20, %s32
    %p189 = scmp.eq.s32.totalorder %s188, 0
    %s191 = sadd.s32 %s190, 1
    %s192 = scalar_select %p189, %s190, %s191
    %p195 = pneg %p189
    %p196 = scmp.eq.s32.totalorder %s13, 1
    %p197 = por %p195, %p196
    %p198 = scmp.ne.s32.totalorder %s190, %s193
    %p199 = scmp.eq.s32.totalorder %s13, 0
    %p200 = por %p198, %p199
    %p201 = scmp.ne.s32.totalorder %s190, %s193
    %p202 = scmp.eq.s32.totalorder %s18, 1
    %p203 = por %p201, %p202
    %p204 = scmp.ne.s32.totalorder %s193, %s194
    %p205 = scmp.eq.s32.totalorder %s18, 0
    %p206 = por %p204, %p205
    %p207 = scmp.ne.s32.totalorder %s193, %s194
    %p208 = scmp.eq.s32.totalorder %s19, 1
    %p209 = por %p207, %p208
    %p211 = scmp.ne.s32.totalorder %s194, %s210
    %p212 = scmp.eq.s32.totalorder %s19, 0
    %p213 = por %p211, %p212
    %p214 = scmp.le.s32.totalorder 1, %s13
    %p215 = scmp.lt.s32.totalorder %s13, 3
    %p216 = pnand %p214, %p215
    %p217 = pneg %p216
    // Predicated region
    $region9: #{rnn_model_forward.3} parent=5 // pred_check
      _
    $region10: #{rnn_model_forward.3} parent=5 // pred_check_branch
      %219 = sbr.rel (%p216) target = $region12
    $region11: #{rnn_model_forward.3} parent=5 // pred_region
      %s220 = ssub.s32 %s13, 1
      // Predicated region
      $region13: #{rnn_model_forward.3} parent=11 // pred_check
        %p221 = pneg %p74
      $region14: #{rnn_model_forward.3} parent=11 // pred_check_branch
        %223 = sbr.rel (%p221) target = $region16
      $region15: #{rnn_model_forward.3} parent=11 // pred_region
        _
      $region16: #{rnn_model_forward.3} parent=11 // pred_fallthru
        _
      // Predicated region
      $region17: #{rnn_model_forward.3} parent=11 // pred_check
        %p224 = pneg %p100
      $region18: #{rnn_model_forward.3} parent=11 // pred_check_branch
        %226 = sbr.rel (%p224) target = $region20
      $region19: #{rnn_model_forward.3} parent=11 // pred_region
        %p227 = scmp.lt.s32.totalorder %s22, 0
        %s228 = scalar_select %p227, %s22, 0
        %s229 = smul.addr %s228, 4
        %s230 = scalar_lea.vmem %s2, %s229
      $region20: #{rnn_model_forward.3} parent=11 // pred_fallthru
        _
      // Predicated region
      $region21: #{rnn_model_forward.3} parent=11 // pred_check
        %p231 = pneg %p126
      $region22: #{rnn_model_forward.3} parent=11 // pred_check_branch
        %233 = sbr.rel (%p231) target = $region24
      $region23: #{rnn_model_forward.3} parent=11 // pred_region
        %p234 = scmp.lt.s32.totalorder %s22, 0
        %s235 = scalar_select %p234, %s22, 0
        %s236 = smul.addr %s235, 8
        %s237 = scalar_lea.vmem %s3, %s236
      $region24: #{rnn_model_forward.3} parent=11 // pred_fallthru
        _
    $region12: #{rnn_model_forward.3} parent=5 // pred_fallthru
      _
    %p238 = scmp.lt.s32.totalorder %s13, 2
    // Predicated region
    $region25: #{rnn_model_forward.3} parent=5 // pred_check
      %p239 = pneg %p238
    $region26: #{rnn_model_forward.3} parent=5 // pred_check_branch
      %241 = sbr.rel (%p239) target = $region28
    $region27: #{rnn_model_forward.3} parent=5 // pred_region
      // Predicated region
      $region29: #{rnn_model_forward.3} parent=27 // pred_check
        %p242 = pneg %p47
      $region30: #{rnn_model_forward.3} parent=27 // pred_check_branch
        %244 = sbr.rel (%p242) target = $region32
      $region31: #{rnn_model_forward.3} parent=27 // pred_region
        %s245 = smul.u32 4, %s21
        %p246 = scmp.lt.s32.totalorder %s245, 7
        %s247 = scalar_select %p246, %s245, 7
        %p248 = scmp.lt.s32.totalorder %s20, 0
        %s249 = scalar_select %p248, %s20, 0
        %s250 = smul.addr %s249, 4
        %s251 = smul.addr %s247, 4
        %s252 = sadd.s32 %s250, %s251
        %s253 = smul.addr %s252, 4
        %s254 = scalar_lea.vmem %s0, %s253
        %s255 = smul.u32 4, %s21
      $region32: #{rnn_model_forward.3} parent=27 // pred_fallthru
        _
    $region28: #{rnn_model_forward.3} parent=5 // pred_fallthru
      _
    %p256 = scmp.le.s32.totalorder 1, %s13
    %p257 = scmp.lt.s32.totalorder %s13, 3
    %p258 = pnand %p256, %p257
    %p259 = pneg %p258
    // Predicated region
    $region33: #{rnn_model_forward.3} parent=5 // pred_check
      _
    $region34: #{rnn_model_forward.3} parent=5 // pred_check_branch
      %261 = sbr.rel (%p258) target = $region36
    $region35: #{rnn_model_forward.3} parent=5 // pred_region
      %s262 = ssub.s32 %s13, 1
      %s263 = smul.u32 4, %s23
      %p264 = scmp.lt.s32.totalorder %s263, 7
      %s265 = scalar_select %p264, %s263, 7
      %p266 = scmp.lt.s32.totalorder %s22, 0
      %s267 = scalar_select %p266, %s22, 0
      %s268 = smul.addr %s267, 4
      %s269 = smul.addr %s265, 4
      %s270 = sadd.s32 %s268, %s269
      %s271 = smul.addr %s270, 4
      %s272 = scalar_lea.vmem %s0, %s271
      %p273 = pneg %p53
      %p274 = pneg %p50
      %p275 = pneg %p74
      %p276 = pneg %p71
      %p277 = scmp.lt.s32.totalorder %s22, 0
      %s278 = scalar_select %p277, %s22, 0
      %s279 = smul.addr %s278, 4
      %s280 = scalar_lea.vmem %s2, %s279
      %p281 = pneg %p100
      %p282 = pneg %p97
      %p283 = scmp.lt.s32.totalorder %s22, 0
      %s284 = scalar_select %p283, %s22, 0
      %s285 = smul.addr %s284, 8
      %s286 = scalar_lea.vmem %s3, %s285
      %p287 = pneg %p126
      %p288 = pneg %p123
      %p289 = pneg %p154
      %p290 = pneg %p151
      %s291 = smul.u32 4, %s23
      %p292 = scmp.lt.s32.totalorder %s291, 7
      %s293 = scalar_select %p292, %s291, 7
      %p294 = scmp.lt.s32.totalorder %s22, 0
      %s295 = scalar_select %p294, %s22, 0
      %s296 = sadd.s32 %s295, %s293
      %s297 = smul.addr %s296, 8
      %s298 = scalar_lea.vmem %s4, %s297
      %p299 = pneg %p180
      %p300 = pneg %p177
      %p301 = scmp.lt.s32.totalorder %s22, 0
      %s302 = scalar_select %p301, %s22, 0
      %s303 = smul.addr %s302, 8
      %s304 = scalar_lea.vmem %s5, %s303
      %p305 = pneg %p206
      %p306 = pneg %p203
      %p307 = scmp.lt.s32.totalorder %s22, 0
      %s308 = scalar_select %p307, %s22, 0
      %s309 = smul.addr %s308, 8
      %s310 = scalar_lea.vmem %s6, %s309
      %s311 = smul.u32 4, %s23
      %p312 = scmp.lt.s32.totalorder %s311, 7
      %s313 = scalar_select %p312, %s311, 7
      %p314 = scmp.lt.s32.totalorder %s22, 0
      %s315 = scalar_select %p314, %s22, 0
      %s316 = smul.addr %s315, 4
      %s317 = smul.addr %s313, 4
      %s318 = sadd.s32 %s316, %s317
      %s319 = smul.addr %s318, 4
      %s320 = scalar_lea.vmem %s0, %s319
      %s321 = smul.u32 4, %s23
      %p322 = scmp.lt.s32.totalorder %s22, 0
      %s323 = scalar_select %p322, %s22, 0
      %s324 = smul.addr %s323, 4
      %s325 = scalar_lea.vmem %s2, %s324
      %p326 = scmp.lt.s32.totalorder %s22, 0
      %s327 = scalar_select %p326, %s22, 0
      %s328 = smul.addr %s327, 8
      %s329 = scalar_lea.vmem %s3, %s328
      %s330 = smul.u32 4, %s23
      %p331 = scmp.lt.s32.totalorder %s330, 7
      %s332 = scalar_select %p331, %s330, 7
      %p333 = scmp.lt.s32.totalorder %s22, 0
      %s334 = scalar_select %p333, %s22, 0
      %s335 = sadd.s32 %s334, %s332
      %s336 = smul.addr %s335, 8
      %s337 = scalar_lea.vmem %s4, %s336
      %s338 = smul.u32 4, %s23
      %p339 = scmp.lt.s32.totalorder %s22, 0
      %s340 = scalar_select %p339, %s22, 0
      %s341 = smul.addr %s340, 8
      %s342 = scalar_lea.vmem %s5, %s341
      %p343 = scmp.lt.s32.totalorder %s22, 0
      %s344 = scalar_select %p343, %s22, 0
      %s345 = smul.addr %s344, 8
      %s346 = scalar_lea.vmem %s6, %s345
      %p348 = scmp.eq.s32.totalorder %s23, 0
      // Predicated region
      $region37: #{rnn_model_forward.3} parent=35 // pred_check
        %p349 = pneg %p348
      $region38: #{rnn_model_forward.3} parent=35 // pred_check_branch
        %351 = sbr.rel (%p349) target = $region40
      $region39: #{rnn_model_forward.3} parent=35 // pred_region
        %v352 = vld [vmem:[%s325] sm:$0xf]
        %353 = vst [vmem:[#allocation2] sm:$0xf] %v352
        %v354 = vld [vmem:[%s329] sm:$0xff]
        %355 = vst [vmem:[#allocation3] sm:$0xff] %v354
      $region40: #{rnn_model_forward.3} parent=35 // pred_fallthru
        _
      %v356 = vld [vmem:[%s1] sm:$0xff]
      %v357 = vld [vmem:[%s1 + $0x8] sm:$0xff]
      %v358 = vld [vmem:[%s1 + $0x10] sm:$0xff]
      %v359 = vld [vmem:[%s1 + $0x18] sm:$0xff]
      %v360 = vld [vmem:[%s1 + $0x20] sm:$0xff]
      %v361 = vld [vmem:[%s1 + $0x28] sm:$0xff]
      %v362 = vld [vmem:[%s1 + $0x30] sm:$0xff]
      %v363 = vld [vmem:[%s1 + $0x38] sm:$0xff]
      %v364 = vld [vmem:[%s1 + $0x40] sm:$0xff]
      %v365 = vld [vmem:[%s1 + $0x48] sm:$0xff]
      %v366 = vld [vmem:[%s1 + $0x50] sm:$0xff]
      %v367 = vld [vmem:[%s1 + $0x58] sm:$0xff]
      %v368 = vld [vmem:[%s1 + $0x60] sm:$0xff]
      %v369 = vld [vmem:[%s1 + $0x68] sm:$0xff]
      %v370 = vld [vmem:[%s1 + $0x70] sm:$0xff]
      %v371 = vld [vmem:[%s1 + $0x78] sm:$0xff]
      %v372 = vld [vmem:[%s1 + $0x80] sm:$0xff]
      %v373 = vld [vmem:[%s1 + $0x88] sm:$0xff]
      %v374 = vld [vmem:[%s1 + $0x90] sm:$0xff]
      %v375 = vld [vmem:[%s1 + $0x98] sm:$0xff]
      %v376 = vld [vmem:[%s1 + $0xa0] sm:$0xff]
      %v377 = vld [vmem:[%s1 + $0xa8] sm:$0xff]
      %v378 = vld [vmem:[%s1 + $0xb0] sm:$0xff]
      %v379 = vld [vmem:[%s1 + $0xb8] sm:$0xff]
      %v380 = vld [vmem:[%s1 + $0xc0] sm:$0xff]
      %v381 = vld [vmem:[%s1 + $0xc8] sm:$0xff]
      %v382 = vld [vmem:[%s1 + $0xd0] sm:$0xff]
      %v383 = vld [vmem:[%s1 + $0xd8] sm:$0xff]
      %v384 = vld [vmem:[%s1 + $0xe0] sm:$0xff]
      %v385 = vld [vmem:[%s1 + $0xe8] sm:$0xff]
      %v386 = vld [vmem:[%s1 + $0xf0] sm:$0xff]
      %v387 = vld [vmem:[%s1 + $0xf8] sm:$0xff]
      %v388 = vld [vmem:[#allocation2] sm:$0xf]
      %v389 = vld [vmem:[#allocation3] sm:$0xff]
      %v390 = vld [vmem:[%s320] sm:$0xff]
      %v391 = vld [vmem:[%s320 + $0x8] sm:$0xff]
      %v392 = vunpack.c.l.bf16 %v390
      %v393 = vunpack.c.h.bf16 %v390
      %v394 = vunpack.c.l.bf16 %v391
      %v395 = vunpack.c.h.bf16 %v391
      %v428 = vunpack.c.l.b16 %v356
      %v429 = vunpack.c.h.b16 %v356
      %v430 = vunpack.c.l.b16 %v357
      %v431 = vunpack.c.h.b16 %v357
      %v432 = vunpack.c.l.b16 %v358
      %v433 = vunpack.c.h.b16 %v358
      %v434 = vunpack.c.l.b16 %v359
      %v435 = vunpack.c.h.b16 %v359
      %v436 = vunpack.c.l.b16 %v360
      %v437 = vunpack.c.h.b16 %v360
      %v438 = vunpack.c.l.b16 %v361
      %v439 = vunpack.c.h.b16 %v361
      %v440 = vunpack.c.l.b16 %v362
      %v441 = vunpack.c.h.b16 %v362
      %v442 = vunpack.c.l.b16 %v363
      %v443 = vunpack.c.h.b16 %v363
      %v444 = vunpack.c.l.b16 %v364
      %v445 = vunpack.c.h.b16 %v364
      %v446 = vunpack.c.l.b16 %v365
      %v447 = vunpack.c.h.b16 %v365
      %v448 = vunpack.c.l.b16 %v366
      %v449 = vunpack.c.h.b16 %v366
      %v450 = vunpack.c.l.b16 %v367
      %v451 = vunpack.c.h.b16 %v367
      %v452 = vunpack.c.l.b16 %v368
      %v453 = vunpack.c.h.b16 %v368
      %v454 = vunpack.c.l.b16 %v369
      %v455 = vunpack.c.h.b16 %v369
      %v456 = vunpack.c.l.b16 %v370
      %v457 = vunpack.c.h.b16 %v370
      %v458 = vunpack.c.l.b16 %v371
      %v459 = vunpack.c.h.b16 %v371
      %v460 = vunpack.c.l.b16 %v372
      %v461 = vunpack.c.h.b16 %v372
      %v462 = vunpack.c.l.b16 %v373
      %v463 = vunpack.c.h.b16 %v373
      %v464 = vunpack.c.l.b16 %v374
      %v465 = vunpack.c.h.b16 %v374
      %v466 = vunpack.c.l.b16 %v375
      %v467 = vunpack.c.h.b16 %v375
      %v468 = vunpack.c.l.b16 %v376
      %v469 = vunpack.c.h.b16 %v376
      %v470 = vunpack.c.l.b16 %v377
      %v471 = vunpack.c.h.b16 %v377
      %v472 = vunpack.c.l.b16 %v378
      %v473 = vunpack.c.h.b16 %v378
      %v474 = vunpack.c.l.b16 %v379
      %v475 = vunpack.c.h.b16 %v379
      %v476 = vunpack.c.l.b16 %v380
      %v477 = vunpack.c.h.b16 %v380
      %v478 = vunpack.c.l.b16 %v381
      %v479 = vunpack.c.h.b16 %v381
      %v480 = vunpack.c.l.b16 %v382
      %v481 = vunpack.c.h.b16 %v382
      %v482 = vunpack.c.l.b16 %v383
      %v483 = vunpack.c.h.b16 %v383
      %v484 = vunpack.c.l.b16 %v384
      %v485 = vunpack.c.h.b16 %v384
      %v486 = vunpack.c.l.b16 %v385
      %v487 = vunpack.c.h.b16 %v385
      %v488 = vunpack.c.l.b16 %v386
      %v489 = vunpack.c.h.b16 %v386
      %v490 = vunpack.c.l.b16 %v387
      %v491 = vunpack.c.h.b16 %v387
      %v492 = vpack.c.b16 %v432, %v428
      %v493 = vpack.c.b16 %v433, %v429
      %v494 = vpack.c.b16 %v434, %v430
      %v495 = vpack.c.b16 %v435, %v431
      %v496 = vpack.c.b16 %v440, %v436
      %v497 = vpack.c.b16 %v441, %v437
      %v498 = vpack.c.b16 %v442, %v438
      %v499 = vpack.c.b16 %v443, %v439
      %v500 = vpack.c.b16 %v448, %v444
      %v501 = vpack.c.b16 %v449, %v445
      %v502 = vpack.c.b16 %v450, %v446
      %v503 = vpack.c.b16 %v451, %v447
      %v504 = vpack.c.b16 %v456, %v452
      %v505 = vpack.c.b16 %v457, %v453
      %v506 = vpack.c.b16 %v458, %v454
      %v507 = vpack.c.b16 %v459, %v455
      %v508 = vpack.c.b16 %v464, %v460
      %v509 = vpack.c.b16 %v465, %v461
      %v510 = vpack.c.b16 %v466, %v462
      %v511 = vpack.c.b16 %v467, %v463
      %v512 = vpack.c.b16 %v472, %v468
      %v513 = vpack.c.b16 %v473, %v469
      %v514 = vpack.c.b16 %v474, %v470
      %v515 = vpack.c.b16 %v475, %v471
      %v516 = vpack.c.b16 %v480, %v476
      %v517 = vpack.c.b16 %v481, %v477
      %v518 = vpack.c.b16 %v482, %v478
      %v519 = vpack.c.b16 %v483, %v479
      %v520 = vpack.c.b16 %v488, %v484
      %v521 = vpack.c.b16 %v489, %v485
      %v522 = vpack.c.b16 %v490, %v486
      %v523 = vpack.c.b16 %v491, %v487
      %556 = vmatprep.subr.bf16.mxu0 %v493
      %557 = vmatpush1.bf16.msra.mxu0 %v492
      %558 = vmatprep.subr.bf16.mxu0 %v497
      %559 = vmatpush1.bf16.msra.mxu0 %v496
      %560 = vmatprep.subr.bf16.mxu0 %v501
      %561 = vmatpush1.bf16.msra.mxu0 %v500
      %562 = vmatprep.subr.bf16.mxu0 %v505
      %563 = vmatpush1.bf16.msra.mxu0 %v504
      %564 = vmatprep.subr.bf16.mxu0 %v509
      %565 = vmatpush1.bf16.msra.mxu0 %v508
      %566 = vmatprep.subr.bf16.mxu0 %v513
      %567 = vmatpush1.bf16.msra.mxu0 %v512
      %568 = vmatprep.subr.bf16.mxu0 %v517
      %569 = vmatpush1.bf16.msra.mxu0 %v516
      %570 = vmatprep.subr.bf16.mxu0 %v521
      %571 = vmatpush1.bf16.msra.mxu0 %v520
      %572 = vmatprep.subr.bf16.mxu0 0
      %573 = vmatpush1.bf16.msra.mxu0 0
      %574 = vmatprep.subr.bf16.mxu0 0
      %575 = vmatpush1.bf16.msra.mxu0 0
      %576 = vmatprep.subr.bf16.mxu0 0
      %577 = vmatpush1.bf16.msra.mxu0 0
      %578 = vmatprep.subr.bf16.mxu0 0
      %579 = vmatpush1.bf16.msra.mxu0 0
      %580 = vmatprep.subr.bf16.mxu0 0
      %581 = vmatpush1.bf16.msra.mxu0 0
      %582 = vmatprep.subr.bf16.mxu0 0
      %583 = vmatpush1.bf16.msra.mxu0 0
      %584 = vmatprep.subr.bf16.mxu0 0
      %585 = vmatpush1.bf16.msra.mxu0 0
      %586 = vmatprep.subr.bf16.mxu0 0
      %587 = vmatpush1.bf16.msra.mxu0 0
      %588 = vmatprep.mubr.bf16.mxu0 0
      %589 = vmatmul.mubr.bf16.gmra.mrb[0].mxu0 %v388
      %v590 = vpop.f32.mrb[0].mxu0
      %v591 = vadd.f32 0.0, %v590
      %v592 = vpop.f32.mrb[0].mxu0
      %v593 = vadd.f32 0.0, %v592
      %v594 = vpop.f32.mrb[0].mxu0
      %v595 = vpop.f32.mrb[0].mxu0
      %596 = vdwg.mxu0
      %597 = vmatprep.subr.bf16.mxu0 %v495
      %598 = vmatpush1.bf16.msra.mxu0 %v494
      %599 = vmatprep.subr.bf16.mxu0 %v499
      %600 = vmatpush1.bf16.msra.mxu0 %v498
      %601 = vmatprep.subr.bf16.mxu0 %v503
      %602 = vmatpush1.bf16.msra.mxu0 %v502
      %603 = vmatprep.subr.bf16.mxu0 %v507
      %604 = vmatpush1.bf16.msra.mxu0 %v506
      %605 = vmatprep.subr.bf16.mxu0 %v511
      %606 = vmatpush1.bf16.msra.mxu0 %v510
      %607 = vmatprep.subr.bf16.mxu0 %v515
      %608 = vmatpush1.bf16.msra.mxu0 %v514
      %609 = vmatprep.subr.bf16.mxu0 %v519
      %610 = vmatpush1.bf16.msra.mxu0 %v518
      %611 = vmatprep.subr.bf16.mxu0 %v523
      %612 = vmatpush1.bf16.msra.mxu0 %v522
      %613 = vmatprep.subr.bf16.mxu0 0
      %614 = vmatpush1.bf16.msra.mxu0 0
      %615 = vmatprep.subr.bf16.mxu0 0
      %616 = vmatpush1.bf16.msra.mxu0 0
      %617 = vmatprep.subr.bf16.mxu0 0
      %618 = vmatpush1.bf16.msra.mxu0 0
      %619 = vmatprep.subr.bf16.mxu0 0
      %620 = vmatpush1.bf16.msra.mxu0 0
      %621 = vmatprep.subr.bf16.mxu0 0
      %622 = vmatpush1.bf16.msra.mxu0 0
      %623 = vmatprep.subr.bf16.mxu0 0
      %624 = vmatpush1.bf16.msra.mxu0 0
      %625 = vmatprep.subr.bf16.mxu0 0
      %626 = vmatpush1.bf16.msra.mxu0 0
      %627 = vmatprep.subr.bf16.mxu0 0
      %628 = vmatpush1.bf16.msra.mxu0 0
      %629 = vmatprep.mubr.bf16.mxu0 0
      %630 = vmatmul.mubr.bf16.gmra.mrb[0].mxu0 %v388
      %v631 = vpop.f32.mrb[0].mxu0
      %v632 = vadd.f32 0.0, %v631
      %v633 = vpop.f32.mrb[0].mxu0
      %v634 = vadd.f32 0.0, %v633
      %v635 = vpop.f32.mrb[0].mxu0
      %v636 = vpop.f32.mrb[0].mxu0
      %637 = vdwg.mxu0
      %v638 = vadd.f32 %v392, %v591
      %v639 = vadd.f32 %v393, %v593
      %v640 = vadd.f32 %v394, %v632
      %v641 = vadd.f32 %v395, %v634
      %v642 = vmul.f32 %v638, 0.5
      %v643 = vtanh.pop %v642
      %v644 = vmul.f32 %v643, 0.5
      %v645 = vadd.f32 %v644, 0.5
      %v646 = vmul.f32 %v639, 0.5
      %v647 = vtanh.pop %v646
      %v648 = vmul.f32 %v647, 0.5
      %v649 = vadd.f32 %v648, 0.5
      %v650 = vtanh.pop %v640
      %v651 = vmul.f32 %v641, 0.5
      %v652 = vtanh.pop %v651
      %v653 = vmul.f32 %v652, 0.5
      %v654 = vadd.f32 %v653, 0.5
      %v655 = vmul.f32 %v649, %v389
      %v656 = vmul.f32 %v645, %v650
      %v657 = vadd.f32 %v655, %v656
      %v658 = vtanh.pop %v657
      %v659 = vmul.f32 %v654, %v658
      %v660 = vpack.c.bf16 %v659, %v659
      %661 = vst [vmem:[%s337] sm:$0xff] %v659
      %s662 = scalar_lea.vmem %s320, 16
      %v663 = vld [vmem:[%s662] sm:$0xff]
      %v664 = vld [vmem:[%s662 + $0x8] sm:$0xff]
      %v665 = vunpack.c.l.bf16 %v663
      %v666 = vunpack.c.h.bf16 %v663
      %v667 = vunpack.c.l.bf16 %v664
      %v668 = vunpack.c.h.bf16 %v664
      %669 = vmatprep.subr.bf16.mxu0 %v493
      %670 = vmatpush1.bf16.msra.mxu0 %v492
      %671 = vmatprep.subr.bf16.mxu0 %v497
      %672 = vmatpush1.bf16.msra.mxu0 %v496
      %673 = vmatprep.subr.bf16.mxu0 %v501
      %674 = vmatpush1.bf16.msra.mxu0 %v500
      %675 = vmatprep.subr.bf16.mxu0 %v505
      %676 = vmatpush1.bf16.msra.mxu0 %v504
      %677 = vmatprep.subr.bf16.mxu0 %v509
      %678 = vmatpush1.bf16.msra.mxu0 %v508
      %679 = vmatprep.subr.bf16.mxu0 %v513
      %680 = vmatpush1.bf16.msra.mxu0 %v512
      %681 = vmatprep.subr.bf16.mxu0 %v517
      %682 = vmatpush1.bf16.msra.mxu0 %v516
      %683 = vmatprep.subr.bf16.mxu0 %v521
      %684 = vmatpush1.bf16.msra.mxu0 %v520
      %685 = vmatprep.subr.bf16.mxu0 0
      %686 = vmatpush1.bf16.msra.mxu0 0
      %687 = vmatprep.subr.bf16.mxu0 0
      %688 = vmatpush1.bf16.msra.mxu0 0
      %689 = vmatprep.subr.bf16.mxu0 0
      %690 = vmatpush1.bf16.msra.mxu0 0
      %691 = vmatprep.subr.bf16.mxu0 0
      %692 = vmatpush1.bf16.msra.mxu0 0
      %693 = vmatprep.subr.bf16.mxu0 0
      %694 = vmatpush1.bf16.msra.mxu0 0
      %695 = vmatprep.subr.bf16.mxu0 0
      %696 = vmatpush1.bf16.msra.mxu0 0
      %697 = vmatprep.subr.bf16.mxu0 0
      %698 = vmatpush1.bf16.msra.mxu0 0
      %699 = vmatprep.subr.bf16.mxu0 0
      %700 = vmatpush1.bf16.msra.mxu0 0
      %701 = vmatprep.mubr.bf16.mxu0 0
      %702 = vmatmul.mubr.bf16.gmra.mrb[0].mxu0 %v660
      %v703 = vpop.f32.mrb[0].mxu0
      %v704 = vadd.f32 0.0, %v703
      %v705 = vpop.f32.mrb[0].mxu0
      %v706 = vadd.f32 0.0, %v705
      %v707 = vpop.f32.mrb[0].mxu0
      %v708 = vpop.f32.mrb[0].mxu0
      %709 = vdwg.mxu0
      %710 = vmatprep.subr.bf16.mxu0 %v495
      %711 = vmatpush1.bf16.msra.mxu0 %v494
      %712 = vmatprep.subr.bf16.mxu0 %v499
      %713 = vmatpush1.bf16.msra.mxu0 %v498
      %714 = vmatprep.subr.bf16.mxu0 %v503
      %715 = vmatpush1.bf16.msra.mxu0 %v502
      %716 = vmatprep.subr.bf16.mxu0 %v507
      %717 = vmatpush1.bf16.msra.mxu0 %v506
      %718 = vmatprep.subr.bf16.mxu0 %v511
      %719 = vmatpush1.bf16.msra.mxu0 %v510
      %720 = vmatprep.subr.bf16.mxu0 %v515
      %721 = vmatpush1.bf16.msra.mxu0 %v514
      %722 = vmatprep.subr.bf16.mxu0 %v519
      %723 = vmatpush1.bf16.msra.mxu0 %v518
      %724 = vmatprep.subr.bf16.mxu0 %v523
      %725 = vmatpush1.bf16.msra.mxu0 %v522
      %726 = vmatprep.subr.bf16.mxu0 0
      %727 = vmatpush1.bf16.msra.mxu0 0
      %728 = vmatprep.subr.bf16.mxu0 0
      %729 = vmatpush1.bf16.msra.mxu0 0
      %730 = vmatprep.subr.bf16.mxu0 0
      %731 = vmatpush1.bf16.msra.mxu0 0
      %732 = vmatprep.subr.bf16.mxu0 0
      %733 = vmatpush1.bf16.msra.mxu0 0
      %734 = vmatprep.subr.bf16.mxu0 0
      %735 = vmatpush1.bf16.msra.mxu0 0
      %736 = vmatprep.subr.bf16.mxu0 0
      %737 = vmatpush1.bf16.msra.mxu0 0
      %738 = vmatprep.subr.bf16.mxu0 0
      %739 = vmatpush1.bf16.msra.mxu0 0
      %740 = vmatprep.subr.bf16.mxu0 0
      %741 = vmatpush1.bf16.msra.mxu0 0
      %742 = vmatprep.mubr.bf16.mxu0 0
      %743 = vmatmul.mubr.bf16.gmra.mrb[0].mxu0 %v660
      %v744 = vpop.f32.mrb[0].mxu0
      %v745 = vadd.f32 0.0, %v744
      %v746 = vpop.f32.mrb[0].mxu0
      %v747 = vadd.f32 0.0, %v746
      %v748 = vpop.f32.mrb[0].mxu0
      %v749 = vpop.f32.mrb[0].mxu0
      %750 = vdwg.mxu0
      %v751 = vadd.f32 %v665, %v704
      %v752 = vadd.f32 %v666, %v706
      %v753 = vadd.f32 %v667, %v745
      %v754 = vadd.f32 %v668, %v747
      %v755 = vmul.f32 %v751, 0.5
      %v756 = vtanh.pop %v755
      %v757 = vmul.f32 %v756, 0.5
      %v758 = vadd.f32 %v757, 0.5
      %v759 = vmul.f32 %v752, 0.5
      %v760 = vtanh.pop %v759
      %v761 = vmul.f32 %v760, 0.5
      %v762 = vadd.f32 %v761, 0.5
      %v763 = vtanh.pop %v753
      %v764 = vmul.f32 %v754, 0.5
      %v765 = vtanh.pop %v764
      %v766 = vmul.f32 %v765, 0.5
      %v767 = vadd.f32 %v766, 0.5
      %v768 = vmul.f32 %v762, %v657
      %v769 = vmul.f32 %v758, %v763
      %v770 = vadd.f32 %v768, %v769
      %v771 = vtanh.pop %v770
      %v772 = vmul.f32 %v767, %v771
      %v773 = vpack.c.bf16 %v772, %v772
      %s774 = scalar_lea.vmem %s337, 8
      %775 = vst [vmem:[%s774] sm:$0xff] %v772
      %s776 = scalar_lea.vmem %s320, 32
      %v777 = vld [vmem:[%s776] sm:$0xff]
      %v778 = vld [vmem:[%s776 + $0x8] sm:$0xff]
      %v779 = vunpack.c.l.bf16 %v777
      %v780 = vunpack.c.h.bf16 %v777
      %v781 = vunpack.c.l.bf16 %v778
      %v782 = vunpack.c.h.bf16 %v778
      %783 = vmatprep.subr.bf16.mxu0 %v493
      %784 = vmatpush1.bf16.msra.mxu0 %v492
      %785 = vmatprep.subr.bf16.mxu0 %v497
      %786 = vmatpush1.bf16.msra.mxu0 %v496
      %787 = vmatprep.subr.bf16.mxu0 %v501
      %788 = vmatpush1.bf16.msra.mxu0 %v500
      %789 = vmatprep.subr.bf16.mxu0 %v505
      %790 = vmatpush1.bf16.msra.mxu0 %v504
      %791 = vmatprep.subr.bf16.mxu0 %v509
      %792 = vmatpush1.bf16.msra.mxu0 %v508
      %793 = vmatprep.subr.bf16.mxu0 %v513
      %794 = vmatpush1.bf16.msra.mxu0 %v512
      %795 = vmatprep.subr.bf16.mxu0 %v517
      %796 = vmatpush1.bf16.msra.mxu0 %v516
      %797 = vmatprep.subr.bf16.mxu0 %v521
      %798 = vmatpush1.bf16.msra.mxu0 %v520
      %799 = vmatprep.subr.bf16.mxu0 0
      %800 = vmatpush1.bf16.msra.mxu0 0
      %801 = vmatprep.subr.bf16.mxu0 0
      %802 = vmatpush1.bf16.msra.mxu0 0
      %803 = vmatprep.subr.bf16.mxu0 0
      %804 = vmatpush1.bf16.msra.mxu0 0
      %805 = vmatprep.subr.bf16.mxu0 0
      %806 = vmatpush1.bf16.msra.mxu0 0
      %807 = vmatprep.subr.bf16.mxu0 0
      %808 = vmatpush1.bf16.msra.mxu0 0
      %809 = vmatprep.subr.bf16.mxu0 0
      %810 = vmatpush1.bf16.msra.mxu0 0
      %811 = vmatprep.subr.bf16.mxu0 0
      %812 = vmatpush1.bf16.msra.mxu0 0
      %813 = vmatprep.subr.bf16.mxu0 0
      %814 = vmatpush1.bf16.msra.mxu0 0
      %815 = vmatprep.mubr.bf16.mxu0 0
      %816 = vmatmul.mubr.bf16.gmra.mrb[0].mxu0 %v773
      %v817 = vpop.f32.mrb[0].mxu0
      %v818 = vadd.f32 0.0, %v817
      %v819 = vpop.f32.mrb[0].mxu0
      %v820 = vadd.f32 0.0, %v819
      %v821 = vpop.f32.mrb[0].mxu0
      %v822 = vpop.f32.mrb[0].mxu0
      %823 = vdwg.mxu0
      %824 = vmatprep.subr.bf16.mxu0 %v495
      %825 = vmatpush1.bf16.msra.mxu0 %v494
      %826 = vmatprep.subr.bf16.mxu0 %v499
      %827 = vmatpush1.bf16.msra.mxu0 %v498
      %828 = vmatprep.subr.bf16.mxu0 %v503
      %829 = vmatpush1.bf16.msra.mxu0 %v502
      %830 = vmatprep.subr.bf16.mxu0 %v507
      %831 = vmatpush1.bf16.msra.mxu0 %v506
      %832 = vmatprep.subr.bf16.mxu0 %v511
      %833 = vmatpush1.bf16.msra.mxu0 %v510
      %834 = vmatprep.subr.bf16.mxu0 %v515
      %835 = vmatpush1.bf16.msra.mxu0 %v514
      %836 = vmatprep.subr.bf16.mxu0 %v519
      %837 = vmatpush1.bf16.msra.mxu0 %v518
      %838 = vmatprep.subr.bf16.mxu0 %v523
      %839 = vmatpush1.bf16.msra.mxu0 %v522
      %840 = vmatprep.subr.bf16.mxu0 0
      %841 = vmatpush1.bf16.msra.mxu0 0
      %842 = vmatprep.subr.bf16.mxu0 0
      %843 = vmatpush1.bf16.msra.mxu0 0
      %844 = vmatprep.subr.bf16.mxu0 0
      %845 = vmatpush1.bf16.msra.mxu0 0
      %846 = vmatprep.subr.bf16.mxu0 0
      %847 = vmatpush1.bf16.msra.mxu0 0
      %848 = vmatprep.subr.bf16.mxu0 0
      %849 = vmatpush1.bf16.msra.mxu0 0
      %850 = vmatprep.subr.bf16.mxu0 0
      %851 = vmatpush1.bf16.msra.mxu0 0
      %852 = vmatprep.subr.bf16.mxu0 0
      %853 = vmatpush1.bf16.msra.mxu0 0
      %854 = vmatprep.subr.bf16.mxu0 0
      %855 = vmatpush1.bf16.msra.mxu0 0
      %856 = vmatprep.mubr.bf16.mxu0 0
      %857 = vmatmul.mubr.bf16.gmra.mrb[0].mxu0 %v773
      %v858 = vpop.f32.mrb[0].mxu0
      %v859 = vadd.f32 0.0, %v858
      %v860 = vpop.f32.mrb[0].mxu0
      %v861 = vadd.f32 0.0, %v860
      %v862 = vpop.f32.mrb[0].mxu0
      %v863 = vpop.f32.mrb[0].mxu0
      %864 = vdwg.mxu0
      %v865 = vadd.f32 %v779, %v818
      %v866 = vadd.f32 %v780, %v820
      %v867 = vadd.f32 %v781, %v859
      %v868 = vadd.f32 %v782, %v861
      %v869 = vmul.f32 %v865, 0.5
      %v870 = vtanh.pop %v869
      %v871 = vmul.f32 %v870, 0.5
      %v872 = vadd.f32 %v871, 0.5
      %v873 = vmul.f32 %v866, 0.5
      %v874 = vtanh.pop %v873
      %v875 = vmul.f32 %v874, 0.5
      %v876 = vadd.f32 %v875, 0.5
      %v877 = vtanh.pop %v867
      %v878 = vmul.f32 %v868, 0.5
      %v879 = vtanh.pop %v878
      %v880 = vmul.f32 %v879, 0.5
      %v881 = vadd.f32 %v880, 0.5
      %v882 = vmul.f32 %v876, %v770
      %v883 = vmul.f32 %v872, %v877
      %v884 = vadd.f32 %v882, %v883
      %v885 = vtanh.pop %v884
      %v886 = vmul.f32 %v881, %v885
      %v887 = vpack.c.bf16 %v886, %v886
      %s888 = scalar_lea.vmem %s337, 16
      %889 = vst [vmem:[%s888] sm:$0xff] %v886
      %s890 = scalar_lea.vmem %s320, 48
      %v891 = vld [vmem:[%s890] sm:$0xff]
      %v892 = vld [vmem:[%s890 + $0x8] sm:$0xff]
      %v893 = vunpack.c.l.bf16 %v891
      %v894 = vunpack.c.h.bf16 %v891
      %v895 = vunpack.c.l.bf16 %v892
      %v896 = vunpack.c.h.bf16 %v892
      %897 = vmatprep.subr.bf16.mxu0 %v493
      %898 = vmatpush1.bf16.msra.mxu0 %v492
      %899 = vmatprep.subr.bf16.mxu0 %v497
      %900 = vmatpush1.bf16.msra.mxu0 %v496
      %901 = vmatprep.subr.bf16.mxu0 %v501
      %902 = vmatpush1.bf16.msra.mxu0 %v500
      %903 = vmatprep.subr.bf16.mxu0 %v505
      %904 = vmatpush1.bf16.msra.mxu0 %v504
      %905 = vmatprep.subr.bf16.mxu0 %v509
      %906 = vmatpush1.bf16.msra.mxu0 %v508
      %907 = vmatprep.subr.bf16.mxu0 %v513
      %908 = vmatpush1.bf16.msra.mxu0 %v512
      %909 = vmatprep.subr.bf16.mxu0 %v517
      %910 = vmatpush1.bf16.msra.mxu0 %v516
      %911 = vmatprep.subr.bf16.mxu0 %v521
      %912 = vmatpush1.bf16.msra.mxu0 %v520
      %913 = vmatprep.subr.bf16.mxu0 0
      %914 = vmatpush1.bf16.msra.mxu0 0
      %915 = vmatprep.subr.bf16.mxu0 0
      %916 = vmatpush1.bf16.msra.mxu0 0
      %917 = vmatprep.subr.bf16.mxu0 0
      %918 = vmatpush1.bf16.msra.mxu0 0
      %919 = vmatprep.subr.bf16.mxu0 0
      %920 = vmatpush1.bf16.msra.mxu0 0
      %921 = vmatprep.subr.bf16.mxu0 0
      %922 = vmatpush1.bf16.msra.mxu0 0
      %923 = vmatprep.subr.bf16.mxu0 0
      %924 = vmatpush1.bf16.msra.mxu0 0
      %925 = vmatprep.subr.bf16.mxu0 0
      %926 = vmatpush1.bf16.msra.mxu0 0
      %927 = vmatprep.subr.bf16.mxu0 0
      %928 = vmatpush1.bf16.msra.mxu0 0
      %929 = vmatprep.mubr.bf16.mxu0 0
      %930 = vmatmul.mubr.bf16.gmra.mrb[0].mxu0 %v887
      %v931 = vpop.f32.mrb[0].mxu0
      %v932 = vadd.f32 0.0, %v931
      %v933 = vpop.f32.mrb[0].mxu0
      %v934 = vadd.f32 0.0, %v933
      %v935 = vpop.f32.mrb[0].mxu0
      %v936 = vpop.f32.mrb[0].mxu0
      %937 = vdwg.mxu0
      %938 = vmatprep.subr.bf16.mxu0 %v495
      %939 = vmatpush1.bf16.msra.mxu0 %v494
      %940 = vmatprep.subr.bf16.mxu0 %v499
      %941 = vmatpush1.bf16.msra.mxu0 %v498
      %942 = vmatprep.subr.bf16.mxu0 %v503
      %943 = vmatpush1.bf16.msra.mxu0 %v502
      %944 = vmatprep.subr.bf16.mxu0 %v507
      %945 = vmatpush1.bf16.msra.mxu0 %v506
      %946 = vmatprep.subr.bf16.mxu0 %v511
      %947 = vmatpush1.bf16.msra.mxu0 %v510
      %948 = vmatprep.subr.bf16.mxu0 %v515
      %949 = vmatpush1.bf16.msra.mxu0 %v514
      %950 = vmatprep.subr.bf16.mxu0 %v519
      %951 = vmatpush1.bf16.msra.mxu0 %v518
      %952 = vmatprep.subr.bf16.mxu0 %v523
      %953 = vmatpush1.bf16.msra.mxu0 %v522
      %954 = vmatprep.subr.bf16.mxu0 0
      %955 = vmatpush1.bf16.msra.mxu0 0
      %956 = vmatprep.subr.bf16.mxu0 0
      %957 = vmatpush1.bf16.msra.mxu0 0
      %958 = vmatprep.subr.bf16.mxu0 0
      %959 = vmatpush1.bf16.msra.mxu0 0
      %960 = vmatprep.subr.bf16.mxu0 0
      %961 = vmatpush1.bf16.msra.mxu0 0
      %962 = vmatprep.subr.bf16.mxu0 0
      %963 = vmatpush1.bf16.msra.mxu0 0
      %964 = vmatprep.subr.bf16.mxu0 0
      %965 = vmatpush1.bf16.msra.mxu0 0
      %966 = vmatprep.subr.bf16.mxu0 0
      %967 = vmatpush1.bf16.msra.mxu0 0
      %968 = vmatprep.subr.bf16.mxu0 0
      %969 = vmatpush1.bf16.msra.mxu0 0
      %970 = vmatprep.mubr.bf16.mxu0 0
      %971 = vmatmul.mubr.bf16.gmra.mrb[0].mxu0 %v887
      %v972 = vpop.f32.mrb[0].mxu0
      %v973 = vadd.f32 0.0, %v972
      %v974 = vpop.f32.mrb[0].mxu0
      %v975 = vadd.f32 0.0, %v974
      %v976 = vpop.f32.mrb[0].mxu0
      %v977 = vpop.f32.mrb[0].mxu0
      %978 = vdwg.mxu0
      %v979 = vadd.f32 %v893, %v932
      %v980 = vadd.f32 %v894, %v934
      %v981 = vadd.f32 %v895, %v973
      %v982 = vadd.f32 %v896, %v975
      %v983 = vmul.f32 %v979, 0.5
      %v984 = vtanh.pop %v983
      %v985 = vmul.f32 %v984, 0.5
      %v986 = vadd.f32 %v985, 0.5
      %v987 = vmul.f32 %v980, 0.5
      %v988 = vtanh.pop %v987
      %v989 = vmul.f32 %v988, 0.5
      %v990 = vadd.f32 %v989, 0.5
      %v991 = vtanh.pop %v981
      %v992 = vmul.f32 %v982, 0.5
      %v993 = vtanh.pop %v992
      %v994 = vmul.f32 %v993, 0.5
      %v995 = vadd.f32 %v994, 0.5
      %v996 = vmul.f32 %v990, %v884
      %v997 = vmul.f32 %v986, %v991
      %v998 = vadd.f32 %v996, %v997
      %v999 = vtanh.pop %v998
      %v1000 = vmul.f32 %v995, %v999
      %v1001 = vpack.c.bf16 %v1000, %v1000
      %s1002 = scalar_lea.vmem %s337, 24
      %1003 = vst [vmem:[%s1002] sm:$0xff] %v1000
      %1004 = vst [vmem:[#allocation2] sm:$0xf] %v1001
      %1005 = vst [vmem:[#allocation3] sm:$0xff] %v998
      %p1006 = scmp.eq.s32.totalorder %s23, 1
      // Predicated region
      $region41: #{rnn_model_forward.3} parent=35 // pred_check
        %p1007 = pneg %p1006
      $region42: #{rnn_model_forward.3} parent=35 // pred_check_branch
        %1009 = sbr.rel (%p1007) target = $region44
      $region43: #{rnn_model_forward.3} parent=35 // pred_region
        %v1010 = vunpack.c.l.bf16 %v1001
        %1011 = vst [vmem:[%s342] sm:$0xff] %v1010
        %1012 = vst [vmem:[%s346] sm:$0xff] %v998
      $region44: #{rnn_model_forward.3} parent=35 // pred_fallthru
        _
      %s1013 = smul.u32 4, %s23
      %p1014 = scmp.lt.s32.totalorder %s1013, 7
      %s1015 = scalar_select %p1014, %s1013, 7
      %p1016 = scmp.lt.s32.totalorder %s22, 0
      %s1017 = scalar_select %p1016, %s22, 0
      %s1018 = sadd.s32 %s1017, %s1015
      %s1019 = smul.addr %s1018, 8
      %s1020 = scalar_lea.vmem %s4, %s1019
      %p1021 = scmp.lt.s32.totalorder %s22, 0
      %s1022 = scalar_select %p1021, %s22, 0
      %s1023 = smul.addr %s1022, 8
      %s1024 = scalar_lea.vmem %s5, %s1023
      %p1025 = scmp.lt.s32.totalorder %s22, 0
      %s1026 = scalar_select %p1025, %s22, 0
      %s1027 = smul.addr %s1026, 8
      %s1028 = scalar_lea.vmem %s6, %s1027
      // Predicated region
      $region45: #{rnn_model_forward.3} parent=35 // pred_check
        %p1029 = pneg %p151
      $region46: #{rnn_model_forward.3} parent=35 // pred_check_branch
        %1031 = sbr.rel (%p1029) target = $region48
      $region47: #{rnn_model_forward.3} parent=35 // pred_region
        %s1032 = smul.u32 4, %s23
      $region48: #{rnn_model_forward.3} parent=35 // pred_fallthru
        _
      // Predicated region
      $region49: #{rnn_model_forward.3} parent=35 // pred_check
        %p1033 = pneg %p177
      $region50: #{rnn_model_forward.3} parent=35 // pred_check_branch
        %1035 = sbr.rel (%p1033) target = $region52
      $region51: #{rnn_model_forward.3} parent=35 // pred_region
        _
      $region52: #{rnn_model_forward.3} parent=35 // pred_fallthru
        _
      // Predicated region
      $region53: #{rnn_model_forward.3} parent=35 // pred_check
        %p1036 = pneg %p203
      $region54: #{rnn_model_forward.3} parent=35 // pred_check_branch
        %1038 = sbr.rel (%p1036) target = $region56
      $region55: #{rnn_model_forward.3} parent=35 // pred_region
        _
      $region56: #{rnn_model_forward.3} parent=35 // pred_fallthru
        _
      // Predicated region
      $region57: #{rnn_model_forward.3} parent=35 // pred_check
        %p1039 = pneg %p177
      $region58: #{rnn_model_forward.3} parent=35 // pred_check_branch
        %1041 = sbr.rel (%p1039) target = $region60
      $region59: #{rnn_model_forward.3} parent=35 // pred_region
        %p1042 = scmp.lt.s32.totalorder %s22, 0
        %s1043 = scalar_select %p1042, %s22, 0
        %s1044 = smul.addr %s1043, 8
        %s1045 = scalar_lea.vmem %s5, %s1044
      $region60: #{rnn_model_forward.3} parent=35 // pred_fallthru
        _
      // Predicated region
      $region61: #{rnn_model_forward.3} parent=35 // pred_check
        %p1046 = pneg %p203
      $region62: #{rnn_model_forward.3} parent=35 // pred_check_branch
        %1048 = sbr.rel (%p1046) target = $region64
      $region63: #{rnn_model_forward.3} parent=35 // pred_region
        %p1049 = scmp.lt.s32.totalorder %s22, 0
        %s1050 = scalar_select %p1049, %s22, 0
        %s1051 = smul.addr %s1050, 8
        %s1052 = scalar_lea.vmem %s6, %s1051
      $region64: #{rnn_model_forward.3} parent=35 // pred_fallthru
        _
    $region36: #{rnn_model_forward.3} parent=5 // pred_fallthru
      _
    %p1053 = scmp.le.s32.totalorder 2, %s13
    // Predicated region
    $region65: #{rnn_model_forward.3} parent=5 // pred_check
      %p1054 = pneg %p1053
    $region66: #{rnn_model_forward.3} parent=5 // pred_check_branch
      %1056 = sbr.rel (%p1054) target = $region68
    $region67: #{rnn_model_forward.3} parent=5 // pred_region
      %s1057 = ssub.s32 %s13, 2
      // Predicated region
      $region69: #{rnn_model_forward.3} parent=67 // pred_check
        %p1058 = pneg %p157
      $region70: #{rnn_model_forward.3} parent=67 // pred_check_branch
        %1060 = sbr.rel (%p1058) target = $region72
      $region71: #{rnn_model_forward.3} parent=67 // pred_region
        %s1061 = smul.u32 4, %s25
        %p1062 = scmp.lt.s32.totalorder %s1061, 7
        %s1063 = scalar_select %p1062, %s1061, 7
        %p1064 = scmp.lt.s32.totalorder %s24, 0
        %s1065 = scalar_select %p1064, %s24, 0
        %s1066 = sadd.s32 %s1065, %s1063
        %s1067 = smul.addr %s1066, 8
        %s1068 = scalar_lea.vmem %s4, %s1067
      $region72: #{rnn_model_forward.3} parent=67 // pred_fallthru
        _
    $region68: #{rnn_model_forward.3} parent=5 // pred_fallthru
      _
  $region6: #{rnn_model_forward.3} parent=0 // loop_footer
    %s17 = sadd.s32 1, %s13
  $region7: #{rnn_model_forward.3} parent=0 // loop_footer_branch
    %12 = sbr.rel target = $region3
  $region8: #{rnn_model_forward.3} parent=0 // loop_exit
    _

</llo_original>
